<compile_context>
chip_gen: v7x
topology: tpu7x:2x2x1
jax: 0.10.0
libtpu: 0.0.40
codegen_flags: <defaults>
</compile_context>

<pallas_src>
import functools

import jax
import jax.numpy as jnp
from jax import lax
from jax.experimental import pallas as pl
from jax.experimental.pallas import tpu as pltpu

TB = 8                      # images per grid step (stacked along the lane axis)
W0, W1, W2 = 32, 16, 8      # per-image lane-slot width: input / after pool1 / after pool2


# ----------------------------------------------------------------------------
# Fused kernel: one grid step == TB images.
#   xcat : (5*32, TB*32)  rows = j*32 + h, 5 lane-shifted copies of the inputs
#   a1   : (168, TB*32)   rows = cout*28 + oh        (conv1 + tanh)
#   p1   : (84,  TB*16)   rows = oh*6  + cin          (pool1, channel-minor)
#   a2   : (160, TB*16)   rows = cout*10 + oh        (conv2 + tanh)
#   p2   : (80,  TB*8)    rows = cin*5 + kh           (pool2)
#   head : (84, TB), (10, TB)  columns = image index within the step
# ----------------------------------------------------------------------------
def _lenet_kernel(x_ref, w1_ref, b1_ref, cp1_ref, r1_ref, sh_ref,
                  w2_ref, b2_ref, cp2_ref, r2_ref, sel_ref, a3_ref, c3_ref,
                  wf2_ref, bf2_ref, out_ref):
    dot = functools.partial(jnp.dot, preferred_element_type=jnp.float32)

    xcat = x_ref[0]                                               # (160, TB*32)

    # conv1 (1->6, 5x5) + bias + tanh: ONE banded matmul over the 5 shifted slabs
    a1 = jnp.tanh(dot(w1_ref[...], xcat) + b1_ref[...])           # (168, TB*32)

    # avg-pool 2x2: column-pool then row-pool (rows become oh*6 + cin)
    p1 = dot(r1_ref[...], dot(a1, cp1_ref[...]))                  # (84, TB*16)

    # conv2 (6->16, 5x5): 5 banded matmuls over lane-shifted copies of p1
    acc2 = b2_ref[...] + dot(w2_ref[0], p1)
    for j in range(1, 5):
        acc2 = acc2 + dot(w2_ref[j], dot(p1, sh_ref[j - 1]))
    a2 = jnp.tanh(acc2)                                           # (160, TB*16)

    # avg-pool 2x2 (rows become cin*5 + kh)
    p2 = dot(r2_ref[...], dot(a2, cp2_ref[...]))                  # (80, TB*8)

    # conv3 (16->120, 5x5 -> 1x1) folded with Linear(120,84): per kernel-column j,
    # select that column for every image (sel), then apply the fused weights.
    h = c3_ref[...] + dot(a3_ref[0], dot(p2, sel_ref[0]))
    for j in range(1, 5):
        h = h + dot(a3_ref[j], dot(p2, sel_ref[j]))               # (84, TB)
    hh = jnp.tanh(h)

    out_ref[0] = dot(wf2_ref[...], hh) + bf2_ref[...]             # (10, TB)


# ----------------------------------------------------------------------------
# Host-side, one-time weight repacking (~1 MiB total, VMEM-resident).
# ----------------------------------------------------------------------------
def pack_params(params):
    f32 = jnp.float32
    w1, b1 = params["w1"].astype(f32), params["b1"].astype(f32)      # (6,1,5,5)
    w2, b2 = params["w2"].astype(f32), params["b2"].astype(f32)      # (16,6,5,5)
    w3, b3 = params["w3"].astype(f32), params["b3"].astype(f32)      # (120,16,5,5)
    wf1, bf1 = params["wf1"].astype(f32), params["bf1"].astype(f32)  # (84,120)
    wf2, bf2 = params["wf2"].astype(f32), params["bf2"].astype(f32)  # (10,84)

    def toeplitz_rows(w, out_h, in_h):
        # w: (Cout, Cin, 5, 5) -> T: (5, Cout*out_h, in_h*Cin) with
        # T[j, co*out_h + oh, q*Cin + ci] = w[co, ci, q - oh, j] for 0 <= q-oh <= 4.
        cout, cin = w.shape[0], w.shape[1]
        d = jnp.arange(in_h)[None, :] - jnp.arange(out_h)[:, None]     # (out_h, in_h)
        mask = ((d >= 0) & (d <= 4)).astype(f32)
        t = w[:, :, jnp.clip(d, 0, 4), :]                  # (Cout, Cin, out_h, in_h, 5)
        t = t * mask[None, None, :, :, None]
        return t.transpose(4, 0, 2, 3, 1).reshape(5, cout * out_h, in_h * cin)

    def half_pool(n):                                      # (n//2, n) adjacent-pair avg
        return 0.5 * jnp.repeat(jnp.eye(n // 2, dtype=f32), 2, axis=1)

    eye_tb = jnp.eye(TB, dtype=f32)

    # conv1: banded weights for the 5 kernel columns, concatenated -> one matmul.
    w1c = toeplitz_rows(w1, 28, 32).transpose(1, 0, 2).reshape(168, 5 * 32)
    b1r = jnp.repeat(b1, 28)[:, None]                                  # (168, 1)

    # pool1: column pool (per image slot of 32 -> 16) and row pool / channel reorder.
    cp1 = jnp.kron(eye_tb, half_pool(W0).T)                            # (TB*32, TB*16)
    r1 = jnp.einsum("oh,cd->ocdh", half_pool(28),
                    jnp.eye(6, dtype=f32)).reshape(84, 168)            # (84, 168)

    # conv2: lane-shift matrices (p1 @ sh_j reads column c+j) + banded weights.
    sh = jnp.stack([jnp.eye(TB * W1, k=-j, dtype=f32) for j in range(1, 5)])
    w2c = toeplitz_rows(w2, 10, 14)                                    # (5, 160, 84)
    b2r = jnp.repeat(b2, 10)[:, None]                                  # (160, 1)

    # pool2.
    cp2 = jnp.kron(eye_tb, half_pool(W1).T)                            # (TB*16, TB*8)
    r2 = jnp.kron(jnp.eye(16, dtype=f32), half_pool(10))               # (80, 160)

    # conv3 column selection (per image pick column j) + fold conv3 with fc1.
    sel = jnp.stack([jnp.kron(eye_tb, (jnp.arange(W2) == j).astype(f32)[:, None])
                     for j in range(5)])                               # (5, TB*8, TB)
    a3 = jnp.stack([wf1 @ w3[:, :, :, j].reshape(120, 80)
                    for j in range(5)])                                # (5, 84, 80)
    c3 = wf1 @ b3[:, None] + bf1[:, None]                              # (84, 1)

    return (w1c, b1r, cp1, r1, sh, w2c, b2r, cp2, r2, sel, a3, c3, wf2, bf2[:, None])


# ----------------------------------------------------------------------------
# Forward pass: one fused pallas_call, grid over batches of TB images.
# ----------------------------------------------------------------------------
def lenet_forward(packed, x):
    """x: (B, 1, 32, 32) float32 -> logits (B, 10)."""
    B = x.shape[0]
    x = x.astype(jnp.float32)
    pad = (-B) % TB
    if pad:
        x = jnp.concatenate([x, jnp.zeros((pad,) + x.shape[1:], jnp.float32)], axis=0)
    S = (B + pad) // TB

    # Pack TB images side-by-side along the lane axis: (S, 32, TB*32).
    xl = x.reshape(S, TB, 32, 32).transpose(0, 2, 1, 3).reshape(S, 32, TB * W0)
    # Pre-shift by the 5 kernel-column offsets; stack along rows -> (S, 160, TB*32).
    # (Wrap-around only pollutes the per-image garbage tail columns.)
    xcat = jnp.concatenate([jnp.roll(xl, -j, axis=2) for j in range(5)], axis=1)

    def const_spec(a):
        zeros = (0,) * a.ndim
        return pl.BlockSpec(a.shape, lambda s, _z=zeros: _z)      # VMEM-resident

    in_specs = [pl.BlockSpec((1, 5 * 32, TB * W0), lambda s: (s, 0, 0))]
    in_specs += [const_spec(w) for w in packed]

    flops_step = 2 * (168 * 160 * TB * W0 + 168 * TB * W0 * TB * W1
                      + 84 * 168 * TB * W1 + 4 * 84 * (TB * W1) ** 2
                      + 5 * 160 * 84 * TB * W1 + 160 * TB * W1 * TB * W2
                      + 80 * 160 * TB * W2 + 5 * 80 * TB * W2 * TB
                      + 5 * 84 * 80 * TB + 10 * 84 * TB)
    cost = pl.CostEstimate(
        flops=S * flops_step,
        transcendentals=S * (168 * TB * W0 + 160 * TB * W1 + 84 * TB),
        bytes_accessed=int(xcat.size) * 4
                       + sum(int(w.size) * 4 for w in packed)
                       + S * 10 * TB * 4,
    )

    out = pl.pallas_call(
        _lenet_kernel,
        out_shape=jax.ShapeDtypeStruct((S, 10, TB), jnp.float32),
        grid=(S,),
        in_specs=in_specs,
        out_specs=pl.BlockSpec((1, 10, TB), lambda s: (s, 0, 0)),
        compiler_params=pltpu.CompilerParams(
            dimension_semantics=("parallel",),       # shards steps across v7x's 2 TCs
            vmem_limit_bytes=32 * 1024 * 1024,
        ),
        cost_estimate=cost,
    )(xcat, *packed)

    # (S, 10, TB) -> (B, 10).  torch's .squeeze() would give (10,) for B == 1;
    # we always return (B, 10).
    return out.transpose(0, 2, 1).reshape(S * TB, 10)[:B]


# ----------------------------------------------------------------------------
# Deterministic parameter init (shapes from LeNet.__init__)
# ----------------------------------------------------------------------------
def init_params(seed=42):
    keys = jax.random.split(jax.random.PRNGKey(seed), 10)

    def w(key, shape, scale=0.1):
        return (scale * jax.random.normal(key, shape)).astype(jnp.float32)

    return {
        "w1": w(keys[0], (6, 1, 5, 5)),     "b1": w(keys[1], (6,)),
        "w2": w(keys[2], (16, 6, 5, 5)),    "b2": w(keys[3], (16,)),
        "w3": w(keys[4], (120, 16, 5, 5)),  "b3": w(keys[5], (120,)),
        "wf1": w(keys[6], (84, 120)),       "bf1": w(keys[7], (84,)),
        "wf2": w(keys[8], (10, 84)),        "bf2": w(keys[9], (10,)),
    }


# ----------------------------------------------------------------------------
# Pure-JAX reference (high precision) for the correctness check.
# ----------------------------------------------------------------------------
def ref_forward(params, x):
    def conv(x, w, b):
        y = lax.conv_general_dilated(
            x, w, (1, 1), "VALID",
            dimension_numbers=("NCHW", "OIHW", "NCHW"),
            precision=lax.Precision.HIGHEST,
        )
        return y + b.reshape(1, -1, 1, 1)

    def pool(x):
        return lax.reduce_window(
            x, 0.0, lax.add, (1, 1, 2, 2), (1, 1, 2, 2), "VALID") / 4.0

    x = pool(jnp.tanh(conv(x, params["w1"], params["b1"])))
    x = pool(jnp.tanh(conv(x, params["w2"], params["b2"])))
    x = conv(x, params["w3"], params["b3"]).reshape(x.shape[0], 120)
    x = jnp.tanh(jnp.dot(x, params["wf1"].T,
                         precision=lax.Precision.HIGHEST) + params["bf1"])
    x = jnp.dot(x, params["wf2"].T,
                precision=lax.Precision.HIGHEST) + params["bf2"]
    return x


if __name__ == "__main__":
    params = init_params(seed=42)
    # LeNet-5 geometry requires 32x32 single-channel input.
    x = jax.random.normal(jax.random.PRNGKey(0), (2, 1, 32, 32), dtype=jnp.float32)

    packed = pack_params(params)
    fwd = jax.jit(lenet_forward)
    out = jax.block_until_ready(fwd(packed, x))
    assert out.shape == (2, 10), out.shape

    ref = jax.block_until_ready(jax.jit(ref_forward)(params, x))
    # In-kernel matmuls run at the MXU's native precision with f32 accumulation;
    # compare against the HIGHEST-precision reference with a loosened tolerance.
    # Structural/packing bugs would give O(0.3+) errors.
    assert jnp.allclose(out, ref, atol=5e-2, rtol=5e-2), \
        float(jnp.max(jnp.abs(out - ref)))

    print("KERNEL_OK")
</pallas_src>

<mosaic_0001>
module attributes {stable_mosaic.version = 11 : i64} {
  func.func @_lenet_kernel(%arg0: i32, %arg1: memref<1x160x256xf32, #tpu.memory_space<vmem>>, %arg2: memref<168x160xf32, #tpu.memory_space<vmem>>, %arg3: memref<168x1xf32, #tpu.memory_space<vmem>>, %arg4: memref<256x128xf32, #tpu.memory_space<vmem>>, %arg5: memref<84x168xf32, #tpu.memory_space<vmem>>, %arg6: memref<4x128x128xf32, #tpu.memory_space<vmem>>, %arg7: memref<5x160x84xf32, #tpu.memory_space<vmem>>, %arg8: memref<160x1xf32, #tpu.memory_space<vmem>>, %arg9: memref<128x64xf32, #tpu.memory_space<vmem>>, %arg10: memref<80x160xf32, #tpu.memory_space<vmem>>, %arg11: memref<5x64x8xf32, #tpu.memory_space<vmem>>, %arg12: memref<5x84x80xf32, #tpu.memory_space<vmem>>, %arg13: memref<84x1xf32, #tpu.memory_space<vmem>>, %arg14: memref<10x84xf32, #tpu.memory_space<vmem>>, %arg15: memref<10x1xf32, #tpu.memory_space<vmem>>, %arg16: memref<1x10x8xf32, #tpu.memory_space<vmem>>) attributes {dimension_semantics = [#tpu.dimension_semantics<parallel>], iteration_bounds = array<i64: 1>, scalar_prefetch = 0 : i64, scratch_operands = 0 : i64, tpu.core_type = #tpu.core_type<tc>, window_params = [{transform_indices = @transform_0, window_bounds = array<i64: 1, 160, 256>}, {pipeline_mode = #tpu.pipeline_mode<synchronous>, transform_indices = @transform_1, window_bounds = array<i64: 168, 160>}, {pipeline_mode = #tpu.pipeline_mode<synchronous>, transform_indices = @transform_2, window_bounds = array<i64: 168, 1>}, {pipeline_mode = #tpu.pipeline_mode<synchronous>, transform_indices = @transform_3, window_bounds = array<i64: 256, 128>}, {pipeline_mode = #tpu.pipeline_mode<synchronous>, transform_indices = @transform_4, window_bounds = array<i64: 84, 168>}, {pipeline_mode = #tpu.pipeline_mode<synchronous>, transform_indices = @transform_5, window_bounds = array<i64: 4, 128, 128>}, {pipeline_mode = #tpu.pipeline_mode<synchronous>, transform_indices = @transform_6, window_bounds = array<i64: 5, 160, 84>}, {pipeline_mode = #tpu.pipeline_mode<synchronous>, transform_indices = @transform_7, window_bounds = array<i64: 160, 1>}, {pipeline_mode = #tpu.pipeline_mode<synchronous>, transform_indices = @transform_8, window_bounds = array<i64: 128, 64>}, {pipeline_mode = #tpu.pipeline_mode<synchronous>, transform_indices = @transform_9, window_bounds = array<i64: 80, 160>}, {pipeline_mode = #tpu.pipeline_mode<synchronous>, transform_indices = @transform_10, window_bounds = array<i64: 5, 64, 8>}, {pipeline_mode = #tpu.pipeline_mode<synchronous>, transform_indices = @transform_11, window_bounds = array<i64: 5, 84, 80>}, {pipeline_mode = #tpu.pipeline_mode<synchronous>, transform_indices = @transform_12, window_bounds = array<i64: 84, 1>}, {pipeline_mode = #tpu.pipeline_mode<synchronous>, transform_indices = @transform_13, window_bounds = array<i64: 10, 84>}, {pipeline_mode = #tpu.pipeline_mode<synchronous>, transform_indices = @transform_14, window_bounds = array<i64: 10, 1>}, {transform_indices = @transform_15, window_bounds = array<i64: 1, 10, 8>}]} {
    %c0 = arith.constant 0 : index
    %c0_0 = arith.constant 0 : index
    %c0_1 = arith.constant 0 : index
    %0 = vector.load %arg1[%c0, %c0_0, %c0_1] : memref<1x160x256xf32, #tpu.memory_space<vmem>>, vector<1x160x256xf32>
    %1 = vector.shape_cast %0 : vector<1x160x256xf32> to vector<160x256xf32>
    %c0_2 = arith.constant 0 : index
    %c0_3 = arith.constant 0 : index
    %2 = vector.load %arg2[%c0_2, %c0_3] : memref<168x160xf32, #tpu.memory_space<vmem>>, vector<168x160xf32>
    %cst = arith.constant dense<0.000000e+00> : vector<168x256xf32>
    %3 = tpu.matmul %2, %1, %cst {dimension_numbers = #tpu.dot_dimension_numbers<[1], [0], [0], [1], [0, 0, 1, 1], [], []>} : vector<168x160xf32>, vector<160x256xf32>, vector<168x256xf32> -> vector<168x256xf32>
    %c0_4 = arith.constant 0 : index
    %c0_5 = arith.constant 0 : index
    %4 = vector.load %arg3[%c0_4, %c0_5] : memref<168x1xf32, #tpu.memory_space<vmem>>, vector<168x1xf32>
    %5 = vector.broadcast %4 : vector<168x1xf32> to vector<168x256xf32>
    %6 = arith.addf %3, %5 : vector<168x256xf32>
    %7 = math.tanh %6 : vector<168x256xf32>
    %c0_6 = arith.constant 0 : index
    %c0_7 = arith.constant 0 : index
    %8 = vector.load %arg5[%c0_6, %c0_7] : memref<84x168xf32, #tpu.memory_space<vmem>>, vector<84x168xf32>
    %c0_8 = arith.constant 0 : index
    %c0_9 = arith.constant 0 : index
    %9 = vector.load %arg4[%c0_8, %c0_9] : memref<256x128xf32, #tpu.memory_space<vmem>>, vector<256x128xf32>
    %cst_10 = arith.constant dense<0.000000e+00> : vector<168x128xf32>
    %10 = tpu.matmul %7, %9, %cst_10 {dimension_numbers = #tpu.dot_dimension_numbers<[1], [0], [0], [1], [0, 0, 1, 1], [], []>} : vector<168x256xf32>, vector<256x128xf32>, vector<168x128xf32> -> vector<168x128xf32>
    %cst_11 = arith.constant dense<0.000000e+00> : vector<84x128xf32>
    %11 = tpu.matmul %8, %10, %cst_11 {dimension_numbers = #tpu.dot_dimension_numbers<[1], [0], [0], [1], [0, 0, 1, 1], [], []>} : vector<84x168xf32>, vector<168x128xf32>, vector<84x128xf32> -> vector<84x128xf32>
    %c0_12 = arith.constant 0 : index
    %c0_13 = arith.constant 0 : index
    %12 = vector.load %arg8[%c0_12, %c0_13] : memref<160x1xf32, #tpu.memory_space<vmem>>, vector<160x1xf32>
    %c0_14 = arith.constant 0 : index
    %c0_15 = arith.constant 0 : index
    %c0_16 = arith.constant 0 : index
    %13 = vector.load %arg7[%c0_14, %c0_15, %c0_16] : memref<5x160x84xf32, #tpu.memory_space<vmem>>, vector<1x160x84xf32>
    %14 = vector.shape_cast %13 : vector<1x160x84xf32> to vector<160x84xf32>
    %cst_17 = arith.constant dense<0.000000e+00> : vector<160x128xf32>
    %15 = tpu.matmul %14, %11, %cst_17 {dimension_numbers = #tpu.dot_dimension_numbers<[1], [0], [0], [1], [0, 0, 1, 1], [], []>} : vector<160x84xf32>, vector<84x128xf32>, vector<160x128xf32> -> vector<160x128xf32>
    %16 = vector.broadcast %12 : vector<160x1xf32> to vector<160x128xf32>
    %17 = arith.addf %16, %15 : vector<160x128xf32>
    %c1 = arith.constant 1 : index
    %c0_18 = arith.constant 0 : index
    %c0_19 = arith.constant 0 : index
    %18 = vector.load %arg7[%c1, %c0_18, %c0_19] : memref<5x160x84xf32, #tpu.memory_space<vmem>>, vector<1x160x84xf32>
    %19 = vector.shape_cast %18 : vector<1x160x84xf32> to vector<160x84xf32>
    %c0_20 = arith.constant 0 : index
    %c0_21 = arith.constant 0 : index
    %c0_22 = arith.constant 0 : index
    %20 = vector.load %arg6[%c0_20, %c0_21, %c0_22] : memref<4x128x128xf32, #tpu.memory_space<vmem>>, vector<1x128x128xf32>
    %21 = vector.shape_cast %20 : vector<1x128x128xf32> to vector<128x128xf32>
    %cst_23 = arith.constant dense<0.000000e+00> : vector<84x128xf32>
    %22 = tpu.matmul %11, %21, %cst_23 {dimension_numbers = #tpu.dot_dimension_numbers<[1], [0], [0], [1], [0, 0, 1, 1], [], []>} : vector<84x128xf32>, vector<128x128xf32>, vector<84x128xf32> -> vector<84x128xf32>
    %cst_24 = arith.constant dense<0.000000e+00> : vector<160x128xf32>
    %23 = tpu.matmul %19, %22, %cst_24 {dimension_numbers = #tpu.dot_dimension_numbers<[1], [0], [0], [1], [0, 0, 1, 1], [], []>} : vector<160x84xf32>, vector<84x128xf32>, vector<160x128xf32> -> vector<160x128xf32>
    %24 = arith.addf %17, %23 : vector<160x128xf32>
    %c2 = arith.constant 2 : index
    %c0_25 = arith.constant 0 : index
    %c0_26 = arith.constant 0 : index
    %25 = vector.load %arg7[%c2, %c0_25, %c0_26] : memref<5x160x84xf32, #tpu.memory_space<vmem>>, vector<1x160x84xf32>
    %26 = vector.shape_cast %25 : vector<1x160x84xf32> to vector<160x84xf32>
    %c1_27 = arith.constant 1 : index
    %c0_28 = arith.constant 0 : index
    %c0_29 = arith.constant 0 : index
    %27 = vector.load %arg6[%c1_27, %c0_28, %c0_29] : memref<4x128x128xf32, #tpu.memory_space<vmem>>, vector<1x128x128xf32>
    %28 = vector.shape_cast %27 : vector<1x128x128xf32> to vector<128x128xf32>
    %cst_30 = arith.constant dense<0.000000e+00> : vector<84x128xf32>
    %29 = tpu.matmul %11, %28, %cst_30 {dimension_numbers = #tpu.dot_dimension_numbers<[1], [0], [0], [1], [0, 0, 1, 1], [], []>} : vector<84x128xf32>, vector<128x128xf32>, vector<84x128xf32> -> vector<84x128xf32>
    %cst_31 = arith.constant dense<0.000000e+00> : vector<160x128xf32>
    %30 = tpu.matmul %26, %29, %cst_31 {dimension_numbers = #tpu.dot_dimension_numbers<[1], [0], [0], [1], [0, 0, 1, 1], [], []>} : vector<160x84xf32>, vector<84x128xf32>, vector<160x128xf32> -> vector<160x128xf32>
    %31 = arith.addf %24, %30 : vector<160x128xf32>
    %c3 = arith.constant 3 : index
    %c0_32 = arith.constant 0 : index
    %c0_33 = arith.constant 0 : index
    %32 = vector.load %arg7[%c3, %c0_32, %c0_33] : memref<5x160x84xf32, #tpu.memory_space<vmem>>, vector<1x160x84xf32>
    %33 = vector.shape_cast %32 : vector<1x160x84xf32> to vector<160x84xf32>
    %c2_34 = arith.constant 2 : index
    %c0_35 = arith.constant 0 : index
    %c0_36 = arith.constant 0 : index
    %34 = vector.load %arg6[%c2_34, %c0_35, %c0_36] : memref<4x128x128xf32, #tpu.memory_space<vmem>>, vector<1x128x128xf32>
    %35 = vector.shape_cast %34 : vector<1x128x128xf32> to vector<128x128xf32>
    %cst_37 = arith.constant dense<0.000000e+00> : vector<84x128xf32>
    %36 = tpu.matmul %11, %35, %cst_37 {dimension_numbers = #tpu.dot_dimension_numbers<[1], [0], [0], [1], [0, 0, 1, 1], [], []>} : vector<84x128xf32>, vector<128x128xf32>, vector<84x128xf32> -> vector<84x128xf32>
    %cst_38 = arith.constant dense<0.000000e+00> : vector<160x128xf32>
    %37 = tpu.matmul %33, %36, %cst_38 {dimension_numbers = #tpu.dot_dimension_numbers<[1], [0], [0], [1], [0, 0, 1, 1], [], []>} : vector<160x84xf32>, vector<84x128xf32>, vector<160x128xf32> -> vector<160x128xf32>
    %38 = arith.addf %31, %37 : vector<160x128xf32>
    %c4 = arith.constant 4 : index
    %c0_39 = arith.constant 0 : index
    %c0_40 = arith.constant 0 : index
    %39 = vector.load %arg7[%c4, %c0_39, %c0_40] : memref<5x160x84xf32, #tpu.memory_space<vmem>>, vector<1x160x84xf32>
    %40 = vector.shape_cast %39 : vector<1x160x84xf32> to vector<160x84xf32>
    %c3_41 = arith.constant 3 : index
    %c0_42 = arith.constant 0 : index
    %c0_43 = arith.constant 0 : index
    %41 = vector.load %arg6[%c3_41, %c0_42, %c0_43] : memref<4x128x128xf32, #tpu.memory_space<vmem>>, vector<1x128x128xf32>
    %42 = vector.shape_cast %41 : vector<1x128x128xf32> to vector<128x128xf32>
    %cst_44 = arith.constant dense<0.000000e+00> : vector<84x128xf32>
    %43 = tpu.matmul %11, %42, %cst_44 {dimension_numbers = #tpu.dot_dimension_numbers<[1], [0], [0], [1], [0, 0, 1, 1], [], []>} : vector<84x128xf32>, vector<128x128xf32>, vector<84x128xf32> -> vector<84x128xf32>
    %cst_45 = arith.constant dense<0.000000e+00> : vector<160x128xf32>
    %44 = tpu.matmul %40, %43, %cst_45 {dimension_numbers = #tpu.dot_dimension_numbers<[1], [0], [0], [1], [0, 0, 1, 1], [], []>} : vector<160x84xf32>, vector<84x128xf32>, vector<160x128xf32> -> vector<160x128xf32>
    %45 = arith.addf %38, %44 : vector<160x128xf32>
    %46 = math.tanh %45 : vector<160x128xf32>
    %c0_46 = arith.constant 0 : index
    %c0_47 = arith.constant 0 : index
    %47 = vector.load %arg10[%c0_46, %c0_47] : memref<80x160xf32, #tpu.memory_space<vmem>>, vector<80x160xf32>
    %c0_48 = arith.constant 0 : index
    %c0_49 = arith.constant 0 : index
    %48 = vector.load %arg9[%c0_48, %c0_49] : memref<128x64xf32, #tpu.memory_space<vmem>>, vector<128x64xf32>
    %cst_50 = arith.constant dense<0.000000e+00> : vector<160x64xf32>
    %49 = tpu.matmul %46, %48, %cst_50 {dimension_numbers = #tpu.dot_dimension_numbers<[1], [0], [0], [1], [0, 0, 1, 1], [], []>} : vector<160x128xf32>, vector<128x64xf32>, vector<160x64xf32> -> vector<160x64xf32>
    %cst_51 = arith.constant dense<0.000000e+00> : vector<80x64xf32>
    %50 = tpu.matmul %47, %49, %cst_51 {dimension_numbers = #tpu.dot_dimension_numbers<[1], [0], [0], [1], [0, 0, 1, 1], [], []>} : vector<80x160xf32>, vector<160x64xf32>, vector<80x64xf32> -> vector<80x64xf32>
    %c0_52 = arith.constant 0 : index
    %c0_53 = arith.constant 0 : index
    %51 = vector.load %arg13[%c0_52, %c0_53] : memref<84x1xf32, #tpu.memory_space<vmem>>, vector<84x1xf32>
    %c0_54 = arith.constant 0 : index
    %c0_55 = arith.constant 0 : index
    %c0_56 = arith.constant 0 : index
    %52 = vector.load %arg12[%c0_54, %c0_55, %c0_56] : memref<5x84x80xf32, #tpu.memory_space<vmem>>, vector<1x84x80xf32>
    %53 = vector.shape_cast %52 : vector<1x84x80xf32> to vector<84x80xf32>
    %c0_57 = arith.constant 0 : index
    %c0_58 = arith.constant 0 : index
    %c0_59 = arith.constant 0 : index
    %54 = vector.load %arg11[%c0_57, %c0_58, %c0_59] : memref<5x64x8xf32, #tpu.memory_space<vmem>>, vector<1x64x8xf32>
    %55 = vector.shape_cast %54 : vector<1x64x8xf32> to vector<64x8xf32>
    %cst_60 = arith.constant dense<0.000000e+00> : vector<80x8xf32>
    %56 = tpu.matmul %50, %55, %cst_60 {dimension_numbers = #tpu.dot_dimension_numbers<[1], [0], [0], [1], [0, 0, 1, 1], [], []>} : vector<80x64xf32>, vector<64x8xf32>, vector<80x8xf32> -> vector<80x8xf32>
    %cst_61 = arith.constant dense<0.000000e+00> : vector<84x8xf32>
    %57 = tpu.matmul %53, %56, %cst_61 {dimension_numbers = #tpu.dot_dimension_numbers<[1], [0], [0], [1], [0, 0, 1, 1], [], []>} : vector<84x80xf32>, vector<80x8xf32>, vector<84x8xf32> -> vector<84x8xf32>
    %58 = vector.broadcast %51 : vector<84x1xf32> to vector<84x8xf32>
    %59 = arith.addf %58, %57 : vector<84x8xf32>
    %c1_62 = arith.constant 1 : index
    %c0_63 = arith.constant 0 : index
    %c0_64 = arith.constant 0 : index
    %60 = vector.load %arg12[%c1_62, %c0_63, %c0_64] : memref<5x84x80xf32, #tpu.memory_space<vmem>>, vector<1x84x80xf32>
    %61 = vector.shape_cast %60 : vector<1x84x80xf32> to vector<84x80xf32>
    %c1_65 = arith.constant 1 : index
    %c0_66 = arith.constant 0 : index
    %c0_67 = arith.constant 0 : index
    %62 = vector.load %arg11[%c1_65, %c0_66, %c0_67] : memref<5x64x8xf32, #tpu.memory_space<vmem>>, vector<1x64x8xf32>
    %63 = vector.shape_cast %62 : vector<1x64x8xf32> to vector<64x8xf32>
    %cst_68 = arith.constant dense<0.000000e+00> : vector<80x8xf32>
    %64 = tpu.matmul %50, %63, %cst_68 {dimension_numbers = #tpu.dot_dimension_numbers<[1], [0], [0], [1], [0, 0, 1, 1], [], []>} : vector<80x64xf32>, vector<64x8xf32>, vector<80x8xf32> -> vector<80x8xf32>
    %cst_69 = arith.constant dense<0.000000e+00> : vector<84x8xf32>
    %65 = tpu.matmul %61, %64, %cst_69 {dimension_numbers = #tpu.dot_dimension_numbers<[1], [0], [0], [1], [0, 0, 1, 1], [], []>} : vector<84x80xf32>, vector<80x8xf32>, vector<84x8xf32> -> vector<84x8xf32>
    %66 = arith.addf %59, %65 : vector<84x8xf32>
    %c2_70 = arith.constant 2 : index
    %c0_71 = arith.constant 0 : index
    %c0_72 = arith.constant 0 : index
    %67 = vector.load %arg12[%c2_70, %c0_71, %c0_72] : memref<5x84x80xf32, #tpu.memory_space<vmem>>, vector<1x84x80xf32>
    %68 = vector.shape_cast %67 : vector<1x84x80xf32> to vector<84x80xf32>
    %c2_73 = arith.constant 2 : index
    %c0_74 = arith.constant 0 : index
    %c0_75 = arith.constant 0 : index
    %69 = vector.load %arg11[%c2_73, %c0_74, %c0_75] : memref<5x64x8xf32, #tpu.memory_space<vmem>>, vector<1x64x8xf32>
    %70 = vector.shape_cast %69 : vector<1x64x8xf32> to vector<64x8xf32>
    %cst_76 = arith.constant dense<0.000000e+00> : vector<80x8xf32>
    %71 = tpu.matmul %50, %70, %cst_76 {dimension_numbers = #tpu.dot_dimension_numbers<[1], [0], [0], [1], [0, 0, 1, 1], [], []>} : vector<80x64xf32>, vector<64x8xf32>, vector<80x8xf32> -> vector<80x8xf32>
    %cst_77 = arith.constant dense<0.000000e+00> : vector<84x8xf32>
    %72 = tpu.matmul %68, %71, %cst_77 {dimension_numbers = #tpu.dot_dimension_numbers<[1], [0], [0], [1], [0, 0, 1, 1], [], []>} : vector<84x80xf32>, vector<80x8xf32>, vector<84x8xf32> -> vector<84x8xf32>
    %73 = arith.addf %66, %72 : vector<84x8xf32>
    %c3_78 = arith.constant 3 : index
    %c0_79 = arith.constant 0 : index
    %c0_80 = arith.constant 0 : index
    %74 = vector.load %arg12[%c3_78, %c0_79, %c0_80] : memref<5x84x80xf32, #tpu.memory_space<vmem>>, vector<1x84x80xf32>
    %75 = vector.shape_cast %74 : vector<1x84x80xf32> to vector<84x80xf32>
    %c3_81 = arith.constant 3 : index
    %c0_82 = arith.constant 0 : index
    %c0_83 = arith.constant 0 : index
    %76 = vector.load %arg11[%c3_81, %c0_82, %c0_83] : memref<5x64x8xf32, #tpu.memory_space<vmem>>, vector<1x64x8xf32>
    %77 = vector.shape_cast %76 : vector<1x64x8xf32> to vector<64x8xf32>
    %cst_84 = arith.constant dense<0.000000e+00> : vector<80x8xf32>
    %78 = tpu.matmul %50, %77, %cst_84 {dimension_numbers = #tpu.dot_dimension_numbers<[1], [0], [0], [1], [0, 0, 1, 1], [], []>} : vector<80x64xf32>, vector<64x8xf32>, vector<80x8xf32> -> vector<80x8xf32>
    %cst_85 = arith.constant dense<0.000000e+00> : vector<84x8xf32>
    %79 = tpu.matmul %75, %78, %cst_85 {dimension_numbers = #tpu.dot_dimension_numbers<[1], [0], [0], [1], [0, 0, 1, 1], [], []>} : vector<84x80xf32>, vector<80x8xf32>, vector<84x8xf32> -> vector<84x8xf32>
    %80 = arith.addf %73, %79 : vector<84x8xf32>
    %c4_86 = arith.constant 4 : index
    %c0_87 = arith.constant 0 : index
    %c0_88 = arith.constant 0 : index
    %81 = vector.load %arg12[%c4_86, %c0_87, %c0_88] : memref<5x84x80xf32, #tpu.memory_space<vmem>>, vector<1x84x80xf32>
    %82 = vector.shape_cast %81 : vector<1x84x80xf32> to vector<84x80xf32>
    %c4_89 = arith.constant 4 : index
    %c0_90 = arith.constant 0 : index
    %c0_91 = arith.constant 0 : index
    %83 = vector.load %arg11[%c4_89, %c0_90, %c0_91] : memref<5x64x8xf32, #tpu.memory_space<vmem>>, vector<1x64x8xf32>
    %84 = vector.shape_cast %83 : vector<1x64x8xf32> to vector<64x8xf32>
    %cst_92 = arith.constant dense<0.000000e+00> : vector<80x8xf32>
    %85 = tpu.matmul %50, %84, %cst_92 {dimension_numbers = #tpu.dot_dimension_numbers<[1], [0], [0], [1], [0, 0, 1, 1], [], []>} : vector<80x64xf32>, vector<64x8xf32>, vector<80x8xf32> -> vector<80x8xf32>
    %cst_93 = arith.constant dense<0.000000e+00> : vector<84x8xf32>
    %86 = tpu.matmul %82, %85, %cst_93 {dimension_numbers = #tpu.dot_dimension_numbers<[1], [0], [0], [1], [0, 0, 1, 1], [], []>} : vector<84x80xf32>, vector<80x8xf32>, vector<84x8xf32> -> vector<84x8xf32>
    %87 = arith.addf %80, %86 : vector<84x8xf32>
    %88 = math.tanh %87 : vector<84x8xf32>
    %c0_94 = arith.constant 0 : index
    %c0_95 = arith.constant 0 : index
    %89 = vector.load %arg14[%c0_94, %c0_95] : memref<10x84xf32, #tpu.memory_space<vmem>>, vector<10x84xf32>
    %cst_96 = arith.constant dense<0.000000e+00> : vector<10x8xf32>
    %90 = tpu.matmul %89, %88, %cst_96 {dimension_numbers = #tpu.dot_dimension_numbers<[1], [0], [0], [1], [0, 0, 1, 1], [], []>} : vector<10x84xf32>, vector<84x8xf32>, vector<10x8xf32> -> vector<10x8xf32>
    %c0_97 = arith.constant 0 : index
    %c0_98 = arith.constant 0 : index
    %91 = vector.load %arg15[%c0_97, %c0_98] : memref<10x1xf32, #tpu.memory_space<vmem>>, vector<10x1xf32>
    %92 = vector.broadcast %91 : vector<10x1xf32> to vector<10x8xf32>
    %93 = arith.addf %90, %92 : vector<10x8xf32>
    %c0_99 = arith.constant 0 : index
    %c0_100 = arith.constant 0 : index
    %c0_101 = arith.constant 0 : index
    %94 = vector.load %arg16[%c0_99, %c0_100, %c0_101] : memref<1x10x8xf32, #tpu.memory_space<vmem>>, vector<1x10x8xf32>
    %95 = vector.shape_cast %94 : vector<1x10x8xf32> to vector<10x8xf32>
    %96 = vector.shape_cast %93 : vector<10x8xf32> to vector<1x10x8xf32>
    tpu.vector_store %arg16[%c0_99, %c0_100, %c0_101], %96 {strides = array<i32>} : memref<1x10x8xf32, #tpu.memory_space<vmem>>, vector<1x10x8xf32>,
    return
  }
  func.func @transform_0(%arg0: i32) -> (i32, i32, i32) {
    %c0_i32 = arith.constant 0 : i32
    %c0_i32_0 = arith.constant 0 : i32
    %c0_i32_1 = arith.constant 0 : i32
    return %arg0, %c0_i32, %c0_i32_0 : i32, i32, i32
  }
  func.func @transform_1(%arg0: i32) -> (i32, i32) {
    %c0_i32 = arith.constant 0 : i32
    %c0_i32_0 = arith.constant 0 : i32
    %c0_i32_1 = arith.constant 0 : i32
    return %c0_i32, %c0_i32_0 : i32, i32
  }
  func.func @transform_2(%arg0: i32) -> (i32, i32) {
    %c0_i32 = arith.constant 0 : i32
    %c0_i32_0 = arith.constant 0 : i32
    %c0_i32_1 = arith.constant 0 : i32
    return %c0_i32, %c0_i32_0 : i32, i32
  }
  func.func @transform_3(%arg0: i32) -> (i32, i32) {
    %c0_i32 = arith.constant 0 : i32
    %c0_i32_0 = arith.constant 0 : i32
    %c0_i32_1 = arith.constant 0 : i32
    return %c0_i32, %c0_i32_0 : i32, i32
  }
  func.func @transform_4(%arg0: i32) -> (i32, i32) {
    %c0_i32 = arith.constant 0 : i32
    %c0_i32_0 = arith.constant 0 : i32
    %c0_i32_1 = arith.constant 0 : i32
    return %c0_i32, %c0_i32_0 : i32, i32
  }
  func.func @transform_5(%arg0: i32) -> (i32, i32, i32) {
    %c0_i32 = arith.constant 0 : i32
    %c0_i32_0 = arith.constant 0 : i32
    %c0_i32_1 = arith.constant 0 : i32
    %c0_i32_2 = arith.constant 0 : i32
    return %c0_i32, %c0_i32_0, %c0_i32_1 : i32, i32, i32
  }
  func.func @transform_6(%arg0: i32) -> (i32, i32, i32) {
    %c0_i32 = arith.constant 0 : i32
    %c0_i32_0 = arith.constant 0 : i32
    %c0_i32_1 = arith.constant 0 : i32
    %c0_i32_2 = arith.constant 0 : i32
    return %c0_i32, %c0_i32_0, %c0_i32_1 : i32, i32, i32
  }
  func.func @transform_7(%arg0: i32) -> (i32, i32) {
    %c0_i32 = arith.constant 0 : i32
    %c0_i32_0 = arith.constant 0 : i32
    %c0_i32_1 = arith.constant 0 : i32
    return %c0_i32, %c0_i32_0 : i32, i32
  }
  func.func @transform_8(%arg0: i32) -> (i32, i32) {
    %c0_i32 = arith.constant 0 : i32
    %c0_i32_0 = arith.constant 0 : i32
    %c0_i32_1 = arith.constant 0 : i32
    return %c0_i32, %c0_i32_0 : i32, i32
  }
  func.func @transform_9(%arg0: i32) -> (i32, i32) {
    %c0_i32 = arith.constant 0 : i32
    %c0_i32_0 = arith.constant 0 : i32
    %c0_i32_1 = arith.constant 0 : i32
    return %c0_i32, %c0_i32_0 : i32, i32
  }
  func.func @transform_10(%arg0: i32) -> (i32, i32, i32) {
    %c0_i32 = arith.constant 0 : i32
    %c0_i32_0 = arith.constant 0 : i32
    %c0_i32_1 = arith.constant 0 : i32
    %c0_i32_2 = arith.constant 0 : i32
    return %c0_i32, %c0_i32_0, %c0_i32_1 : i32, i32, i32
  }
  func.func @transform_11(%arg0: i32) -> (i32, i32, i32) {
    %c0_i32 = arith.constant 0 : i32
    %c0_i32_0 = arith.constant 0 : i32
    %c0_i32_1 = arith.constant 0 : i32
    %c0_i32_2 = arith.constant 0 : i32
    return %c0_i32, %c0_i32_0, %c0_i32_1 : i32, i32, i32
  }
  func.func @transform_12(%arg0: i32) -> (i32, i32) {
    %c0_i32 = arith.constant 0 : i32
    %c0_i32_0 = arith.constant 0 : i32
    %c0_i32_1 = arith.constant 0 : i32
    return %c0_i32, %c0_i32_0 : i32, i32
  }
  func.func @transform_13(%arg0: i32) -> (i32, i32) {
    %c0_i32 = arith.constant 0 : i32
    %c0_i32_0 = arith.constant 0 : i32
    %c0_i32_1 = arith.constant 0 : i32
    return %c0_i32, %c0_i32_0 : i32, i32
  }
  func.func @transform_14(%arg0: i32) -> (i32, i32) {
    %c0_i32 = arith.constant 0 : i32
    %c0_i32_0 = arith.constant 0 : i32
    %c0_i32_1 = arith.constant 0 : i32
    return %c0_i32, %c0_i32_0 : i32, i32
  }
  func.func @transform_15(%arg0: i32) -> (i32, i32, i32) {
    %c0_i32 = arith.constant 0 : i32
    %c0_i32_0 = arith.constant 0 : i32
    %c0_i32_1 = arith.constant 0 : i32
    return %arg0, %c0_i32, %c0_i32_0 : i32, i32, i32
  }
}

</mosaic_0001>

<llo_original>
// kernel: lenet_forward.1
$region0: #{lenet_forward.1}
  #allocation0 [shape = 'u32[]', space=smem, size = 0x4, offset = 0x4, fixed_abs, tag = 'smem constant byte address 0x4 - core index']
  #allocation1 [shape = 'u32[144,128]{1,0:T(1,128)}', space=vmem, size = 0x12000, scoped, tag = 'internal scratch']
  %s0 = inlined_call_operand.vmem [shape: f32[1,160,256], index: 0, kind: input, shape index: {}]
  %s1 = inlined_call_operand.vmem [shape: f32[168,160], index: 1, kind: input, shape index: {}]
  %s2 = inlined_call_operand.vmem [shape: f32[168,1], index: 2, kind: input, shape index: {}]
  %s3 = inlined_call_operand.vmem [shape: f32[256,128], index: 3, kind: input, shape index: {}]
  %s4 = inlined_call_operand.vmem [shape: f32[84,168], index: 4, kind: input, shape index: {}]
  %s5 = inlined_call_operand.vmem [shape: f32[4,128,128], index: 5, kind: input, shape index: {}]
  %s6 = inlined_call_operand.vmem [shape: f32[5,160,84], index: 6, kind: input, shape index: {}]
  %s7 = inlined_call_operand.vmem [shape: f32[160,1], index: 7, kind: input, shape index: {}]
  %s8 = inlined_call_operand.vmem [shape: f32[128,64], index: 8, kind: input, shape index: {}]
  %s9 = inlined_call_operand.vmem [shape: f32[80,160], index: 9, kind: input, shape index: {}]
  %s10 = inlined_call_operand.vmem [shape: f32[5,64,8], index: 10, kind: input, shape index: {}]
  %s11 = inlined_call_operand.vmem [shape: f32[5,84,80], index: 11, kind: input, shape index: {}]
  %s12 = inlined_call_operand.vmem [shape: f32[84,1], index: 12, kind: input, shape index: {}]
  %s13 = inlined_call_operand.vmem [shape: f32[10,84], index: 13, kind: input, shape index: {}]
  %s14 = inlined_call_operand.vmem [shape: f32[10,1], index: 14, kind: input, shape index: {}]
  %s15 = inlined_call_operand.vmem [shape: f32[1,10,8], index: 15, kind: output, shape index: {}]
  %s16 = sld [smem:[#allocation0]]
  $region70: #{lenet_forward.1} parent=0
    _
  %s18 = ssub.s32 1, %s16
  %s19 = scalar_select 0, %s18, %s16
  // Predicated region
  $region2: #{lenet_forward.1} parent=0 // pred_check
    _
  $region3: #{lenet_forward.1} parent=0 // pred_check_branch
    %21 = sbr.rel (0) target = $region5
  $region4: #{lenet_forward.1} parent=0 // pred_region
    _
  $region5: #{lenet_forward.1} parent=0 // pred_fallthru
    _
  // Predicated region
  $region6: #{lenet_forward.1} parent=0 // pred_check
    _
  $region7: #{lenet_forward.1} parent=0 // pred_check_branch
    %23 = sbr.rel (0) target = $region9
  $region8: #{lenet_forward.1} parent=0 // pred_region
    _
  $region9: #{lenet_forward.1} parent=0 // pred_fallthru
    _
  // Predicated region
  $region10: #{lenet_forward.1} parent=0 // pred_check
    _
  $region11: #{lenet_forward.1} parent=0 // pred_check_branch
    %25 = sbr.rel (0) target = $region13
  $region12: #{lenet_forward.1} parent=0 // pred_region
    _
  $region13: #{lenet_forward.1} parent=0 // pred_fallthru
    _
  // Predicated region
  $region14: #{lenet_forward.1} parent=0 // pred_check
    _
  $region15: #{lenet_forward.1} parent=0 // pred_check_branch
    %27 = sbr.rel (0) target = $region17
  $region16: #{lenet_forward.1} parent=0 // pred_region
    _
  $region17: #{lenet_forward.1} parent=0 // pred_fallthru
    _
  // Predicated region
  $region18: #{lenet_forward.1} parent=0 // pred_check
    _
  $region19: #{lenet_forward.1} parent=0 // pred_check_branch
    %29 = sbr.rel (0) target = $region21
  $region20: #{lenet_forward.1} parent=0 // pred_region
    _
  $region21: #{lenet_forward.1} parent=0 // pred_fallthru
    _
  // Predicated region
  $region22: #{lenet_forward.1} parent=0 // pred_check
    _
  $region23: #{lenet_forward.1} parent=0 // pred_check_branch
    %31 = sbr.rel (0) target = $region25
  $region24: #{lenet_forward.1} parent=0 // pred_region
    _
  $region25: #{lenet_forward.1} parent=0 // pred_fallthru
    _
  // Predicated region
  $region26: #{lenet_forward.1} parent=0 // pred_check
    _
  $region27: #{lenet_forward.1} parent=0 // pred_check_branch
    %33 = sbr.rel (0) target = $region29
  $region28: #{lenet_forward.1} parent=0 // pred_region
    _
  $region29: #{lenet_forward.1} parent=0 // pred_fallthru
    _
  // Predicated region
  $region30: #{lenet_forward.1} parent=0 // pred_check
    _
  $region31: #{lenet_forward.1} parent=0 // pred_check_branch
    %35 = sbr.rel (0) target = $region33
  $region32: #{lenet_forward.1} parent=0 // pred_region
    _
  $region33: #{lenet_forward.1} parent=0 // pred_fallthru
    _
  // Predicated region
  $region34: #{lenet_forward.1} parent=0 // pred_check
    _
  $region35: #{lenet_forward.1} parent=0 // pred_check_branch
    %37 = sbr.rel (0) target = $region37
  $region36: #{lenet_forward.1} parent=0 // pred_region
    _
  $region37: #{lenet_forward.1} parent=0 // pred_fallthru
    _
  // Predicated region
  $region38: #{lenet_forward.1} parent=0 // pred_check
    _
  $region39: #{lenet_forward.1} parent=0 // pred_check_branch
    %39 = sbr.rel (0) target = $region41
  $region40: #{lenet_forward.1} parent=0 // pred_region
    _
  $region41: #{lenet_forward.1} parent=0 // pred_fallthru
    _
  // Predicated region
  $region42: #{lenet_forward.1} parent=0 // pred_check
    _
  $region43: #{lenet_forward.1} parent=0 // pred_check_branch
    %41 = sbr.rel (0) target = $region45
  $region44: #{lenet_forward.1} parent=0 // pred_region
    _
  $region45: #{lenet_forward.1} parent=0 // pred_fallthru
    _
  // Predicated region
  $region46: #{lenet_forward.1} parent=0 // pred_check
    _
  $region47: #{lenet_forward.1} parent=0 // pred_check_branch
    %43 = sbr.rel (0) target = $region49
  $region48: #{lenet_forward.1} parent=0 // pred_region
    _
  $region49: #{lenet_forward.1} parent=0 // pred_fallthru
    _
  // Predicated region
  $region50: #{lenet_forward.1} parent=0 // pred_check
    _
  $region51: #{lenet_forward.1} parent=0 // pred_check_branch
    %45 = sbr.rel (0) target = $region53
  $region52: #{lenet_forward.1} parent=0 // pred_region
    _
  $region53: #{lenet_forward.1} parent=0 // pred_fallthru
    _
  // Predicated region
  $region54: #{lenet_forward.1} parent=0 // pred_check
    _
  $region55: #{lenet_forward.1} parent=0 // pred_check_branch
    %47 = sbr.rel (0) target = $region57
  $region56: #{lenet_forward.1} parent=0 // pred_region
    _
  $region57: #{lenet_forward.1} parent=0 // pred_fallthru
    _
  // Predicated region
  $region58: #{lenet_forward.1} parent=0 // pred_check
    _
  $region59: #{lenet_forward.1} parent=0 // pred_check_branch
    %49 = sbr.rel (0) target = $region61
  $region60: #{lenet_forward.1} parent=0 // pred_region
    _
  $region61: #{lenet_forward.1} parent=0 // pred_fallthru
    _
  %v50 = vld [vmem:[%s0] sm:$0xff]
  %v51 = vld [vmem:[%s0 + $0x8] sm:$0xff]
  %v52 = vld [vmem:[%s0 + $0x10] sm:$0xff]
  %v53 = vld [vmem:[%s0 + $0x18] sm:$0xff]
  %v54 = vld [vmem:[%s0 + $0x20] sm:$0xff]
  %v55 = vld [vmem:[%s0 + $0x28] sm:$0xff]
  %v56 = vld [vmem:[%s0 + $0x30] sm:$0xff]
  %v57 = vld [vmem:[%s0 + $0x38] sm:$0xff]
  %v58 = vld [vmem:[%s0 + $0x40] sm:$0xff]
  %v59 = vld [vmem:[%s0 + $0x48] sm:$0xff]
  %v60 = vld [vmem:[%s0 + $0x50] sm:$0xff]
  %v61 = vld [vmem:[%s0 + $0x58] sm:$0xff]
  %v62 = vld [vmem:[%s0 + $0x60] sm:$0xff]
  %v63 = vld [vmem:[%s0 + $0x68] sm:$0xff]
  %v64 = vld [vmem:[%s0 + $0x70] sm:$0xff]
  %v65 = vld [vmem:[%s0 + $0x78] sm:$0xff]
  %v66 = vld [vmem:[%s0 + $0x80] sm:$0xff]
  %v67 = vld [vmem:[%s0 + $0x88] sm:$0xff]
  %v68 = vld [vmem:[%s0 + $0x90] sm:$0xff]
  %v69 = vld [vmem:[%s0 + $0x98] sm:$0xff]
  %v70 = vld [vmem:[%s0 + $0xa0] sm:$0xff]
  %v71 = vld [vmem:[%s0 + $0xa8] sm:$0xff]
  %v72 = vld [vmem:[%s0 + $0xb0] sm:$0xff]
  %v73 = vld [vmem:[%s0 + $0xb8] sm:$0xff]
  %v74 = vld [vmem:[%s0 + $0xc0] sm:$0xff]
  %v75 = vld [vmem:[%s0 + $0xc8] sm:$0xff]
  %v76 = vld [vmem:[%s0 + $0xd0] sm:$0xff]
  %v77 = vld [vmem:[%s0 + $0xd8] sm:$0xff]
  %v78 = vld [vmem:[%s0 + $0xe0] sm:$0xff]
  %v79 = vld [vmem:[%s0 + $0xe8] sm:$0xff]
  %v80 = vld [vmem:[%s0 + $0xf0] sm:$0xff]
  %v81 = vld [vmem:[%s0 + $0xf8] sm:$0xff]
  %v82 = vld [vmem:[%s0 + $0x100] sm:$0xff]
  %v83 = vld [vmem:[%s0 + $0x108] sm:$0xff]
  %v84 = vld [vmem:[%s0 + $0x110] sm:$0xff]
  %v85 = vld [vmem:[%s0 + $0x118] sm:$0xff]
  %v86 = vld [vmem:[%s0 + $0x120] sm:$0xff]
  %v87 = vld [vmem:[%s0 + $0x128] sm:$0xff]
  %v88 = vld [vmem:[%s0 + $0x130] sm:$0xff]
  %v89 = vld [vmem:[%s0 + $0x138] sm:$0xff]
  %v90 = vld [vmem:[%s1] sm:$0xff]
  %v91 = vld [vmem:[%s1 + $0x8] sm:$0xff]
  %v92 = vld [vmem:[%s1 + $0x10] sm:$0xff]
  %v93 = vld [vmem:[%s1 + $0x18] sm:$0xff]
  %v94 = vld [vmem:[%s1 + $0x20] sm:$0xff]
  %v95 = vld [vmem:[%s1 + $0x28] sm:$0xff]
  %v96 = vld [vmem:[%s1 + $0x30] sm:$0xff]
  %v97 = vld [vmem:[%s1 + $0x38] sm:$0xff]
  %v98 = vld [vmem:[%s1 + $0x40] sm:$0xff]
  %v99 = vld [vmem:[%s1 + $0x48] sm:$0xff]
  %v100 = vld [vmem:[%s1 + $0x50] sm:$0xff]
  %v101 = vld [vmem:[%s1 + $0x58] sm:$0xff]
  %v102 = vld [vmem:[%s1 + $0x60] sm:$0xff]
  %v103 = vld [vmem:[%s1 + $0x68] sm:$0xff]
  %v104 = vld [vmem:[%s1 + $0x70] sm:$0xff]
  %v105 = vld [vmem:[%s1 + $0x78] sm:$0xff]
  %v106 = vld [vmem:[%s1 + $0x80] sm:$0xff]
  %v107 = vld [vmem:[%s1 + $0x88] sm:$0xff]
  %v108 = vld [vmem:[%s1 + $0x90] sm:$0xff]
  %v109 = vld [vmem:[%s1 + $0x98] sm:$0xff]
  %v110 = vld [vmem:[%s1 + $0xa0] sm:$0xff]
  %v111 = vld [vmem:[%s1 + $0xa8] sm:$0xff]
  %v112 = vld [vmem:[%s1 + $0xb0] sm:$0xff]
  %v113 = vld [vmem:[%s1 + $0xb8] sm:$0xff]
  %v114 = vld [vmem:[%s1 + $0xc0] sm:$0xff]
  %v115 = vld [vmem:[%s1 + $0xc8] sm:$0xff]
  %v116 = vld [vmem:[%s1 + $0xd0] sm:$0xff]
  %v117 = vld [vmem:[%s1 + $0xd8] sm:$0xff]
  %v118 = vld [vmem:[%s1 + $0xe0] sm:$0xff]
  %v119 = vld [vmem:[%s1 + $0xe8] sm:$0xff]
  %v120 = vld [vmem:[%s1 + $0xf0] sm:$0xff]
  %v121 = vld [vmem:[%s1 + $0xf8] sm:$0xff]
  %v122 = vld [vmem:[%s1 + $0x100] sm:$0xff]
  %v123 = vld [vmem:[%s1 + $0x108] sm:$0xff]
  %v124 = vld [vmem:[%s1 + $0x110] sm:$0xff]
  %v125 = vld [vmem:[%s1 + $0x118] sm:$0xff]
  %v126 = vld [vmem:[%s1 + $0x120] sm:$0xff]
  %v127 = vld [vmem:[%s1 + $0x128] sm:$0xff]
  %v128 = vld [vmem:[%s1 + $0x130] sm:$0xff]
  %v129 = vld [vmem:[%s1 + $0x138] sm:$0xff]
  %v130 = vld [vmem:[%s1 + $0x140] sm:$0xff]
  %v131 = vld [vmem:[%s1 + $0x148] sm:$0xff]
  %v132 = vld [vmem:[%s2] sm:$0xff]
  %v133 = vld [vmem:[%s2 + $0x8] sm:$0xff]
  %v134 = vld [vmem:[%s2 + $0x10] sm:$0xff]
  %v135 = vld [vmem:[%s2 + $0x18] sm:$0xff]
  %v136 = vld [vmem:[%s2 + $0x20] sm:$0xff]
  %v137 = vld [vmem:[%s2 + $0x28] sm:$0xff]
  %v138 = vld [vmem:[%s2 + $0x30] sm:$0xff]
  %v139 = vld [vmem:[%s2 + $0x38] sm:$0xff]
  %v140 = vld [vmem:[%s2 + $0x40] sm:$0xff]
  %v141 = vld [vmem:[%s2 + $0x48] sm:$0xff]
  %v142 = vld [vmem:[%s2 + $0x50] sm:$0xff]
  %v143 = vld [vmem:[%s2 + $0x58] sm:$0xff]
  %v144 = vld [vmem:[%s2 + $0x60] sm:$0xff]
  %v145 = vld [vmem:[%s2 + $0x68] sm:$0xff]
  %v146 = vld [vmem:[%s2 + $0x70] sm:$0xff]
  %v147 = vld [vmem:[%s2 + $0x78] sm:$0xff]
  %v148 = vld [vmem:[%s2 + $0x80] sm:$0xff]
  %v149 = vld [vmem:[%s2 + $0x88] sm:$0xff]
  %v150 = vld [vmem:[%s2 + $0x90] sm:$0xff]
  %v151 = vld [vmem:[%s2 + $0x98] sm:$0xff]
  %v152 = vld [vmem:[%s2 + $0xa0] sm:$0xff]
  %154 = vset.pattern.permute.xlu0 0
  %155 = vperm.xlu0 %154, %v132
  %v156 = vpop.permute.xlu0 %155
  %159 = vset.pattern.permute.xlu0 0
  %160 = vperm.xlu0 %159, %v133
  %v161 = vpop.permute.xlu0 %160
  %164 = vset.pattern.permute.xlu0 0
  %165 = vperm.xlu0 %164, %v134
  %v166 = vpop.permute.xlu0 %165
  %169 = vset.pattern.permute.xlu0 0
  %170 = vperm.xlu0 %169, %v135
  %v171 = vpop.permute.xlu0 %170
  %174 = vset.pattern.permute.xlu0 0
  %175 = vperm.xlu0 %174, %v136
  %v176 = vpop.permute.xlu0 %175
  %179 = vset.pattern.permute.xlu0 0
  %180 = vperm.xlu0 %179, %v137
  %v181 = vpop.permute.xlu0 %180
  %184 = vset.pattern.permute.xlu0 0
  %185 = vperm.xlu0 %184, %v138
  %v186 = vpop.permute.xlu0 %185
  %189 = vset.pattern.permute.xlu0 0
  %190 = vperm.xlu0 %189, %v139
  %v191 = vpop.permute.xlu0 %190
  %194 = vset.pattern.permute.xlu0 0
  %195 = vperm.xlu0 %194, %v140
  %v196 = vpop.permute.xlu0 %195
  %199 = vset.pattern.permute.xlu0 0
  %200 = vperm.xlu0 %199, %v141
  %v201 = vpop.permute.xlu0 %200
  %204 = vset.pattern.permute.xlu0 0
  %205 = vperm.xlu0 %204, %v142
  %v206 = vpop.permute.xlu0 %205
  %209 = vset.pattern.permute.xlu0 0
  %210 = vperm.xlu0 %209, %v143
  %v211 = vpop.permute.xlu0 %210
  %214 = vset.pattern.permute.xlu0 0
  %215 = vperm.xlu0 %214, %v144
  %v216 = vpop.permute.xlu0 %215
  %219 = vset.pattern.permute.xlu0 0
  %220 = vperm.xlu0 %219, %v145
  %v221 = vpop.permute.xlu0 %220
  %224 = vset.pattern.permute.xlu0 0
  %225 = vperm.xlu0 %224, %v146
  %v226 = vpop.permute.xlu0 %225
  %229 = vset.pattern.permute.xlu0 0
  %230 = vperm.xlu0 %229, %v147
  %v231 = vpop.permute.xlu0 %230
  %234 = vset.pattern.permute.xlu0 0
  %235 = vperm.xlu0 %234, %v148
  %v236 = vpop.permute.xlu0 %235
  %239 = vset.pattern.permute.xlu0 0
  %240 = vperm.xlu0 %239, %v149
  %v241 = vpop.permute.xlu0 %240
  %244 = vset.pattern.permute.xlu0 0
  %245 = vperm.xlu0 %244, %v150
  %v246 = vpop.permute.xlu0 %245
  %249 = vset.pattern.permute.xlu0 0
  %250 = vperm.xlu0 %249, %v151
  %v251 = vpop.permute.xlu0 %250
  %254 = vset.pattern.permute.xlu0 0
  %255 = vperm.xlu0 %254, %v152
  %v256 = vpop.permute.xlu0 %255
  %vm258 = vcmask 261120
  %v260 = vsel %vm258, %v91, 0
  %v263 = vsel %vm258, %v93, 0
  %v266 = vsel %vm258, %v95, 0
  %v269 = vsel %vm258, %v97, 0
  %v272 = vsel %vm258, %v99, 0
  %v275 = vsel %vm258, %v101, 0
  %v278 = vsel %vm258, %v103, 0
  %v281 = vsel %vm258, %v105, 0
  %v284 = vsel %vm258, %v107, 0
  %v287 = vsel %vm258, %v109, 0
  %v290 = vsel %vm258, %v111, 0
  %v293 = vsel %vm258, %v113, 0
  %v296 = vsel %vm258, %v115, 0
  %v299 = vsel %vm258, %v117, 0
  %v302 = vsel %vm258, %v119, 0
  %v305 = vsel %vm258, %v121, 0
  %v308 = vsel %vm258, %v123, 0
  %v311 = vsel %vm258, %v125, 0
  %v314 = vsel %vm258, %v127, 0
  %v317 = vsel %vm258, %v129, 0
  %v320 = vsel %vm258, %v131, 0
  %322 = vmatprep.subr.mxu0 %v51
  %323 = vmatpush1.msra.mxu0 %v50
  %324 = vmatprep.subr.mxu0 %v53
  %325 = vmatpush1.msra.mxu0 %v52
  %326 = vmatprep.subr.mxu0 %v55
  %327 = vmatpush1.msra.mxu0 %v54
  %328 = vmatprep.subr.mxu0 %v57
  %329 = vmatpush1.msra.mxu0 %v56
  %330 = vmatprep.subr.mxu0 %v59
  %331 = vmatpush1.msra.mxu0 %v58
  %332 = vmatprep.subr.mxu0 %v61
  %333 = vmatpush1.msra.mxu0 %v60
  %334 = vmatprep.subr.mxu0 %v63
  %335 = vmatpush1.msra.mxu0 %v62
  %336 = vmatprep.subr.mxu0 %v65
  %337 = vmatpush1.msra.mxu0 %v64
  %338 = vmatprep.subr.mxu0 %v67
  %339 = vmatpush1.msra.mxu0 %v66
  %340 = vmatprep.subr.mxu0 %v69
  %341 = vmatpush1.msra.mxu0 %v68
  %342 = vmatprep.subr.mxu0 %v71
  %343 = vmatpush1.msra.mxu0 %v70
  %344 = vmatprep.subr.mxu0 %v73
  %345 = vmatpush1.msra.mxu0 %v72
  %346 = vmatprep.subr.mxu0 %v75
  %347 = vmatpush1.msra.mxu0 %v74
  %348 = vmatprep.subr.mxu0 %v77
  %349 = vmatpush1.msra.mxu0 %v76
  %350 = vmatprep.subr.mxu0 %v79
  %351 = vmatpush1.msra.mxu0 %v78
  %352 = vmatprep.subr.mxu0 %v81
  %353 = vmatpush1.msra.mxu0 %v80
  %354 = vmatprep.subr.mxu0 %v83
  %355 = vmatpush1.msra.mxu0 %v82
  %356 = vmatprep.subr.mxu0 %v85
  %357 = vmatpush1.msra.mxu0 %v84
  %358 = vmatprep.subr.mxu0 %v87
  %359 = vmatpush1.msra.mxu0 %v86
  %360 = vmatprep.subr.mxu0 %v89
  %361 = vmatpush1.msra.mxu0 %v88
  %362 = vmatprep.subr.mxu0 0.0
  %363 = vmatpush1.msra.mxu0 0.0
  %364 = vmatprep.subr.mxu0 0.0
  %365 = vmatpush1.msra.mxu0 0.0
  %366 = vmatprep.subr.mxu0 0.0
  %367 = vmatpush1.msra.mxu0 0.0
  %368 = vmatprep.subr.mxu0 0.0
  %369 = vmatpush1.msra.mxu0 0.0
  %370 = vmatprep.subr.mxu0 0.0
  %371 = vmatpush1.msra.mxu0 0.0
  %372 = vmatprep.subr.mxu0 0.0
  %373 = vmatpush1.msra.mxu0 0.0
  %374 = vmatprep.subr.mxu0 0.0
  %375 = vmatpush1.msra.mxu0 0.0
  %376 = vmatprep.subr.mxu0 0.0
  %377 = vmatpush1.msra.mxu0 0.0
  %378 = vmatprep.subr.mxu0 0.0
  %379 = vmatpush1.msra.mxu0 0.0
  %380 = vmatprep.subr.mxu0 0.0
  %381 = vmatpush1.msra.mxu0 0.0
  %382 = vmatprep.subr.mxu0 0.0
  %383 = vmatpush1.msra.mxu0 0.0
  %384 = vmatprep.subr.mxu0 0.0
  %385 = vmatpush1.msra.mxu0 0.0
  %386 = vmatprep.mubr.f32.mxu0 %v260
  %387 = vmatmul.mubr.f32.gmra.mrb[0].mxu0 %v90
  %v388 = vpop.f32.mrb[0].mxu0
  %v389 = vadd.f32 %v156, %v388
  %v390 = vpop.f32.mrb[0].mxu0
  %v391 = vadd.f32 %v156, %v390
  %392 = vmatprep.mubr.f32.mxu0 %v263
  %393 = vmatmul.mubr.f32.gmra.mrb[0].mxu0 %v92
  %v394 = vpop.f32.mrb[0].mxu0
  %v395 = vadd.f32 %v161, %v394
  %v396 = vpop.f32.mrb[0].mxu0
  %v397 = vadd.f32 %v161, %v396
  %398 = vmatprep.mubr.f32.mxu0 %v266
  %399 = vmatmul.mubr.f32.gmra.mrb[0].mxu0 %v94
  %v400 = vpop.f32.mrb[0].mxu0
  %v401 = vadd.f32 %v166, %v400
  %v402 = vpop.f32.mrb[0].mxu0
  %v403 = vadd.f32 %v166, %v402
  %404 = vmatprep.mubr.f32.mxu0 %v269
  %405 = vmatmul.mubr.f32.gmra.mrb[0].mxu0 %v96
  %v406 = vpop.f32.mrb[0].mxu0
  %v407 = vadd.f32 %v171, %v406
  %v408 = vpop.f32.mrb[0].mxu0
  %v409 = vadd.f32 %v171, %v408
  %410 = vmatprep.mubr.f32.mxu0 %v272
  %411 = vmatmul.mubr.f32.gmra.mrb[0].mxu0 %v98
  %v412 = vpop.f32.mrb[0].mxu0
  %v413 = vadd.f32 %v176, %v412
  %v414 = vpop.f32.mrb[0].mxu0
  %v415 = vadd.f32 %v176, %v414
  %416 = vmatprep.mubr.f32.mxu0 %v275
  %417 = vmatmul.mubr.f32.gmra.mrb[0].mxu0 %v100
  %v418 = vpop.f32.mrb[0].mxu0
  %v419 = vadd.f32 %v181, %v418
  %v420 = vpop.f32.mrb[0].mxu0
  %v421 = vadd.f32 %v181, %v420
  %422 = vmatprep.mubr.f32.mxu0 %v278
  %423 = vmatmul.mubr.f32.gmra.mrb[0].mxu0 %v102
  %v424 = vpop.f32.mrb[0].mxu0
  %v425 = vadd.f32 %v186, %v424
  %v426 = vpop.f32.mrb[0].mxu0
  %v427 = vadd.f32 %v186, %v426
  %428 = vmatprep.mubr.f32.mxu0 %v281
  %429 = vmatmul.mubr.f32.gmra.mrb[0].mxu0 %v104
  %v430 = vpop.f32.mrb[0].mxu0
  %v431 = vadd.f32 %v191, %v430
  %v432 = vpop.f32.mrb[0].mxu0
  %v433 = vadd.f32 %v191, %v432
  %434 = vmatprep.mubr.f32.mxu0 %v284
  %435 = vmatmul.mubr.f32.gmra.mrb[0].mxu0 %v106
  %v436 = vpop.f32.mrb[0].mxu0
  %v437 = vadd.f32 %v196, %v436
  %v438 = vpop.f32.mrb[0].mxu0
  %v439 = vadd.f32 %v196, %v438
  %440 = vmatprep.mubr.f32.mxu0 %v287
  %441 = vmatmul.mubr.f32.gmra.mrb[0].mxu0 %v108
  %v442 = vpop.f32.mrb[0].mxu0
  %v443 = vadd.f32 %v201, %v442
  %v444 = vpop.f32.mrb[0].mxu0
  %v445 = vadd.f32 %v201, %v444
  %446 = vmatprep.mubr.f32.mxu0 %v290
  %447 = vmatmul.mubr.f32.gmra.mrb[0].mxu0 %v110
  %v448 = vpop.f32.mrb[0].mxu0
  %v449 = vadd.f32 %v206, %v448
  %v450 = vpop.f32.mrb[0].mxu0
  %v451 = vadd.f32 %v206, %v450
  %452 = vmatprep.mubr.f32.mxu0 %v293
  %453 = vmatmul.mubr.f32.gmra.mrb[0].mxu0 %v112
  %v454 = vpop.f32.mrb[0].mxu0
  %v455 = vadd.f32 %v211, %v454
  %v456 = vpop.f32.mrb[0].mxu0
  %v457 = vadd.f32 %v211, %v456
  %458 = vmatprep.mubr.f32.mxu0 %v296
  %459 = vmatmul.mubr.f32.gmra.mrb[0].mxu0 %v114
  %v460 = vpop.f32.mrb[0].mxu0
  %v461 = vadd.f32 %v216, %v460
  %v462 = vpop.f32.mrb[0].mxu0
  %v463 = vadd.f32 %v216, %v462
  %464 = vmatprep.mubr.f32.mxu0 %v299
  %465 = vmatmul.mubr.f32.gmra.mrb[0].mxu0 %v116
  %v466 = vpop.f32.mrb[0].mxu0
  %v467 = vadd.f32 %v221, %v466
  %v468 = vpop.f32.mrb[0].mxu0
  %v469 = vadd.f32 %v221, %v468
  %470 = vmatprep.mubr.f32.mxu0 %v302
  %471 = vmatmul.mubr.f32.gmra.mrb[0].mxu0 %v118
  %v472 = vpop.f32.mrb[0].mxu0
  %v473 = vadd.f32 %v226, %v472
  %v474 = vpop.f32.mrb[0].mxu0
  %v475 = vadd.f32 %v226, %v474
  %476 = vmatprep.mubr.f32.mxu0 %v305
  %477 = vmatmul.mubr.f32.gmra.mrb[0].mxu0 %v120
  %v478 = vpop.f32.mrb[0].mxu0
  %v479 = vadd.f32 %v231, %v478
  %v480 = vpop.f32.mrb[0].mxu0
  %v481 = vadd.f32 %v231, %v480
  %482 = vmatprep.mubr.f32.mxu0 %v308
  %483 = vmatmul.mubr.f32.gmra.mrb[0].mxu0 %v122
  %v484 = vpop.f32.mrb[0].mxu0
  %v485 = vadd.f32 %v236, %v484
  %v486 = vpop.f32.mrb[0].mxu0
  %v487 = vadd.f32 %v236, %v486
  %488 = vmatprep.mubr.f32.mxu0 %v311
  %489 = vmatmul.mubr.f32.gmra.mrb[0].mxu0 %v124
  %v490 = vpop.f32.mrb[0].mxu0
  %v491 = vadd.f32 %v241, %v490
  %v492 = vpop.f32.mrb[0].mxu0
  %v493 = vadd.f32 %v241, %v492
  %494 = vmatprep.mubr.f32.mxu0 %v314
  %495 = vmatmul.mubr.f32.gmra.mrb[0].mxu0 %v126
  %v496 = vpop.f32.mrb[0].mxu0
  %v497 = vadd.f32 %v246, %v496
  %v498 = vpop.f32.mrb[0].mxu0
  %v499 = vadd.f32 %v246, %v498
  %500 = vmatprep.mubr.f32.mxu0 %v317
  %501 = vmatmul.mubr.f32.gmra.mrb[0].mxu0 %v128
  %v502 = vpop.f32.mrb[0].mxu0
  %v503 = vadd.f32 %v251, %v502
  %v504 = vpop.f32.mrb[0].mxu0
  %v505 = vadd.f32 %v251, %v504
  %506 = vmatprep.mubr.f32.mxu0 %v320
  %507 = vmatmul.mubr.f32.gmra.mrb[0].mxu0 %v130
  %v508 = vpop.f32.mrb[0].mxu0
  %v509 = vadd.f32 %v256, %v508
  %v510 = vpop.f32.mrb[0].mxu0
  %v511 = vadd.f32 %v256, %v510
  %512 = vdwg.mxu0
  %v513 = vtanh.pop %v389
  %v514 = vtanh.pop %v391
  %v515 = vtanh.pop %v395
  %v516 = vtanh.pop %v397
  %v517 = vtanh.pop %v401
  %v518 = vtanh.pop %v403
  %v519 = vtanh.pop %v407
  %v520 = vtanh.pop %v409
  %v521 = vtanh.pop %v413
  %v522 = vtanh.pop %v415
  %v523 = vtanh.pop %v419
  %v524 = vtanh.pop %v421
  %v525 = vtanh.pop %v425
  %v526 = vtanh.pop %v427
  %v527 = vtanh.pop %v431
  %v528 = vtanh.pop %v433
  %v529 = vtanh.pop %v437
  %v530 = vtanh.pop %v439
  %v531 = vtanh.pop %v443
  %v532 = vtanh.pop %v445
  %v533 = vtanh.pop %v449
  %v534 = vtanh.pop %v451
  %v535 = vtanh.pop %v455
  %v536 = vtanh.pop %v457
  %v537 = vtanh.pop %v461
  %v538 = vtanh.pop %v463
  %v539 = vtanh.pop %v467
  %v540 = vtanh.pop %v469
  %v541 = vtanh.pop %v473
  %v542 = vtanh.pop %v475
  %v543 = vtanh.pop %v479
  %v544 = vtanh.pop %v481
  %v545 = vtanh.pop %v485
  %v546 = vtanh.pop %v487
  %v547 = vtanh.pop %v491
  %v548 = vtanh.pop %v493
  %v549 = vtanh.pop %v497
  %v550 = vtanh.pop %v499
  %v551 = vtanh.pop %v503
  %v552 = vtanh.pop %v505
  %v553 = vtanh.pop %v509
  %v554 = vtanh.pop %v511
  %v555 = vld [vmem:[%s4] sm:$0xff]
  %v556 = vld [vmem:[%s4 + $0x8] sm:$0xff]
  %v557 = vld [vmem:[%s4 + $0x10] sm:$0xff]
  %v558 = vld [vmem:[%s4 + $0x18] sm:$0xff]
  %v559 = vld [vmem:[%s4 + $0x20] sm:$0xff]
  %v560 = vld [vmem:[%s4 + $0x28] sm:$0xff]
  %v561 = vld [vmem:[%s4 + $0x30] sm:$0xff]
  %v562 = vld [vmem:[%s4 + $0x38] sm:$0xff]
  %v563 = vld [vmem:[%s4 + $0x40] sm:$0xff]
  %v564 = vld [vmem:[%s4 + $0x48] sm:$0xff]
  %v565 = vld [vmem:[%s4 + $0x50] sm:$0xff]
  %v566 = vld [vmem:[%s4 + $0x58] sm:$0xff]
  %v567 = vld [vmem:[%s4 + $0x60] sm:$0xff]
  %v568 = vld [vmem:[%s4 + $0x68] sm:$0xff]
  %v569 = vld [vmem:[%s4 + $0x70] sm:$0xff]
  %v570 = vld [vmem:[%s4 + $0x78] sm:$0xff]
  %v571 = vld [vmem:[%s4 + $0x80] sm:$0xff]
  %v572 = vld [vmem:[%s4 + $0x88] sm:$0xff]
  %v573 = vld [vmem:[%s4 + $0x90] sm:$0xff]
  %v574 = vld [vmem:[%s4 + $0x98] sm:$0xff]
  %v575 = vld [vmem:[%s4 + $0xa0] sm:$0xf]
  %v576 = vld [vmem:[%s4 + $0xa8] sm:$0xf]
  %v577 = vld [vmem:[%s3] sm:$0xff]
  %v578 = vld [vmem:[%s3 + $0x8] sm:$0xff]
  %v579 = vld [vmem:[%s3 + $0x10] sm:$0xff]
  %v580 = vld [vmem:[%s3 + $0x18] sm:$0xff]
  %v581 = vld [vmem:[%s3 + $0x20] sm:$0xff]
  %v582 = vld [vmem:[%s3 + $0x28] sm:$0xff]
  %v583 = vld [vmem:[%s3 + $0x30] sm:$0xff]
  %v584 = vld [vmem:[%s3 + $0x38] sm:$0xff]
  %v585 = vld [vmem:[%s3 + $0x40] sm:$0xff]
  %v586 = vld [vmem:[%s3 + $0x48] sm:$0xff]
  %v587 = vld [vmem:[%s3 + $0x50] sm:$0xff]
  %v588 = vld [vmem:[%s3 + $0x58] sm:$0xff]
  %v589 = vld [vmem:[%s3 + $0x60] sm:$0xff]
  %v590 = vld [vmem:[%s3 + $0x68] sm:$0xff]
  %v591 = vld [vmem:[%s3 + $0x70] sm:$0xff]
  %v592 = vld [vmem:[%s3 + $0x78] sm:$0xff]
  %v593 = vld [vmem:[%s3 + $0x80] sm:$0xff]
  %v594 = vld [vmem:[%s3 + $0x88] sm:$0xff]
  %v595 = vld [vmem:[%s3 + $0x90] sm:$0xff]
  %v596 = vld [vmem:[%s3 + $0x98] sm:$0xff]
  %v597 = vld [vmem:[%s3 + $0xa0] sm:$0xff]
  %v598 = vld [vmem:[%s3 + $0xa8] sm:$0xff]
  %v599 = vld [vmem:[%s3 + $0xb0] sm:$0xff]
  %v600 = vld [vmem:[%s3 + $0xb8] sm:$0xff]
  %v601 = vld [vmem:[%s3 + $0xc0] sm:$0xff]
  %v602 = vld [vmem:[%s3 + $0xc8] sm:$0xff]
  %v603 = vld [vmem:[%s3 + $0xd0] sm:$0xff]
  %v604 = vld [vmem:[%s3 + $0xd8] sm:$0xff]
  %v605 = vld [vmem:[%s3 + $0xe0] sm:$0xff]
  %v606 = vld [vmem:[%s3 + $0xe8] sm:$0xff]
  %v607 = vld [vmem:[%s3 + $0xf0] sm:$0xff]
  %v608 = vld [vmem:[%s3 + $0xf8] sm:$0xff]
  %609 = vmatprep.subr.mxu0 0.0
  %610 = vmatpush1.msra.mxu0 %v577
  %611 = vmatprep.subr.mxu0 0.0
  %612 = vmatpush1.msra.mxu0 %v578
  %613 = vmatprep.subr.mxu0 0.0
  %614 = vmatpush1.msra.mxu0 %v579
  %615 = vmatprep.subr.mxu0 0.0
  %616 = vmatpush1.msra.mxu0 %v580
  %617 = vmatprep.subr.mxu0 0.0
  %618 = vmatpush1.msra.mxu0 %v581
  %619 = vmatprep.subr.mxu0 0.0
  %620 = vmatpush1.msra.mxu0 %v582
  %621 = vmatprep.subr.mxu0 0.0
  %622 = vmatpush1.msra.mxu0 %v583
  %623 = vmatprep.subr.mxu0 0.0
  %624 = vmatpush1.msra.mxu0 %v584
  %625 = vmatprep.subr.mxu0 0.0
  %626 = vmatpush1.msra.mxu0 %v585
  %627 = vmatprep.subr.mxu0 0.0
  %628 = vmatpush1.msra.mxu0 %v586
  %629 = vmatprep.subr.mxu0 0.0
  %630 = vmatpush1.msra.mxu0 %v587
  %631 = vmatprep.subr.mxu0 0.0
  %632 = vmatpush1.msra.mxu0 %v588
  %633 = vmatprep.subr.mxu0 0.0
  %634 = vmatpush1.msra.mxu0 %v589
  %635 = vmatprep.subr.mxu0 0.0
  %636 = vmatpush1.msra.mxu0 %v590
  %637 = vmatprep.subr.mxu0 0.0
  %638 = vmatpush1.msra.mxu0 %v591
  %639 = vmatprep.subr.mxu0 0.0
  %640 = vmatpush1.msra.mxu0 %v592
  %641 = vmatprep.subr.mxu0 0.0
  %642 = vmatpush1.msra.mxu0 %v593
  %643 = vmatprep.subr.mxu0 0.0
  %644 = vmatpush1.msra.mxu0 %v594
  %645 = vmatprep.subr.mxu0 0.0
  %646 = vmatpush1.msra.mxu0 %v595
  %647 = vmatprep.subr.mxu0 0.0
  %648 = vmatpush1.msra.mxu0 %v596
  %649 = vmatprep.subr.mxu0 0.0
  %650 = vmatpush1.msra.mxu0 %v597
  %651 = vmatprep.subr.mxu0 0.0
  %652 = vmatpush1.msra.mxu0 %v598
  %653 = vmatprep.subr.mxu0 0.0
  %654 = vmatpush1.msra.mxu0 %v599
  %655 = vmatprep.subr.mxu0 0.0
  %656 = vmatpush1.msra.mxu0 %v600
  %657 = vmatprep.subr.mxu0 0.0
  %658 = vmatpush1.msra.mxu0 %v601
  %659 = vmatprep.subr.mxu0 0.0
  %660 = vmatpush1.msra.mxu0 %v602
  %661 = vmatprep.subr.mxu0 0.0
  %662 = vmatpush1.msra.mxu0 %v603
  %663 = vmatprep.subr.mxu0 0.0
  %664 = vmatpush1.msra.mxu0 %v604
  %665 = vmatprep.subr.mxu0 0.0
  %666 = vmatpush1.msra.mxu0 %v605
  %667 = vmatprep.subr.mxu0 0.0
  %668 = vmatpush1.msra.mxu0 %v606
  %669 = vmatprep.subr.mxu0 0.0
  %670 = vmatpush1.msra.mxu0 %v607
  %671 = vmatprep.subr.mxu0 0.0
  %672 = vmatpush1.msra.mxu0 %v608
  %673 = vmatprep.mubr.f32.mxu0 %v514
  %674 = vmatmul.mubr.f32.gmra.mrb[0].mxu0 %v513
  %v675 = vpop.f32.mrb[0].mxu0
  %v676 = vadd.f32 0.0, %v675
  %v677 = vpop.f32.mrb[0].mxu0
  %678 = vmatprep.mubr.f32.mxu0 %v516
  %679 = vmatmul.mubr.f32.gmra.mrb[0].mxu0 %v515
  %v680 = vpop.f32.mrb[0].mxu0
  %v681 = vadd.f32 0.0, %v680
  %v682 = vpop.f32.mrb[0].mxu0
  %683 = vmatprep.mubr.f32.mxu0 %v518
  %684 = vmatmul.mubr.f32.gmra.mrb[0].mxu0 %v517
  %v685 = vpop.f32.mrb[0].mxu0
  %v686 = vadd.f32 0.0, %v685
  %v687 = vpop.f32.mrb[0].mxu0
  %688 = vmatprep.mubr.f32.mxu0 %v520
  %689 = vmatmul.mubr.f32.gmra.mrb[0].mxu0 %v519
  %v690 = vpop.f32.mrb[0].mxu0
  %v691 = vadd.f32 0.0, %v690
  %v692 = vpop.f32.mrb[0].mxu0
  %693 = vmatprep.mubr.f32.mxu0 %v522
  %694 = vmatmul.mubr.f32.gmra.mrb[0].mxu0 %v521
  %v695 = vpop.f32.mrb[0].mxu0
  %v696 = vadd.f32 0.0, %v695
  %v697 = vpop.f32.mrb[0].mxu0
  %698 = vmatprep.mubr.f32.mxu0 %v524
  %699 = vmatmul.mubr.f32.gmra.mrb[0].mxu0 %v523
  %v700 = vpop.f32.mrb[0].mxu0
  %v701 = vadd.f32 0.0, %v700
  %v702 = vpop.f32.mrb[0].mxu0
  %703 = vmatprep.mubr.f32.mxu0 %v526
  %704 = vmatmul.mubr.f32.gmra.mrb[0].mxu0 %v525
  %v705 = vpop.f32.mrb[0].mxu0
  %v706 = vadd.f32 0.0, %v705
  %v707 = vpop.f32.mrb[0].mxu0
  %708 = vmatprep.mubr.f32.mxu0 %v528
  %709 = vmatmul.mubr.f32.gmra.mrb[0].mxu0 %v527
  %v710 = vpop.f32.mrb[0].mxu0
  %v711 = vadd.f32 0.0, %v710
  %v712 = vpop.f32.mrb[0].mxu0
  %713 = vmatprep.mubr.f32.mxu0 %v530
  %714 = vmatmul.mubr.f32.gmra.mrb[0].mxu0 %v529
  %v715 = vpop.f32.mrb[0].mxu0
  %v716 = vadd.f32 0.0, %v715
  %v717 = vpop.f32.mrb[0].mxu0
  %718 = vmatprep.mubr.f32.mxu0 %v532
  %719 = vmatmul.mubr.f32.gmra.mrb[0].mxu0 %v531
  %v720 = vpop.f32.mrb[0].mxu0
  %v721 = vadd.f32 0.0, %v720
  %v722 = vpop.f32.mrb[0].mxu0
  %723 = vmatprep.mubr.f32.mxu0 %v534
  %724 = vmatmul.mubr.f32.gmra.mrb[0].mxu0 %v533
  %v725 = vpop.f32.mrb[0].mxu0
  %v726 = vadd.f32 0.0, %v725
  %v727 = vpop.f32.mrb[0].mxu0
  %728 = vmatprep.mubr.f32.mxu0 %v536
  %729 = vmatmul.mubr.f32.gmra.mrb[0].mxu0 %v535
  %v730 = vpop.f32.mrb[0].mxu0
  %v731 = vadd.f32 0.0, %v730
  %v732 = vpop.f32.mrb[0].mxu0
  %733 = vmatprep.mubr.f32.mxu0 %v538
  %734 = vmatmul.mubr.f32.gmra.mrb[0].mxu0 %v537
  %v735 = vpop.f32.mrb[0].mxu0
  %v736 = vadd.f32 0.0, %v735
  %v737 = vpop.f32.mrb[0].mxu0
  %738 = vmatprep.mubr.f32.mxu0 %v540
  %739 = vmatmul.mubr.f32.gmra.mrb[0].mxu0 %v539
  %v740 = vpop.f32.mrb[0].mxu0
  %v741 = vadd.f32 0.0, %v740
  %v742 = vpop.f32.mrb[0].mxu0
  %743 = vmatprep.mubr.f32.mxu0 %v542
  %744 = vmatmul.mubr.f32.gmra.mrb[0].mxu0 %v541
  %v745 = vpop.f32.mrb[0].mxu0
  %v746 = vadd.f32 0.0, %v745
  %v747 = vpop.f32.mrb[0].mxu0
  %748 = vmatprep.mubr.f32.mxu0 %v544
  %749 = vmatmul.mubr.f32.gmra.mrb[0].mxu0 %v543
  %v750 = vpop.f32.mrb[0].mxu0
  %v751 = vadd.f32 0.0, %v750
  %v752 = vpop.f32.mrb[0].mxu0
  %753 = vmatprep.mubr.f32.mxu0 %v546
  %754 = vmatmul.mubr.f32.gmra.mrb[0].mxu0 %v545
  %v755 = vpop.f32.mrb[0].mxu0
  %v756 = vadd.f32 0.0, %v755
  %v757 = vpop.f32.mrb[0].mxu0
  %758 = vmatprep.mubr.f32.mxu0 %v548
  %759 = vmatmul.mubr.f32.gmra.mrb[0].mxu0 %v547
  %v760 = vpop.f32.mrb[0].mxu0
  %v761 = vadd.f32 0.0, %v760
  %v762 = vpop.f32.mrb[0].mxu0
  %763 = vmatprep.mubr.f32.mxu0 %v550
  %764 = vmatmul.mubr.f32.gmra.mrb[0].mxu0 %v549
  %v765 = vpop.f32.mrb[0].mxu0
  %v766 = vadd.f32 0.0, %v765
  %v767 = vpop.f32.mrb[0].mxu0
  %768 = vmatprep.mubr.f32.mxu0 %v552
  %769 = vmatmul.mubr.f32.gmra.mrb[0].mxu0 %v551
  %v770 = vpop.f32.mrb[0].mxu0
  %v771 = vadd.f32 0.0, %v770
  %v772 = vpop.f32.mrb[0].mxu0
  %773 = vmatprep.mubr.f32.mxu0 %v554
  %774 = vmatmul.mubr.f32.gmra.mrb[0].mxu0 %v553
  %v775 = vpop.f32.mrb[0].mxu0
  %v776 = vadd.f32 0.0, %v775
  %v777 = vpop.f32.mrb[0].mxu0
  %778 = vdwg.mxu0
  %vm779 = vcmask 326656
  %v781 = vsel %vm779, %v556, 0
  %v784 = vsel %vm779, %v558, 0
  %v787 = vsel %vm779, %v560, 0
  %v790 = vsel %vm779, %v562, 0
  %v793 = vsel %vm779, %v564, 0
  %v796 = vsel %vm779, %v566, 0
  %v799 = vsel %vm779, %v568, 0
  %v802 = vsel %vm779, %v570, 0
  %v805 = vsel %vm779, %v572, 0
  %v808 = vsel %vm779, %v574, 0
  %v811 = vsel %vm779, %v576, 0
  %813 = vmatprep.subr.mxu0 0.0
  %814 = vmatpush1.msra.mxu0 %v676
  %815 = vmatprep.subr.mxu0 0.0
  %816 = vmatpush1.msra.mxu0 %v681
  %817 = vmatprep.subr.mxu0 0.0
  %818 = vmatpush1.msra.mxu0 %v686
  %819 = vmatprep.subr.mxu0 0.0
  %820 = vmatpush1.msra.mxu0 %v691
  %821 = vmatprep.subr.mxu0 0.0
  %822 = vmatpush1.msra.mxu0 %v696
  %823 = vmatprep.subr.mxu0 0.0
  %824 = vmatpush1.msra.mxu0 %v701
  %825 = vmatprep.subr.mxu0 0.0
  %826 = vmatpush1.msra.mxu0 %v706
  %827 = vmatprep.subr.mxu0 0.0
  %828 = vmatpush1.msra.mxu0 %v711
  %829 = vmatprep.subr.mxu0 0.0
  %830 = vmatpush1.msra.mxu0 %v716
  %831 = vmatprep.subr.mxu0 0.0
  %832 = vmatpush1.msra.mxu0 %v721
  %833 = vmatprep.subr.mxu0 0.0
  %834 = vmatpush1.msra.mxu0 %v726
  %835 = vmatprep.subr.mxu0 0.0
  %836 = vmatpush1.msra.mxu0 %v731
  %837 = vmatprep.subr.mxu0 0.0
  %838 = vmatpush1.msra.mxu0 %v736
  %839 = vmatprep.subr.mxu0 0.0
  %840 = vmatpush1.msra.mxu0 %v741
  %841 = vmatprep.subr.mxu0 0.0
  %842 = vmatpush1.msra.mxu0 %v746
  %843 = vmatprep.subr.mxu0 0.0
  %844 = vmatpush1.msra.mxu0 %v751
  %845 = vmatprep.subr.mxu0 0.0
  %846 = vmatpush1.msra.mxu0 %v756
  %847 = vmatprep.subr.mxu0 0.0
  %848 = vmatpush1.msra.mxu0 %v761
  %849 = vmatprep.subr.mxu0 0.0
  %850 = vmatpush1.msra.mxu0 %v766
  %851 = vmatprep.subr.mxu0 0.0
  %852 = vmatpush1.msra.mxu0 %v771
  %853 = vmatprep.subr.mxu0 0.0
  %854 = vmatpush1.msra.mxu0 %v776
  %855 = vmatprep.subr.mxu0 0.0
  %856 = vmatpush1.msra.mxu0 0.0
  %857 = vmatprep.subr.mxu0 0.0
  %858 = vmatpush1.msra.mxu0 0.0
  %859 = vmatprep.subr.mxu0 0.0
  %860 = vmatpush1.msra.mxu0 0.0
  %861 = vmatprep.subr.mxu0 0.0
  %862 = vmatpush1.msra.mxu0 0.0
  %863 = vmatprep.subr.mxu0 0.0
  %864 = vmatpush1.msra.mxu0 0.0
  %865 = vmatprep.subr.mxu0 0.0
  %866 = vmatpush1.msra.mxu0 0.0
  %867 = vmatprep.subr.mxu0 0.0
  %868 = vmatpush1.msra.mxu0 0.0
  %869 = vmatprep.subr.mxu0 0.0
  %870 = vmatpush1.msra.mxu0 0.0
  %871 = vmatprep.subr.mxu0 0.0
  %872 = vmatpush1.msra.mxu0 0.0
  %873 = vmatprep.subr.mxu0 0.0
  %874 = vmatpush1.msra.mxu0 0.0
  %875 = vmatprep.subr.mxu0 0.0
  %876 = vmatpush1.msra.mxu0 0.0
  %877 = vmatprep.mubr.f32.mxu0 %v781
  %878 = vmatmul.mubr.f32.gmra.mrb[0].mxu0 %v555
  %v879 = vpop.f32.mrb[0].mxu0
  %v880 = vadd.f32 0.0, %v879
  %v881 = vpop.f32.mrb[0].mxu0
  %882 = vmatprep.mubr.f32.mxu0 %v784
  %883 = vmatmul.mubr.f32.gmra.mrb[0].mxu0 %v557
  %v884 = vpop.f32.mrb[0].mxu0
  %v885 = vadd.f32 0.0, %v884
  %v886 = vpop.f32.mrb[0].mxu0
  %887 = vmatprep.mubr.f32.mxu0 %v787
  %888 = vmatmul.mubr.f32.gmra.mrb[0].mxu0 %v559
  %v889 = vpop.f32.mrb[0].mxu0
  %v890 = vadd.f32 0.0, %v889
  %v891 = vpop.f32.mrb[0].mxu0
  %892 = vmatprep.mubr.f32.mxu0 %v790
  %893 = vmatmul.mubr.f32.gmra.mrb[0].mxu0 %v561
  %v894 = vpop.f32.mrb[0].mxu0
  %v895 = vadd.f32 0.0, %v894
  %v896 = vpop.f32.mrb[0].mxu0
  %897 = vmatprep.mubr.f32.mxu0 %v793
  %898 = vmatmul.mubr.f32.gmra.mrb[0].mxu0 %v563
  %v899 = vpop.f32.mrb[0].mxu0
  %v900 = vadd.f32 0.0, %v899
  %v901 = vpop.f32.mrb[0].mxu0
  %902 = vmatprep.mubr.f32.mxu0 %v796
  %903 = vmatmul.mubr.f32.gmra.mrb[0].mxu0 %v565
  %v904 = vpop.f32.mrb[0].mxu0
  %v905 = vadd.f32 0.0, %v904
  %v906 = vpop.f32.mrb[0].mxu0
  %907 = vmatprep.mubr.f32.mxu0 %v799
  %908 = vmatmul.mubr.f32.gmra.mrb[0].mxu0 %v567
  %v909 = vpop.f32.mrb[0].mxu0
  %v910 = vadd.f32 0.0, %v909
  %v911 = vpop.f32.mrb[0].mxu0
  %912 = vmatprep.mubr.f32.mxu0 %v802
  %913 = vmatmul.mubr.f32.gmra.mrb[0].mxu0 %v569
  %v914 = vpop.f32.mrb[0].mxu0
  %v915 = vadd.f32 0.0, %v914
  %v916 = vpop.f32.mrb[0].mxu0
  %917 = vmatprep.mubr.f32.mxu0 %v805
  %918 = vmatmul.mubr.f32.gmra.mrb[0].mxu0 %v571
  %v919 = vpop.f32.mrb[0].mxu0
  %v920 = vadd.f32 0.0, %v919
  %v921 = vpop.f32.mrb[0].mxu0
  %922 = vmatprep.mubr.f32.mxu0 %v808
  %923 = vmatmul.mubr.f32.gmra.mrb[0].mxu0 %v573
  %v924 = vpop.f32.mrb[0].mxu0
  %v925 = vadd.f32 0.0, %v924
  %v926 = vpop.f32.mrb[0].mxu0
  %927 = vmatprep.mubr.f32.mxu0 %v811
  %928 = vmatmul.mubr.f32.gmra.mrb[0].mxu0 %v575
  %v929 = vpop.f32.mrb[0].mxu0
  %v930 = vadd.f32 0.0, %v929
  %v931 = vpop.f32.mrb[0].mxu0
  %932 = vdwg.mxu0
  %v933 = vld [vmem:[%s7] sm:$0xff]
  %v934 = vld [vmem:[%s7 + $0x8] sm:$0xff]
  %v935 = vld [vmem:[%s7 + $0x10] sm:$0xff]
  %v936 = vld [vmem:[%s7 + $0x18] sm:$0xff]
  %v937 = vld [vmem:[%s7 + $0x20] sm:$0xff]
  %v938 = vld [vmem:[%s7 + $0x28] sm:$0xff]
  %v939 = vld [vmem:[%s7 + $0x30] sm:$0xff]
  %v940 = vld [vmem:[%s7 + $0x38] sm:$0xff]
  %v941 = vld [vmem:[%s7 + $0x40] sm:$0xff]
  %v942 = vld [vmem:[%s7 + $0x48] sm:$0xff]
  %v943 = vld [vmem:[%s7 + $0x50] sm:$0xff]
  %v944 = vld [vmem:[%s7 + $0x58] sm:$0xff]
  %v945 = vld [vmem:[%s7 + $0x60] sm:$0xff]
  %v946 = vld [vmem:[%s7 + $0x68] sm:$0xff]
  %v947 = vld [vmem:[%s7 + $0x70] sm:$0xff]
  %v948 = vld [vmem:[%s7 + $0x78] sm:$0xff]
  %v949 = vld [vmem:[%s7 + $0x80] sm:$0xff]
  %v950 = vld [vmem:[%s7 + $0x88] sm:$0xff]
  %v951 = vld [vmem:[%s7 + $0x90] sm:$0xff]
  %v952 = vld [vmem:[%s7 + $0x98] sm:$0xff]
  %v953 = vld [vmem:[%s6] sm:$0xff]
  %v954 = vld [vmem:[%s6 + $0x8] sm:$0xff]
  %v955 = vld [vmem:[%s6 + $0x10] sm:$0xff]
  %v956 = vld [vmem:[%s6 + $0x18] sm:$0xff]
  %v957 = vld [vmem:[%s6 + $0x20] sm:$0xff]
  %v958 = vld [vmem:[%s6 + $0x28] sm:$0xff]
  %v959 = vld [vmem:[%s6 + $0x30] sm:$0xff]
  %v960 = vld [vmem:[%s6 + $0x38] sm:$0xff]
  %v961 = vld [vmem:[%s6 + $0x40] sm:$0xff]
  %v962 = vld [vmem:[%s6 + $0x48] sm:$0xff]
  %v963 = vld [vmem:[%s6 + $0x50] sm:$0xff]
  %v964 = vld [vmem:[%s6 + $0x58] sm:$0xff]
  %v965 = vld [vmem:[%s6 + $0x60] sm:$0xff]
  %v966 = vld [vmem:[%s6 + $0x68] sm:$0xff]
  %v967 = vld [vmem:[%s6 + $0x70] sm:$0xff]
  %v968 = vld [vmem:[%s6 + $0x78] sm:$0xff]
  %v969 = vld [vmem:[%s6 + $0x80] sm:$0xff]
  %v970 = vld [vmem:[%s6 + $0x88] sm:$0xff]
  %v971 = vld [vmem:[%s6 + $0x90] sm:$0xff]
  %v972 = vld [vmem:[%s6 + $0x98] sm:$0xff]
  %vm973 = vcmask 687104
  %v975 = vsel %vm973, %v953, 0
  %v978 = vsel %vm973, %v954, 0
  %v981 = vsel %vm973, %v955, 0
  %v984 = vsel %vm973, %v956, 0
  %v987 = vsel %vm973, %v957, 0
  %v990 = vsel %vm973, %v958, 0
  %v993 = vsel %vm973, %v959, 0
  %v996 = vsel %vm973, %v960, 0
  %v999 = vsel %vm973, %v961, 0
  %v1002 = vsel %vm973, %v962, 0
  %v1005 = vsel %vm973, %v963, 0
  %v1008 = vsel %vm973, %v964, 0
  %v1011 = vsel %vm973, %v965, 0
  %v1014 = vsel %vm973, %v966, 0
  %v1017 = vsel %vm973, %v967, 0
  %v1020 = vsel %vm973, %v968, 0
  %v1023 = vsel %vm973, %v969, 0
  %v1026 = vsel %vm973, %v970, 0
  %v1029 = vsel %vm973, %v971, 0
  %v1032 = vsel %vm973, %v972, 0
  %vm1034 = vcmask 1043456
  %v1036 = vsel %vm1034, %v930, 0
  %1038 = vmatprep.subr.mxu0 0.0
  %1039 = vmatpush1.msra.mxu0 %v880
  %1040 = vmatprep.subr.mxu0 0.0
  %1041 = vmatpush1.msra.mxu0 %v885
  %1042 = vmatprep.subr.mxu0 0.0
  %1043 = vmatpush1.msra.mxu0 %v890
  %1044 = vmatprep.subr.mxu0 0.0
  %1045 = vmatpush1.msra.mxu0 %v895
  %1046 = vmatprep.subr.mxu0 0.0
  %1047 = vmatpush1.msra.mxu0 %v900
  %1048 = vmatprep.subr.mxu0 0.0
  %1049 = vmatpush1.msra.mxu0 %v905
  %1050 = vmatprep.subr.mxu0 0.0
  %1051 = vmatpush1.msra.mxu0 %v910
  %1052 = vmatprep.subr.mxu0 0.0
  %1053 = vmatpush1.msra.mxu0 %v915
  %1054 = vmatprep.subr.mxu0 0.0
  %1055 = vmatpush1.msra.mxu0 %v920
  %1056 = vmatprep.subr.mxu0 0.0
  %1057 = vmatpush1.msra.mxu0 %v925
  %1058 = vmatprep.subr.mxu0 0.0
  %1059 = vmatpush1.msra.mxu0 %v1036
  %1060 = vmatprep.subr.mxu0 0.0
  %1061 = vmatpush1.msra.mxu0 0.0
  %1062 = vmatprep.subr.mxu0 0.0
  %1063 = vmatpush1.msra.mxu0 0.0
  %1064 = vmatprep.subr.mxu0 0.0
  %1065 = vmatpush1.msra.mxu0 0.0
  %1066 = vmatprep.subr.mxu0 0.0
  %1067 = vmatpush1.msra.mxu0 0.0
  %1068 = vmatprep.subr.mxu0 0.0
  %1069 = vmatpush1.msra.mxu0 0.0
  %1070 = vmatprep.subr.mxu0 0.0
  %1071 = vmatpush1.msra.mxu0 0.0
  %1072 = vmatprep.subr.mxu0 0.0
  %1073 = vmatpush1.msra.mxu0 0.0
  %1074 = vmatprep.subr.mxu0 0.0
  %1075 = vmatpush1.msra.mxu0 0.0
  %1076 = vmatprep.subr.mxu0 0.0
  %1077 = vmatpush1.msra.mxu0 0.0
  %1078 = vmatprep.subr.mxu0 0.0
  %1079 = vmatpush1.msra.mxu0 0.0
  %1080 = vmatprep.subr.mxu0 0.0
  %1081 = vmatpush1.msra.mxu0 0.0
  %1082 = vmatprep.subr.mxu0 0.0
  %1083 = vmatpush1.msra.mxu0 0.0
  %1084 = vmatprep.subr.mxu0 0.0
  %1085 = vmatpush1.msra.mxu0 0.0
  %1086 = vmatprep.subr.mxu0 0.0
  %1087 = vmatpush1.msra.mxu0 0.0
  %1088 = vmatprep.subr.mxu0 0.0
  %1089 = vmatpush1.msra.mxu0 0.0
  %1090 = vmatprep.subr.mxu0 0.0
  %1091 = vmatpush1.msra.mxu0 0.0
  %1092 = vmatprep.subr.mxu0 0.0
  %1093 = vmatpush1.msra.mxu0 0.0
  %1094 = vmatprep.subr.mxu0 0.0
  %1095 = vmatpush1.msra.mxu0 0.0
  %1096 = vmatprep.subr.mxu0 0.0
  %1097 = vmatpush1.msra.mxu0 0.0
  %1098 = vmatprep.subr.mxu0 0.0
  %1099 = vmatpush1.msra.mxu0 0.0
  %1100 = vmatprep.subr.mxu0 0.0
  %1101 = vmatpush1.msra.mxu0 0.0
  %1102 = vmatprep.mubr.f32.mxu0 0.0
  %1103 = vmatmul.mubr.f32.gmra.mrb[0].mxu0 %v975
  %v1104 = vpop.f32.mrb[0].mxu0
  %v1105 = vadd.f32 0.0, %v1104
  %v1106 = vpop.f32.mrb[0].mxu0
  %1107 = vmatprep.mubr.f32.mxu0 0.0
  %1108 = vmatmul.mubr.f32.gmra.mrb[0].mxu0 %v978
  %v1109 = vpop.f32.mrb[0].mxu0
  %v1110 = vadd.f32 0.0, %v1109
  %v1111 = vpop.f32.mrb[0].mxu0
  %1112 = vmatprep.mubr.f32.mxu0 0.0
  %1113 = vmatmul.mubr.f32.gmra.mrb[0].mxu0 %v981
  %v1114 = vpop.f32.mrb[0].mxu0
  %v1115 = vadd.f32 0.0, %v1114
  %v1116 = vpop.f32.mrb[0].mxu0
  %1117 = vmatprep.mubr.f32.mxu0 0.0
  %1118 = vmatmul.mubr.f32.gmra.mrb[0].mxu0 %v984
  %v1119 = vpop.f32.mrb[0].mxu0
  %v1120 = vadd.f32 0.0, %v1119
  %v1121 = vpop.f32.mrb[0].mxu0
  %1122 = vmatprep.mubr.f32.mxu0 0.0
  %1123 = vmatmul.mubr.f32.gmra.mrb[0].mxu0 %v987
  %v1124 = vpop.f32.mrb[0].mxu0
  %v1125 = vadd.f32 0.0, %v1124
  %v1126 = vpop.f32.mrb[0].mxu0
  %1127 = vmatprep.mubr.f32.mxu0 0.0
  %1128 = vmatmul.mubr.f32.gmra.mrb[0].mxu0 %v990
  %v1129 = vpop.f32.mrb[0].mxu0
  %v1130 = vadd.f32 0.0, %v1129
  %v1131 = vpop.f32.mrb[0].mxu0
  %1132 = vmatprep.mubr.f32.mxu0 0.0
  %1133 = vmatmul.mubr.f32.gmra.mrb[0].mxu0 %v993
  %v1134 = vpop.f32.mrb[0].mxu0
  %v1135 = vadd.f32 0.0, %v1134
  %v1136 = vpop.f32.mrb[0].mxu0
  %1137 = vmatprep.mubr.f32.mxu0 0.0
  %1138 = vmatmul.mubr.f32.gmra.mrb[0].mxu0 %v996
  %v1139 = vpop.f32.mrb[0].mxu0
  %v1140 = vadd.f32 0.0, %v1139
  %v1141 = vpop.f32.mrb[0].mxu0
  %1142 = vmatprep.mubr.f32.mxu0 0.0
  %1143 = vmatmul.mubr.f32.gmra.mrb[0].mxu0 %v999
  %v1144 = vpop.f32.mrb[0].mxu0
  %v1145 = vadd.f32 0.0, %v1144
  %v1146 = vpop.f32.mrb[0].mxu0
  %1147 = vmatprep.mubr.f32.mxu0 0.0
  %1148 = vmatmul.mubr.f32.gmra.mrb[0].mxu0 %v1002
  %v1149 = vpop.f32.mrb[0].mxu0
  %v1150 = vadd.f32 0.0, %v1149
  %v1151 = vpop.f32.mrb[0].mxu0
  %1152 = vmatprep.mubr.f32.mxu0 0.0
  %1153 = vmatmul.mubr.f32.gmra.mrb[0].mxu0 %v1005
  %v1154 = vpop.f32.mrb[0].mxu0
  %v1155 = vadd.f32 0.0, %v1154
  %v1156 = vpop.f32.mrb[0].mxu0
  %1157 = vmatprep.mubr.f32.mxu0 0.0
  %1158 = vmatmul.mubr.f32.gmra.mrb[0].mxu0 %v1008
  %v1159 = vpop.f32.mrb[0].mxu0
  %v1160 = vadd.f32 0.0, %v1159
  %v1161 = vpop.f32.mrb[0].mxu0
  %1162 = vmatprep.mubr.f32.mxu0 0.0
  %1163 = vmatmul.mubr.f32.gmra.mrb[0].mxu0 %v1011
  %v1164 = vpop.f32.mrb[0].mxu0
  %v1165 = vadd.f32 0.0, %v1164
  %v1166 = vpop.f32.mrb[0].mxu0
  %1167 = vmatprep.mubr.f32.mxu0 0.0
  %1168 = vmatmul.mubr.f32.gmra.mrb[0].mxu0 %v1014
  %v1169 = vpop.f32.mrb[0].mxu0
  %v1170 = vadd.f32 0.0, %v1169
  %v1171 = vpop.f32.mrb[0].mxu0
  %1172 = vmatprep.mubr.f32.mxu0 0.0
  %1173 = vmatmul.mubr.f32.gmra.mrb[0].mxu0 %v1017
  %v1174 = vpop.f32.mrb[0].mxu0
  %v1175 = vadd.f32 0.0, %v1174
  %v1176 = vpop.f32.mrb[0].mxu0
  %1177 = vmatprep.mubr.f32.mxu0 0.0
  %1178 = vmatmul.mubr.f32.gmra.mrb[0].mxu0 %v1020
  %v1179 = vpop.f32.mrb[0].mxu0
  %v1180 = vadd.f32 0.0, %v1179
  %v1181 = vpop.f32.mrb[0].mxu0
  %1182 = vmatprep.mubr.f32.mxu0 0.0
  %1183 = vmatmul.mubr.f32.gmra.mrb[0].mxu0 %v1023
  %v1184 = vpop.f32.mrb[0].mxu0
  %v1185 = vadd.f32 0.0, %v1184
  %v1186 = vpop.f32.mrb[0].mxu0
  %1187 = vmatprep.mubr.f32.mxu0 0.0
  %1188 = vmatmul.mubr.f32.gmra.mrb[0].mxu0 %v1026
  %v1189 = vpop.f32.mrb[0].mxu0
  %v1190 = vadd.f32 0.0, %v1189
  %v1191 = vpop.f32.mrb[0].mxu0
  %1192 = vmatprep.mubr.f32.mxu0 0.0
  %1193 = vmatmul.mubr.f32.gmra.mrb[0].mxu0 %v1029
  %v1194 = vpop.f32.mrb[0].mxu0
  %v1195 = vadd.f32 0.0, %v1194
  %v1196 = vpop.f32.mrb[0].mxu0
  %1197 = vmatprep.mubr.f32.mxu0 0.0
  %1198 = vmatmul.mubr.f32.gmra.mrb[0].mxu0 %v1032
  %v1199 = vpop.f32.mrb[0].mxu0
  %v1200 = vadd.f32 0.0, %v1199
  %v1201 = vpop.f32.mrb[0].mxu0
  %1202 = vdwg.mxu0
  %1204 = vset.pattern.permute.xlu0 0
  %1205 = vperm.xlu0 %1204, %v933
  %v1206 = vpop.permute.xlu0 %1205
  %1209 = vset.pattern.permute.xlu0 0
  %1210 = vperm.xlu0 %1209, %v934
  %v1211 = vpop.permute.xlu0 %1210
  %1214 = vset.pattern.permute.xlu0 0
  %1215 = vperm.xlu0 %1214, %v935
  %v1216 = vpop.permute.xlu0 %1215
  %1219 = vset.pattern.permute.xlu0 0
  %1220 = vperm.xlu0 %1219, %v936
  %v1221 = vpop.permute.xlu0 %1220
  %1224 = vset.pattern.permute.xlu0 0
  %1225 = vperm.xlu0 %1224, %v937
  %v1226 = vpop.permute.xlu0 %1225
  %1229 = vset.pattern.permute.xlu0 0
  %1230 = vperm.xlu0 %1229, %v938
  %v1231 = vpop.permute.xlu0 %1230
  %1234 = vset.pattern.permute.xlu0 0
  %1235 = vperm.xlu0 %1234, %v939
  %v1236 = vpop.permute.xlu0 %1235
  %1239 = vset.pattern.permute.xlu0 0
  %1240 = vperm.xlu0 %1239, %v940
  %v1241 = vpop.permute.xlu0 %1240
  %1244 = vset.pattern.permute.xlu0 0
  %1245 = vperm.xlu0 %1244, %v941
  %v1246 = vpop.permute.xlu0 %1245
  %1249 = vset.pattern.permute.xlu0 0
  %1250 = vperm.xlu0 %1249, %v942
  %v1251 = vpop.permute.xlu0 %1250
  %1254 = vset.pattern.permute.xlu0 0
  %1255 = vperm.xlu0 %1254, %v943
  %v1256 = vpop.permute.xlu0 %1255
  %1259 = vset.pattern.permute.xlu0 0
  %1260 = vperm.xlu0 %1259, %v944
  %v1261 = vpop.permute.xlu0 %1260
  %1264 = vset.pattern.permute.xlu0 0
  %1265 = vperm.xlu0 %1264, %v945
  %v1266 = vpop.permute.xlu0 %1265
  %1269 = vset.pattern.permute.xlu0 0
  %1270 = vperm.xlu0 %1269, %v946
  %v1271 = vpop.permute.xlu0 %1270
  %1274 = vset.pattern.permute.xlu0 0
  %1275 = vperm.xlu0 %1274, %v947
  %v1276 = vpop.permute.xlu0 %1275
  %1279 = vset.pattern.permute.xlu0 0
  %1280 = vperm.xlu0 %1279, %v948
  %v1281 = vpop.permute.xlu0 %1280
  %1284 = vset.pattern.permute.xlu0 0
  %1285 = vperm.xlu0 %1284, %v949
  %v1286 = vpop.permute.xlu0 %1285
  %1289 = vset.pattern.permute.xlu0 0
  %1290 = vperm.xlu0 %1289, %v950
  %v1291 = vpop.permute.xlu0 %1290
  %1294 = vset.pattern.permute.xlu0 0
  %1295 = vperm.xlu0 %1294, %v951
  %v1296 = vpop.permute.xlu0 %1295
  %1299 = vset.pattern.permute.xlu0 0
  %1300 = vperm.xlu0 %1299, %v952
  %v1301 = vpop.permute.xlu0 %1300
  %v1303 = vadd.f32 %v1206, %v1105
  %v1304 = vadd.f32 %v1211, %v1110
  %v1305 = vadd.f32 %v1216, %v1115
  %v1306 = vadd.f32 %v1221, %v1120
  %v1307 = vadd.f32 %v1226, %v1125
  %v1308 = vadd.f32 %v1231, %v1130
  %v1309 = vadd.f32 %v1236, %v1135
  %v1310 = vadd.f32 %v1241, %v1140
  %v1311 = vadd.f32 %v1246, %v1145
  %v1312 = vadd.f32 %v1251, %v1150
  %v1313 = vadd.f32 %v1256, %v1155
  %v1314 = vadd.f32 %v1261, %v1160
  %v1315 = vadd.f32 %v1266, %v1165
  %v1316 = vadd.f32 %v1271, %v1170
  %v1317 = vadd.f32 %v1276, %v1175
  %v1318 = vadd.f32 %v1281, %v1180
  %v1319 = vadd.f32 %v1286, %v1185
  %v1320 = vadd.f32 %v1291, %v1190
  %v1321 = vadd.f32 %v1296, %v1195
  %v1322 = vadd.f32 %v1301, %v1200
  %s1323 = scalar_lea.vmem %s6, 160
  %v1324 = vld [vmem:[%s1323] sm:$0xff]
  %v1325 = vld [vmem:[%s1323 + $0x8] sm:$0xff]
  %v1326 = vld [vmem:[%s1323 + $0x10] sm:$0xff]
  %v1327 = vld [vmem:[%s1323 + $0x18] sm:$0xff]
  %v1328 = vld [vmem:[%s1323 + $0x20] sm:$0xff]
  %v1329 = vld [vmem:[%s1323 + $0x28] sm:$0xff]
  %v1330 = vld [vmem:[%s1323 + $0x30] sm:$0xff]
  %v1331 = vld [vmem:[%s1323 + $0x38] sm:$0xff]
  %v1332 = vld [vmem:[%s1323 + $0x40] sm:$0xff]
  %v1333 = vld [vmem:[%s1323 + $0x48] sm:$0xff]
  %v1334 = vld [vmem:[%s1323 + $0x50] sm:$0xff]
  %v1335 = vld [vmem:[%s1323 + $0x58] sm:$0xff]
  %v1336 = vld [vmem:[%s1323 + $0x60] sm:$0xff]
  %v1337 = vld [vmem:[%s1323 + $0x68] sm:$0xff]
  %v1338 = vld [vmem:[%s1323 + $0x70] sm:$0xff]
  %v1339 = vld [vmem:[%s1323 + $0x78] sm:$0xff]
  %v1340 = vld [vmem:[%s1323 + $0x80] sm:$0xff]
  %v1341 = vld [vmem:[%s1323 + $0x88] sm:$0xff]
  %v1342 = vld [vmem:[%s1323 + $0x90] sm:$0xff]
  %v1343 = vld [vmem:[%s1323 + $0x98] sm:$0xff]
  %v1344 = vld [vmem:[%s5] sm:$0xff]
  %v1345 = vld [vmem:[%s5 + $0x8] sm:$0xff]
  %v1346 = vld [vmem:[%s5 + $0x10] sm:$0xff]
  %v1347 = vld [vmem:[%s5 + $0x18] sm:$0xff]
  %v1348 = vld [vmem:[%s5 + $0x20] sm:$0xff]
  %v1349 = vld [vmem:[%s5 + $0x28] sm:$0xff]
  %v1350 = vld [vmem:[%s5 + $0x30] sm:$0xff]
  %v1351 = vld [vmem:[%s5 + $0x38] sm:$0xff]
  %v1352 = vld [vmem:[%s5 + $0x40] sm:$0xff]
  %v1353 = vld [vmem:[%s5 + $0x48] sm:$0xff]
  %v1354 = vld [vmem:[%s5 + $0x50] sm:$0xff]
  %v1355 = vld [vmem:[%s5 + $0x58] sm:$0xff]
  %v1356 = vld [vmem:[%s5 + $0x60] sm:$0xff]
  %v1357 = vld [vmem:[%s5 + $0x68] sm:$0xff]
  %v1358 = vld [vmem:[%s5 + $0x70] sm:$0xff]
  %v1359 = vld [vmem:[%s5 + $0x78] sm:$0xff]
  %1360 = vmatprep.subr.mxu0 0.0
  %1361 = vmatpush1.msra.mxu0 %v1344
  %1362 = vmatprep.subr.mxu0 0.0
  %1363 = vmatpush1.msra.mxu0 %v1345
  %1364 = vmatprep.subr.mxu0 0.0
  %1365 = vmatpush1.msra.mxu0 %v1346
  %1366 = vmatprep.subr.mxu0 0.0
  %1367 = vmatpush1.msra.mxu0 %v1347
  %1368 = vmatprep.subr.mxu0 0.0
  %1369 = vmatpush1.msra.mxu0 %v1348
  %1370 = vmatprep.subr.mxu0 0.0
  %1371 = vmatpush1.msra.mxu0 %v1349
  %1372 = vmatprep.subr.mxu0 0.0
  %1373 = vmatpush1.msra.mxu0 %v1350
  %1374 = vmatprep.subr.mxu0 0.0
  %1375 = vmatpush1.msra.mxu0 %v1351
  %1376 = vmatprep.subr.mxu0 0.0
  %1377 = vmatpush1.msra.mxu0 %v1352
  %1378 = vmatprep.subr.mxu0 0.0
  %1379 = vmatpush1.msra.mxu0 %v1353
  %1380 = vmatprep.subr.mxu0 0.0
  %1381 = vmatpush1.msra.mxu0 %v1354
  %1382 = vmatprep.subr.mxu0 0.0
  %1383 = vmatpush1.msra.mxu0 %v1355
  %1384 = vmatprep.subr.mxu0 0.0
  %1385 = vmatpush1.msra.mxu0 %v1356
  %1386 = vmatprep.subr.mxu0 0.0
  %1387 = vmatpush1.msra.mxu0 %v1357
  %1388 = vmatprep.subr.mxu0 0.0
  %1389 = vmatpush1.msra.mxu0 %v1358
  %1390 = vmatprep.subr.mxu0 0.0
  %1391 = vmatpush1.msra.mxu0 %v1359
  %1392 = vmatprep.subr.mxu0 0.0
  %1393 = vmatpush1.msra.mxu0 0.0
  %1394 = vmatprep.subr.mxu0 0.0
  %1395 = vmatpush1.msra.mxu0 0.0
  %1396 = vmatprep.subr.mxu0 0.0
  %1397 = vmatpush1.msra.mxu0 0.0
  %1398 = vmatprep.subr.mxu0 0.0
  %1399 = vmatpush1.msra.mxu0 0.0
  %1400 = vmatprep.subr.mxu0 0.0
  %1401 = vmatpush1.msra.mxu0 0.0
  %1402 = vmatprep.subr.mxu0 0.0
  %1403 = vmatpush1.msra.mxu0 0.0
  %1404 = vmatprep.subr.mxu0 0.0
  %1405 = vmatpush1.msra.mxu0 0.0
  %1406 = vmatprep.subr.mxu0 0.0
  %1407 = vmatpush1.msra.mxu0 0.0
  %1408 = vmatprep.subr.mxu0 0.0
  %1409 = vmatpush1.msra.mxu0 0.0
  %1410 = vmatprep.subr.mxu0 0.0
  %1411 = vmatpush1.msra.mxu0 0.0
  %1412 = vmatprep.subr.mxu0 0.0
  %1413 = vmatpush1.msra.mxu0 0.0
  %1414 = vmatprep.subr.mxu0 0.0
  %1415 = vmatpush1.msra.mxu0 0.0
  %1416 = vmatprep.subr.mxu0 0.0
  %1417 = vmatpush1.msra.mxu0 0.0
  %1418 = vmatprep.subr.mxu0 0.0
  %1419 = vmatpush1.msra.mxu0 0.0
  %1420 = vmatprep.subr.mxu0 0.0
  %1421 = vmatpush1.msra.mxu0 0.0
  %1422 = vmatprep.subr.mxu0 0.0
  %1423 = vmatpush1.msra.mxu0 0.0
  %1424 = vmatprep.mubr.f32.mxu0 0.0
  %1425 = vmatmul.mubr.f32.gmra.mrb[0].mxu0 %v880
  %v1426 = vpop.f32.mrb[0].mxu0
  %v1427 = vadd.f32 0.0, %v1426
  %v1428 = vpop.f32.mrb[0].mxu0
  %1429 = vmatprep.mubr.f32.mxu0 0.0
  %1430 = vmatmul.mubr.f32.gmra.mrb[0].mxu0 %v885
  %v1431 = vpop.f32.mrb[0].mxu0
  %v1432 = vadd.f32 0.0, %v1431
  %v1433 = vpop.f32.mrb[0].mxu0
  %1434 = vmatprep.mubr.f32.mxu0 0.0
  %1435 = vmatmul.mubr.f32.gmra.mrb[0].mxu0 %v890
  %v1436 = vpop.f32.mrb[0].mxu0
  %v1437 = vadd.f32 0.0, %v1436
  %v1438 = vpop.f32.mrb[0].mxu0
  %1439 = vmatprep.mubr.f32.mxu0 0.0
  %1440 = vmatmul.mubr.f32.gmra.mrb[0].mxu0 %v895
  %v1441 = vpop.f32.mrb[0].mxu0
  %v1442 = vadd.f32 0.0, %v1441
  %v1443 = vpop.f32.mrb[0].mxu0
  %1444 = vmatprep.mubr.f32.mxu0 0.0
  %1445 = vmatmul.mubr.f32.gmra.mrb[0].mxu0 %v900
  %v1446 = vpop.f32.mrb[0].mxu0
  %v1447 = vadd.f32 0.0, %v1446
  %v1448 = vpop.f32.mrb[0].mxu0
  %1449 = vmatprep.mubr.f32.mxu0 0.0
  %1450 = vmatmul.mubr.f32.gmra.mrb[0].mxu0 %v905
  %v1451 = vpop.f32.mrb[0].mxu0
  %v1452 = vadd.f32 0.0, %v1451
  %v1453 = vpop.f32.mrb[0].mxu0
  %1454 = vmatprep.mubr.f32.mxu0 0.0
  %1455 = vmatmul.mubr.f32.gmra.mrb[0].mxu0 %v910
  %v1456 = vpop.f32.mrb[0].mxu0
  %v1457 = vadd.f32 0.0, %v1456
  %v1458 = vpop.f32.mrb[0].mxu0
  %1459 = vmatprep.mubr.f32.mxu0 0.0
  %1460 = vmatmul.mubr.f32.gmra.mrb[0].mxu0 %v915
  %v1461 = vpop.f32.mrb[0].mxu0
  %v1462 = vadd.f32 0.0, %v1461
  %v1463 = vpop.f32.mrb[0].mxu0
  %1464 = vmatprep.mubr.f32.mxu0 0.0
  %1465 = vmatmul.mubr.f32.gmra.mrb[0].mxu0 %v920
  %v1466 = vpop.f32.mrb[0].mxu0
  %v1467 = vadd.f32 0.0, %v1466
  %v1468 = vpop.f32.mrb[0].mxu0
  %1469 = vmatprep.mubr.f32.mxu0 0.0
  %1470 = vmatmul.mubr.f32.gmra.mrb[0].mxu0 %v925
  %v1471 = vpop.f32.mrb[0].mxu0
  %v1472 = vadd.f32 0.0, %v1471
  %v1473 = vpop.f32.mrb[0].mxu0
  %1474 = vmatprep.mubr.f32.mxu0 0.0
  %1475 = vmatmul.mubr.f32.gmra.mrb[0].mxu0 %v930
  %v1476 = vpop.f32.mrb[0].mxu0
  %v1477 = vadd.f32 0.0, %v1476
  %v1478 = vpop.f32.mrb[0].mxu0
  %1479 = vdwg.mxu0
  %v1481 = vsel %vm973, %v1324, 0
  %v1484 = vsel %vm973, %v1325, 0
  %v1487 = vsel %vm973, %v1326, 0
  %v1490 = vsel %vm973, %v1327, 0
  %v1493 = vsel %vm973, %v1328, 0
  %v1496 = vsel %vm973, %v1329, 0
  %v1499 = vsel %vm973, %v1330, 0
  %v1502 = vsel %vm973, %v1331, 0
  %v1505 = vsel %vm973, %v1332, 0
  %v1508 = vsel %vm973, %v1333, 0
  %v1511 = vsel %vm973, %v1334, 0
  %v1514 = vsel %vm973, %v1335, 0
  %v1517 = vsel %vm973, %v1336, 0
  %v1520 = vsel %vm973, %v1337, 0
  %v1523 = vsel %vm973, %v1338, 0
  %v1526 = vsel %vm973, %v1339, 0
  %v1529 = vsel %vm973, %v1340, 0
  %v1532 = vsel %vm973, %v1341, 0
  %v1535 = vsel %vm973, %v1342, 0
  %v1538 = vsel %vm973, %v1343, 0
  %v1541 = vsel %vm1034, %v1477, 0
  %1543 = vmatprep.subr.mxu0 0.0
  %1544 = vmatpush1.msra.mxu0 %v1427
  %1545 = vmatprep.subr.mxu0 0.0
  %1546 = vmatpush1.msra.mxu0 %v1432
  %1547 = vmatprep.subr.mxu0 0.0
  %1548 = vmatpush1.msra.mxu0 %v1437
  %1549 = vmatprep.subr.mxu0 0.0
  %1550 = vmatpush1.msra.mxu0 %v1442
  %1551 = vmatprep.subr.mxu0 0.0
  %1552 = vmatpush1.msra.mxu0 %v1447
  %1553 = vmatprep.subr.mxu0 0.0
  %1554 = vmatpush1.msra.mxu0 %v1452
  %1555 = vmatprep.subr.mxu0 0.0
  %1556 = vmatpush1.msra.mxu0 %v1457
  %1557 = vmatprep.subr.mxu0 0.0
  %1558 = vmatpush1.msra.mxu0 %v1462
  %1559 = vmatprep.subr.mxu0 0.0
  %1560 = vmatpush1.msra.mxu0 %v1467
  %1561 = vmatprep.subr.mxu0 0.0
  %1562 = vmatpush1.msra.mxu0 %v1472
  %1563 = vmatprep.subr.mxu0 0.0
  %1564 = vmatpush1.msra.mxu0 %v1541
  %1565 = vmatprep.subr.mxu0 0.0
  %1566 = vmatpush1.msra.mxu0 0.0
  %1567 = vmatprep.subr.mxu0 0.0
  %1568 = vmatpush1.msra.mxu0 0.0
  %1569 = vmatprep.subr.mxu0 0.0
  %1570 = vmatpush1.msra.mxu0 0.0
  %1571 = vmatprep.subr.mxu0 0.0
  %1572 = vmatpush1.msra.mxu0 0.0
  %1573 = vmatprep.subr.mxu0 0.0
  %1574 = vmatpush1.msra.mxu0 0.0
  %1575 = vmatprep.subr.mxu0 0.0
  %1576 = vmatpush1.msra.mxu0 0.0
  %1577 = vmatprep.subr.mxu0 0.0
  %1578 = vmatpush1.msra.mxu0 0.0
  %1579 = vmatprep.subr.mxu0 0.0
  %1580 = vmatpush1.msra.mxu0 0.0
  %1581 = vmatprep.subr.mxu0 0.0
  %1582 = vmatpush1.msra.mxu0 0.0
  %1583 = vmatprep.subr.mxu0 0.0
  %1584 = vmatpush1.msra.mxu0 0.0
  %1585 = vmatprep.subr.mxu0 0.0
  %1586 = vmatpush1.msra.mxu0 0.0
  %1587 = vmatprep.subr.mxu0 0.0
  %1588 = vmatpush1.msra.mxu0 0.0
  %1589 = vmatprep.subr.mxu0 0.0
  %1590 = vmatpush1.msra.mxu0 0.0
  %1591 = vmatprep.subr.mxu0 0.0
  %1592 = vmatpush1.msra.mxu0 0.0
  %1593 = vmatprep.subr.mxu0 0.0
  %1594 = vmatpush1.msra.mxu0 0.0
  %1595 = vmatprep.subr.mxu0 0.0
  %1596 = vmatpush1.msra.mxu0 0.0
  %1597 = vmatprep.subr.mxu0 0.0
  %1598 = vmatpush1.msra.mxu0 0.0
  %1599 = vmatprep.subr.mxu0 0.0
  %1600 = vmatpush1.msra.mxu0 0.0
  %1601 = vmatprep.subr.mxu0 0.0
  %1602 = vmatpush1.msra.mxu0 0.0
  %1603 = vmatprep.subr.mxu0 0.0
  %1604 = vmatpush1.msra.mxu0 0.0
  %1605 = vmatprep.subr.mxu0 0.0
  %1606 = vmatpush1.msra.mxu0 0.0
  %1607 = vmatprep.mubr.f32.mxu0 0.0
  %1608 = vmatmul.mubr.f32.gmra.mrb[0].mxu0 %v1481
  %v1609 = vpop.f32.mrb[0].mxu0
  %v1610 = vadd.f32 0.0, %v1609
  %v1611 = vpop.f32.mrb[0].mxu0
  %1612 = vmatprep.mubr.f32.mxu0 0.0
  %1613 = vmatmul.mubr.f32.gmra.mrb[0].mxu0 %v1484
  %v1614 = vpop.f32.mrb[0].mxu0
  %v1615 = vadd.f32 0.0, %v1614
  %v1616 = vpop.f32.mrb[0].mxu0
  %1617 = vmatprep.mubr.f32.mxu0 0.0
  %1618 = vmatmul.mubr.f32.gmra.mrb[0].mxu0 %v1487
  %v1619 = vpop.f32.mrb[0].mxu0
  %v1620 = vadd.f32 0.0, %v1619
  %v1621 = vpop.f32.mrb[0].mxu0
  %1622 = vmatprep.mubr.f32.mxu0 0.0
  %1623 = vmatmul.mubr.f32.gmra.mrb[0].mxu0 %v1490
  %v1624 = vpop.f32.mrb[0].mxu0
  %v1625 = vadd.f32 0.0, %v1624
  %v1626 = vpop.f32.mrb[0].mxu0
  %1627 = vmatprep.mubr.f32.mxu0 0.0
  %1628 = vmatmul.mubr.f32.gmra.mrb[0].mxu0 %v1493
  %v1629 = vpop.f32.mrb[0].mxu0
  %v1630 = vadd.f32 0.0, %v1629
  %v1631 = vpop.f32.mrb[0].mxu0
  %1632 = vmatprep.mubr.f32.mxu0 0.0
  %1633 = vmatmul.mubr.f32.gmra.mrb[0].mxu0 %v1496
  %v1634 = vpop.f32.mrb[0].mxu0
  %v1635 = vadd.f32 0.0, %v1634
  %v1636 = vpop.f32.mrb[0].mxu0
  %1637 = vmatprep.mubr.f32.mxu0 0.0
  %1638 = vmatmul.mubr.f32.gmra.mrb[0].mxu0 %v1499
  %v1639 = vpop.f32.mrb[0].mxu0
  %v1640 = vadd.f32 0.0, %v1639
  %v1641 = vpop.f32.mrb[0].mxu0
  %1642 = vmatprep.mubr.f32.mxu0 0.0
  %1643 = vmatmul.mubr.f32.gmra.mrb[0].mxu0 %v1502
  %v1644 = vpop.f32.mrb[0].mxu0
  %v1645 = vadd.f32 0.0, %v1644
  %v1646 = vpop.f32.mrb[0].mxu0
  %1647 = vmatprep.mubr.f32.mxu0 0.0
  %1648 = vmatmul.mubr.f32.gmra.mrb[0].mxu0 %v1505
  %v1649 = vpop.f32.mrb[0].mxu0
  %v1650 = vadd.f32 0.0, %v1649
  %v1651 = vpop.f32.mrb[0].mxu0
  %1652 = vmatprep.mubr.f32.mxu0 0.0
  %1653 = vmatmul.mubr.f32.gmra.mrb[0].mxu0 %v1508
  %v1654 = vpop.f32.mrb[0].mxu0
  %v1655 = vadd.f32 0.0, %v1654
  %v1656 = vpop.f32.mrb[0].mxu0
  %1657 = vmatprep.mubr.f32.mxu0 0.0
  %1658 = vmatmul.mubr.f32.gmra.mrb[0].mxu0 %v1511
  %v1659 = vpop.f32.mrb[0].mxu0
  %v1660 = vadd.f32 0.0, %v1659
  %v1661 = vpop.f32.mrb[0].mxu0
  %1662 = vmatprep.mubr.f32.mxu0 0.0
  %1663 = vmatmul.mubr.f32.gmra.mrb[0].mxu0 %v1514
  %v1664 = vpop.f32.mrb[0].mxu0
  %v1665 = vadd.f32 0.0, %v1664
  %v1666 = vpop.f32.mrb[0].mxu0
  %1667 = vmatprep.mubr.f32.mxu0 0.0
  %1668 = vmatmul.mubr.f32.gmra.mrb[0].mxu0 %v1517
  %v1669 = vpop.f32.mrb[0].mxu0
  %v1670 = vadd.f32 0.0, %v1669
  %v1671 = vpop.f32.mrb[0].mxu0
  %1672 = vmatprep.mubr.f32.mxu0 0.0
  %1673 = vmatmul.mubr.f32.gmra.mrb[0].mxu0 %v1520
  %v1674 = vpop.f32.mrb[0].mxu0
  %v1675 = vadd.f32 0.0, %v1674
  %v1676 = vpop.f32.mrb[0].mxu0
  %1677 = vmatprep.mubr.f32.mxu0 0.0
  %1678 = vmatmul.mubr.f32.gmra.mrb[0].mxu0 %v1523
  %v1679 = vpop.f32.mrb[0].mxu0
  %v1680 = vadd.f32 0.0, %v1679
  %v1681 = vpop.f32.mrb[0].mxu0
  %1682 = vmatprep.mubr.f32.mxu0 0.0
  %1683 = vmatmul.mubr.f32.gmra.mrb[0].mxu0 %v1526
  %v1684 = vpop.f32.mrb[0].mxu0
  %v1685 = vadd.f32 0.0, %v1684
  %v1686 = vpop.f32.mrb[0].mxu0
  %1687 = vmatprep.mubr.f32.mxu0 0.0
  %1688 = vmatmul.mubr.f32.gmra.mrb[0].mxu0 %v1529
  %v1689 = vpop.f32.mrb[0].mxu0
  %v1690 = vadd.f32 0.0, %v1689
  %v1691 = vpop.f32.mrb[0].mxu0
  %1692 = vmatprep.mubr.f32.mxu0 0.0
  %1693 = vmatmul.mubr.f32.gmra.mrb[0].mxu0 %v1532
  %v1694 = vpop.f32.mrb[0].mxu0
  %v1695 = vadd.f32 0.0, %v1694
  %v1696 = vpop.f32.mrb[0].mxu0
  %1697 = vmatprep.mubr.f32.mxu0 0.0
  %1698 = vmatmul.mubr.f32.gmra.mrb[0].mxu0 %v1535
  %v1699 = vpop.f32.mrb[0].mxu0
  %v1700 = vadd.f32 0.0, %v1699
  %v1701 = vpop.f32.mrb[0].mxu0
  %1702 = vmatprep.mubr.f32.mxu0 0.0
  %1703 = vmatmul.mubr.f32.gmra.mrb[0].mxu0 %v1538
  %v1704 = vpop.f32.mrb[0].mxu0
  %v1705 = vadd.f32 0.0, %v1704
  %v1706 = vpop.f32.mrb[0].mxu0
  %1707 = vdwg.mxu0
  %v1708 = vadd.f32 %v1303, %v1610
  %v1709 = vadd.f32 %v1304, %v1615
  %v1710 = vadd.f32 %v1305, %v1620
  %v1711 = vadd.f32 %v1306, %v1625
  %v1712 = vadd.f32 %v1307, %v1630
  %v1713 = vadd.f32 %v1308, %v1635
  %v1714 = vadd.f32 %v1309, %v1640
  %v1715 = vadd.f32 %v1310, %v1645
  %v1716 = vadd.f32 %v1311, %v1650
  %v1717 = vadd.f32 %v1312, %v1655
  %v1718 = vadd.f32 %v1313, %v1660
  %v1719 = vadd.f32 %v1314, %v1665
  %v1720 = vadd.f32 %v1315, %v1670
  %v1721 = vadd.f32 %v1316, %v1675
  %v1722 = vadd.f32 %v1317, %v1680
  %v1723 = vadd.f32 %v1318, %v1685
  %v1724 = vadd.f32 %v1319, %v1690
  %v1725 = vadd.f32 %v1320, %v1695
  %v1726 = vadd.f32 %v1321, %v1700
  %v1727 = vadd.f32 %v1322, %v1705
  %s1728 = scalar_lea.vmem %s6, 320
  %v1729 = vld [vmem:[%s1728] sm:$0xff]
  %v1730 = vld [vmem:[%s1728 + $0x8] sm:$0xff]
  %v1731 = vld [vmem:[%s1728 + $0x10] sm:$0xff]
  %v1732 = vld [vmem:[%s1728 + $0x18] sm:$0xff]
  %v1733 = vld [vmem:[%s1728 + $0x20] sm:$0xff]
  %v1734 = vld [vmem:[%s1728 + $0x28] sm:$0xff]
  %v1735 = vld [vmem:[%s1728 + $0x30] sm:$0xff]
  %v1736 = vld [vmem:[%s1728 + $0x38] sm:$0xff]
  %v1737 = vld [vmem:[%s1728 + $0x40] sm:$0xff]
  %v1738 = vld [vmem:[%s1728 + $0x48] sm:$0xff]
  %v1739 = vld [vmem:[%s1728 + $0x50] sm:$0xff]
  %v1740 = vld [vmem:[%s1728 + $0x58] sm:$0xff]
  %v1741 = vld [vmem:[%s1728 + $0x60] sm:$0xff]
  %v1742 = vld [vmem:[%s1728 + $0x68] sm:$0xff]
  %v1743 = vld [vmem:[%s1728 + $0x70] sm:$0xff]
  %v1744 = vld [vmem:[%s1728 + $0x78] sm:$0xff]
  %v1745 = vld [vmem:[%s1728 + $0x80] sm:$0xff]
  %v1746 = vld [vmem:[%s1728 + $0x88] sm:$0xff]
  %v1747 = vld [vmem:[%s1728 + $0x90] sm:$0xff]
  %v1748 = vld [vmem:[%s1728 + $0x98] sm:$0xff]
  %s1749 = scalar_lea.vmem %s5, 128
  %v1750 = vld [vmem:[%s1749] sm:$0xff]
  %v1751 = vld [vmem:[%s1749 + $0x8] sm:$0xff]
  %v1752 = vld [vmem:[%s1749 + $0x10] sm:$0xff]
  %v1753 = vld [vmem:[%s1749 + $0x18] sm:$0xff]
  %v1754 = vld [vmem:[%s1749 + $0x20] sm:$0xff]
  %v1755 = vld [vmem:[%s1749 + $0x28] sm:$0xff]
  %v1756 = vld [vmem:[%s1749 + $0x30] sm:$0xff]
  %v1757 = vld [vmem:[%s1749 + $0x38] sm:$0xff]
  %v1758 = vld [vmem:[%s1749 + $0x40] sm:$0xff]
  %v1759 = vld [vmem:[%s1749 + $0x48] sm:$0xff]
  %v1760 = vld [vmem:[%s1749 + $0x50] sm:$0xff]
  %v1761 = vld [vmem:[%s1749 + $0x58] sm:$0xff]
  %v1762 = vld [vmem:[%s1749 + $0x60] sm:$0xff]
  %v1763 = vld [vmem:[%s1749 + $0x68] sm:$0xff]
  %v1764 = vld [vmem:[%s1749 + $0x70] sm:$0xff]
  %v1765 = vld [vmem:[%s1749 + $0x78] sm:$0xff]
  %1766 = vmatprep.subr.mxu0 0.0
  %1767 = vmatpush1.msra.mxu0 %v1750
  %1768 = vmatprep.subr.mxu0 0.0
  %1769 = vmatpush1.msra.mxu0 %v1751
  %1770 = vmatprep.subr.mxu0 0.0
  %1771 = vmatpush1.msra.mxu0 %v1752
  %1772 = vmatprep.subr.mxu0 0.0
  %1773 = vmatpush1.msra.mxu0 %v1753
  %1774 = vmatprep.subr.mxu0 0.0
  %1775 = vmatpush1.msra.mxu0 %v1754
  %1776 = vmatprep.subr.mxu0 0.0
  %1777 = vmatpush1.msra.mxu0 %v1755
  %1778 = vmatprep.subr.mxu0 0.0
  %1779 = vmatpush1.msra.mxu0 %v1756
  %1780 = vmatprep.subr.mxu0 0.0
  %1781 = vmatpush1.msra.mxu0 %v1757
  %1782 = vmatprep.subr.mxu0 0.0
  %1783 = vmatpush1.msra.mxu0 %v1758
  %1784 = vmatprep.subr.mxu0 0.0
  %1785 = vmatpush1.msra.mxu0 %v1759
  %1786 = vmatprep.subr.mxu0 0.0
  %1787 = vmatpush1.msra.mxu0 %v1760
  %1788 = vmatprep.subr.mxu0 0.0
  %1789 = vmatpush1.msra.mxu0 %v1761
  %1790 = vmatprep.subr.mxu0 0.0
  %1791 = vmatpush1.msra.mxu0 %v1762
  %1792 = vmatprep.subr.mxu0 0.0
  %1793 = vmatpush1.msra.mxu0 %v1763
  %1794 = vmatprep.subr.mxu0 0.0
  %1795 = vmatpush1.msra.mxu0 %v1764
  %1796 = vmatprep.subr.mxu0 0.0
  %1797 = vmatpush1.msra.mxu0 %v1765
  %1798 = vmatprep.subr.mxu0 0.0
  %1799 = vmatpush1.msra.mxu0 0.0
  %1800 = vmatprep.subr.mxu0 0.0
  %1801 = vmatpush1.msra.mxu0 0.0
  %1802 = vmatprep.subr.mxu0 0.0
  %1803 = vmatpush1.msra.mxu0 0.0
  %1804 = vmatprep.subr.mxu0 0.0
  %1805 = vmatpush1.msra.mxu0 0.0
  %1806 = vmatprep.subr.mxu0 0.0
  %1807 = vmatpush1.msra.mxu0 0.0
  %1808 = vmatprep.subr.mxu0 0.0
  %1809 = vmatpush1.msra.mxu0 0.0
  %1810 = vmatprep.subr.mxu0 0.0
  %1811 = vmatpush1.msra.mxu0 0.0
  %1812 = vmatprep.subr.mxu0 0.0
  %1813 = vmatpush1.msra.mxu0 0.0
  %1814 = vmatprep.subr.mxu0 0.0
  %1815 = vmatpush1.msra.mxu0 0.0
  %1816 = vmatprep.subr.mxu0 0.0
  %1817 = vmatpush1.msra.mxu0 0.0
  %1818 = vmatprep.subr.mxu0 0.0
  %1819 = vmatpush1.msra.mxu0 0.0
  %1820 = vmatprep.subr.mxu0 0.0
  %1821 = vmatpush1.msra.mxu0 0.0
  %1822 = vmatprep.subr.mxu0 0.0
  %1823 = vmatpush1.msra.mxu0 0.0
  %1824 = vmatprep.subr.mxu0 0.0
  %1825 = vmatpush1.msra.mxu0 0.0
  %1826 = vmatprep.subr.mxu0 0.0
  %1827 = vmatpush1.msra.mxu0 0.0
  %1828 = vmatprep.subr.mxu0 0.0
  %1829 = vmatpush1.msra.mxu0 0.0
  %1830 = vmatprep.mubr.f32.mxu0 0.0
  %1831 = vmatmul.mubr.f32.gmra.mrb[0].mxu0 %v880
  %v1832 = vpop.f32.mrb[0].mxu0
  %v1833 = vadd.f32 0.0, %v1832
  %v1834 = vpop.f32.mrb[0].mxu0
  %1835 = vmatprep.mubr.f32.mxu0 0.0
  %1836 = vmatmul.mubr.f32.gmra.mrb[0].mxu0 %v885
  %v1837 = vpop.f32.mrb[0].mxu0
  %v1838 = vadd.f32 0.0, %v1837
  %v1839 = vpop.f32.mrb[0].mxu0
  %1840 = vmatprep.mubr.f32.mxu0 0.0
  %1841 = vmatmul.mubr.f32.gmra.mrb[0].mxu0 %v890
  %v1842 = vpop.f32.mrb[0].mxu0
  %v1843 = vadd.f32 0.0, %v1842
  %v1844 = vpop.f32.mrb[0].mxu0
  %1845 = vmatprep.mubr.f32.mxu0 0.0
  %1846 = vmatmul.mubr.f32.gmra.mrb[0].mxu0 %v895
  %v1847 = vpop.f32.mrb[0].mxu0
  %v1848 = vadd.f32 0.0, %v1847
  %v1849 = vpop.f32.mrb[0].mxu0
  %1850 = vmatprep.mubr.f32.mxu0 0.0
  %1851 = vmatmul.mubr.f32.gmra.mrb[0].mxu0 %v900
  %v1852 = vpop.f32.mrb[0].mxu0
  %v1853 = vadd.f32 0.0, %v1852
  %v1854 = vpop.f32.mrb[0].mxu0
  %1855 = vmatprep.mubr.f32.mxu0 0.0
  %1856 = vmatmul.mubr.f32.gmra.mrb[0].mxu0 %v905
  %v1857 = vpop.f32.mrb[0].mxu0
  %v1858 = vadd.f32 0.0, %v1857
  %v1859 = vpop.f32.mrb[0].mxu0
  %1860 = vmatprep.mubr.f32.mxu0 0.0
  %1861 = vmatmul.mubr.f32.gmra.mrb[0].mxu0 %v910
  %v1862 = vpop.f32.mrb[0].mxu0
  %v1863 = vadd.f32 0.0, %v1862
  %v1864 = vpop.f32.mrb[0].mxu0
  %1865 = vmatprep.mubr.f32.mxu0 0.0
  %1866 = vmatmul.mubr.f32.gmra.mrb[0].mxu0 %v915
  %v1867 = vpop.f32.mrb[0].mxu0
  %v1868 = vadd.f32 0.0, %v1867
  %v1869 = vpop.f32.mrb[0].mxu0
  %1870 = vmatprep.mubr.f32.mxu0 0.0
  %1871 = vmatmul.mubr.f32.gmra.mrb[0].mxu0 %v920
  %v1872 = vpop.f32.mrb[0].mxu0
  %v1873 = vadd.f32 0.0, %v1872
  %v1874 = vpop.f32.mrb[0].mxu0
  %1875 = vmatprep.mubr.f32.mxu0 0.0
  %1876 = vmatmul.mubr.f32.gmra.mrb[0].mxu0 %v925
  %v1877 = vpop.f32.mrb[0].mxu0
  %v1878 = vadd.f32 0.0, %v1877
  %v1879 = vpop.f32.mrb[0].mxu0
  %1880 = vmatprep.mubr.f32.mxu0 0.0
  %1881 = vmatmul.mubr.f32.gmra.mrb[0].mxu0 %v930
  %v1882 = vpop.f32.mrb[0].mxu0
  %v1883 = vadd.f32 0.0, %v1882
  %v1884 = vpop.f32.mrb[0].mxu0
  %1885 = vdwg.mxu0
  %v1887 = vsel %vm973, %v1729, 0
  %v1890 = vsel %vm973, %v1730, 0
  %v1893 = vsel %vm973, %v1731, 0
  %v1896 = vsel %vm973, %v1732, 0
  %v1899 = vsel %vm973, %v1733, 0
  %v1902 = vsel %vm973, %v1734, 0
  %v1905 = vsel %vm973, %v1735, 0
  %v1908 = vsel %vm973, %v1736, 0
  %v1911 = vsel %vm973, %v1737, 0
  %v1914 = vsel %vm973, %v1738, 0
  %v1917 = vsel %vm973, %v1739, 0
  %v1920 = vsel %vm973, %v1740, 0
  %v1923 = vsel %vm973, %v1741, 0
  %v1926 = vsel %vm973, %v1742, 0
  %v1929 = vsel %vm973, %v1743, 0
  %v1932 = vsel %vm973, %v1744, 0
  %v1935 = vsel %vm973, %v1745, 0
  %v1938 = vsel %vm973, %v1746, 0
  %v1941 = vsel %vm973, %v1747, 0
  %v1944 = vsel %vm973, %v1748, 0
  %v1947 = vsel %vm1034, %v1883, 0
  %1949 = vmatprep.subr.mxu0 0.0
  %1950 = vmatpush1.msra.mxu0 %v1833
  %1951 = vmatprep.subr.mxu0 0.0
  %1952 = vmatpush1.msra.mxu0 %v1838
  %1953 = vmatprep.subr.mxu0 0.0
  %1954 = vmatpush1.msra.mxu0 %v1843
  %1955 = vmatprep.subr.mxu0 0.0
  %1956 = vmatpush1.msra.mxu0 %v1848
  %1957 = vmatprep.subr.mxu0 0.0
  %1958 = vmatpush1.msra.mxu0 %v1853
  %1959 = vmatprep.subr.mxu0 0.0
  %1960 = vmatpush1.msra.mxu0 %v1858
  %1961 = vmatprep.subr.mxu0 0.0
  %1962 = vmatpush1.msra.mxu0 %v1863
  %1963 = vmatprep.subr.mxu0 0.0
  %1964 = vmatpush1.msra.mxu0 %v1868
  %1965 = vmatprep.subr.mxu0 0.0
  %1966 = vmatpush1.msra.mxu0 %v1873
  %1967 = vmatprep.subr.mxu0 0.0
  %1968 = vmatpush1.msra.mxu0 %v1878
  %1969 = vmatprep.subr.mxu0 0.0
  %1970 = vmatpush1.msra.mxu0 %v1947
  %1971 = vmatprep.subr.mxu0 0.0
  %1972 = vmatpush1.msra.mxu0 0.0
  %1973 = vmatprep.subr.mxu0 0.0
  %1974 = vmatpush1.msra.mxu0 0.0
  %1975 = vmatprep.subr.mxu0 0.0
  %1976 = vmatpush1.msra.mxu0 0.0
  %1977 = vmatprep.subr.mxu0 0.0
  %1978 = vmatpush1.msra.mxu0 0.0
  %1979 = vmatprep.subr.mxu0 0.0
  %1980 = vmatpush1.msra.mxu0 0.0
  %1981 = vmatprep.subr.mxu0 0.0
  %1982 = vmatpush1.msra.mxu0 0.0
  %1983 = vmatprep.subr.mxu0 0.0
  %1984 = vmatpush1.msra.mxu0 0.0
  %1985 = vmatprep.subr.mxu0 0.0
  %1986 = vmatpush1.msra.mxu0 0.0
  %1987 = vmatprep.subr.mxu0 0.0
  %1988 = vmatpush1.msra.mxu0 0.0
  %1989 = vmatprep.subr.mxu0 0.0
  %1990 = vmatpush1.msra.mxu0 0.0
  %1991 = vmatprep.subr.mxu0 0.0
  %1992 = vmatpush1.msra.mxu0 0.0
  %1993 = vmatprep.subr.mxu0 0.0
  %1994 = vmatpush1.msra.mxu0 0.0
  %1995 = vmatprep.subr.mxu0 0.0
  %1996 = vmatpush1.msra.mxu0 0.0
  %1997 = vmatprep.subr.mxu0 0.0
  %1998 = vmatpush1.msra.mxu0 0.0
  %1999 = vmatprep.subr.mxu0 0.0
  %2000 = vmatpush1.msra.mxu0 0.0
  %2001 = vmatprep.subr.mxu0 0.0
  %2002 = vmatpush1.msra.mxu0 0.0
  %2003 = vmatprep.subr.mxu0 0.0
  %2004 = vmatpush1.msra.mxu0 0.0
  %2005 = vmatprep.subr.mxu0 0.0
  %2006 = vmatpush1.msra.mxu0 0.0
  %2007 = vmatprep.subr.mxu0 0.0
  %2008 = vmatpush1.msra.mxu0 0.0
  %2009 = vmatprep.subr.mxu0 0.0
  %2010 = vmatpush1.msra.mxu0 0.0
  %2011 = vmatprep.subr.mxu0 0.0
  %2012 = vmatpush1.msra.mxu0 0.0
  %2013 = vmatprep.mubr.f32.mxu0 0.0
  %2014 = vmatmul.mubr.f32.gmra.mrb[0].mxu0 %v1887
  %v2015 = vpop.f32.mrb[0].mxu0
  %v2016 = vadd.f32 0.0, %v2015
  %v2017 = vpop.f32.mrb[0].mxu0
  %2018 = vmatprep.mubr.f32.mxu0 0.0
  %2019 = vmatmul.mubr.f32.gmra.mrb[0].mxu0 %v1890
  %v2020 = vpop.f32.mrb[0].mxu0
  %v2021 = vadd.f32 0.0, %v2020
  %v2022 = vpop.f32.mrb[0].mxu0
  %2023 = vmatprep.mubr.f32.mxu0 0.0
  %2024 = vmatmul.mubr.f32.gmra.mrb[0].mxu0 %v1893
  %v2025 = vpop.f32.mrb[0].mxu0
  %v2026 = vadd.f32 0.0, %v2025
  %v2027 = vpop.f32.mrb[0].mxu0
  %2028 = vmatprep.mubr.f32.mxu0 0.0
  %2029 = vmatmul.mubr.f32.gmra.mrb[0].mxu0 %v1896
  %v2030 = vpop.f32.mrb[0].mxu0
  %v2031 = vadd.f32 0.0, %v2030
  %v2032 = vpop.f32.mrb[0].mxu0
  %2033 = vmatprep.mubr.f32.mxu0 0.0
  %2034 = vmatmul.mubr.f32.gmra.mrb[0].mxu0 %v1899
  %v2035 = vpop.f32.mrb[0].mxu0
  %v2036 = vadd.f32 0.0, %v2035
  %v2037 = vpop.f32.mrb[0].mxu0
  %2038 = vmatprep.mubr.f32.mxu0 0.0
  %2039 = vmatmul.mubr.f32.gmra.mrb[0].mxu0 %v1902
  %v2040 = vpop.f32.mrb[0].mxu0
  %v2041 = vadd.f32 0.0, %v2040
  %v2042 = vpop.f32.mrb[0].mxu0
  %2043 = vmatprep.mubr.f32.mxu0 0.0
  %2044 = vmatmul.mubr.f32.gmra.mrb[0].mxu0 %v1905
  %v2045 = vpop.f32.mrb[0].mxu0
  %v2046 = vadd.f32 0.0, %v2045
  %v2047 = vpop.f32.mrb[0].mxu0
  %2048 = vmatprep.mubr.f32.mxu0 0.0
  %2049 = vmatmul.mubr.f32.gmra.mrb[0].mxu0 %v1908
  %v2050 = vpop.f32.mrb[0].mxu0
  %v2051 = vadd.f32 0.0, %v2050
  %v2052 = vpop.f32.mrb[0].mxu0
  %2053 = vmatprep.mubr.f32.mxu0 0.0
  %2054 = vmatmul.mubr.f32.gmra.mrb[0].mxu0 %v1911
  %v2055 = vpop.f32.mrb[0].mxu0
  %v2056 = vadd.f32 0.0, %v2055
  %v2057 = vpop.f32.mrb[0].mxu0
  %2058 = vmatprep.mubr.f32.mxu0 0.0
  %2059 = vmatmul.mubr.f32.gmra.mrb[0].mxu0 %v1914
  %v2060 = vpop.f32.mrb[0].mxu0
  %v2061 = vadd.f32 0.0, %v2060
  %v2062 = vpop.f32.mrb[0].mxu0
  %2063 = vmatprep.mubr.f32.mxu0 0.0
  %2064 = vmatmul.mubr.f32.gmra.mrb[0].mxu0 %v1917
  %v2065 = vpop.f32.mrb[0].mxu0
  %v2066 = vadd.f32 0.0, %v2065
  %v2067 = vpop.f32.mrb[0].mxu0
  %2068 = vmatprep.mubr.f32.mxu0 0.0
  %2069 = vmatmul.mubr.f32.gmra.mrb[0].mxu0 %v1920
  %v2070 = vpop.f32.mrb[0].mxu0
  %v2071 = vadd.f32 0.0, %v2070
  %v2072 = vpop.f32.mrb[0].mxu0
  %2073 = vmatprep.mubr.f32.mxu0 0.0
  %2074 = vmatmul.mubr.f32.gmra.mrb[0].mxu0 %v1923
  %v2075 = vpop.f32.mrb[0].mxu0
  %v2076 = vadd.f32 0.0, %v2075
  %v2077 = vpop.f32.mrb[0].mxu0
  %2078 = vmatprep.mubr.f32.mxu0 0.0
  %2079 = vmatmul.mubr.f32.gmra.mrb[0].mxu0 %v1926
  %v2080 = vpop.f32.mrb[0].mxu0
  %v2081 = vadd.f32 0.0, %v2080
  %v2082 = vpop.f32.mrb[0].mxu0
  %2083 = vmatprep.mubr.f32.mxu0 0.0
  %2084 = vmatmul.mubr.f32.gmra.mrb[0].mxu0 %v1929
  %v2085 = vpop.f32.mrb[0].mxu0
  %v2086 = vadd.f32 0.0, %v2085
  %v2087 = vpop.f32.mrb[0].mxu0
  %2088 = vmatprep.mubr.f32.mxu0 0.0
  %2089 = vmatmul.mubr.f32.gmra.mrb[0].mxu0 %v1932
  %v2090 = vpop.f32.mrb[0].mxu0
  %v2091 = vadd.f32 0.0, %v2090
  %v2092 = vpop.f32.mrb[0].mxu0
  %2093 = vmatprep.mubr.f32.mxu0 0.0
  %2094 = vmatmul.mubr.f32.gmra.mrb[0].mxu0 %v1935
  %v2095 = vpop.f32.mrb[0].mxu0
  %v2096 = vadd.f32 0.0, %v2095
  %v2097 = vpop.f32.mrb[0].mxu0
  %2098 = vmatprep.mubr.f32.mxu0 0.0
  %2099 = vmatmul.mubr.f32.gmra.mrb[0].mxu0 %v1938
  %v2100 = vpop.f32.mrb[0].mxu0
  %v2101 = vadd.f32 0.0, %v2100
  %v2102 = vpop.f32.mrb[0].mxu0
  %2103 = vmatprep.mubr.f32.mxu0 0.0
  %2104 = vmatmul.mubr.f32.gmra.mrb[0].mxu0 %v1941
  %v2105 = vpop.f32.mrb[0].mxu0
  %v2106 = vadd.f32 0.0, %v2105
  %v2107 = vpop.f32.mrb[0].mxu0
  %2108 = vmatprep.mubr.f32.mxu0 0.0
  %2109 = vmatmul.mubr.f32.gmra.mrb[0].mxu0 %v1944
  %v2110 = vpop.f32.mrb[0].mxu0
  %v2111 = vadd.f32 0.0, %v2110
  %v2112 = vpop.f32.mrb[0].mxu0
  %2113 = vdwg.mxu0
  %v2114 = vadd.f32 %v1708, %v2016
  %v2115 = vadd.f32 %v1709, %v2021
  %v2116 = vadd.f32 %v1710, %v2026
  %v2117 = vadd.f32 %v1711, %v2031
  %v2118 = vadd.f32 %v1712, %v2036
  %v2119 = vadd.f32 %v1713, %v2041
  %v2120 = vadd.f32 %v1714, %v2046
  %v2121 = vadd.f32 %v1715, %v2051
  %v2122 = vadd.f32 %v1716, %v2056
  %v2123 = vadd.f32 %v1717, %v2061
  %v2124 = vadd.f32 %v1718, %v2066
  %v2125 = vadd.f32 %v1719, %v2071
  %v2126 = vadd.f32 %v1720, %v2076
  %v2127 = vadd.f32 %v1721, %v2081
  %v2128 = vadd.f32 %v1722, %v2086
  %v2129 = vadd.f32 %v1723, %v2091
  %v2130 = vadd.f32 %v1724, %v2096
  %v2131 = vadd.f32 %v1725, %v2101
  %v2132 = vadd.f32 %v1726, %v2106
  %v2133 = vadd.f32 %v1727, %v2111
  %s2134 = scalar_lea.vmem %s6, 480
  %v2135 = vld [vmem:[%s2134] sm:$0xff]
  %v2136 = vld [vmem:[%s2134 + $0x8] sm:$0xff]
  %v2137 = vld [vmem:[%s2134 + $0x10] sm:$0xff]
  %v2138 = vld [vmem:[%s2134 + $0x18] sm:$0xff]
  %v2139 = vld [vmem:[%s2134 + $0x20] sm:$0xff]
  %v2140 = vld [vmem:[%s2134 + $0x28] sm:$0xff]
  %v2141 = vld [vmem:[%s2134 + $0x30] sm:$0xff]
  %v2142 = vld [vmem:[%s2134 + $0x38] sm:$0xff]
  %v2143 = vld [vmem:[%s2134 + $0x40] sm:$0xff]
  %v2144 = vld [vmem:[%s2134 + $0x48] sm:$0xff]
  %v2145 = vld [vmem:[%s2134 + $0x50] sm:$0xff]
  %v2146 = vld [vmem:[%s2134 + $0x58] sm:$0xff]
  %v2147 = vld [vmem:[%s2134 + $0x60] sm:$0xff]
  %v2148 = vld [vmem:[%s2134 + $0x68] sm:$0xff]
  %v2149 = vld [vmem:[%s2134 + $0x70] sm:$0xff]
  %v2150 = vld [vmem:[%s2134 + $0x78] sm:$0xff]
  %v2151 = vld [vmem:[%s2134 + $0x80] sm:$0xff]
  %v2152 = vld [vmem:[%s2134 + $0x88] sm:$0xff]
  %v2153 = vld [vmem:[%s2134 + $0x90] sm:$0xff]
  %v2154 = vld [vmem:[%s2134 + $0x98] sm:$0xff]
  %s2155 = scalar_lea.vmem %s5, 256
  %v2156 = vld [vmem:[%s2155] sm:$0xff]
  %v2157 = vld [vmem:[%s2155 + $0x8] sm:$0xff]
  %v2158 = vld [vmem:[%s2155 + $0x10] sm:$0xff]
  %v2159 = vld [vmem:[%s2155 + $0x18] sm:$0xff]
  %v2160 = vld [vmem:[%s2155 + $0x20] sm:$0xff]
  %v2161 = vld [vmem:[%s2155 + $0x28] sm:$0xff]
  %v2162 = vld [vmem:[%s2155 + $0x30] sm:$0xff]
  %v2163 = vld [vmem:[%s2155 + $0x38] sm:$0xff]
  %v2164 = vld [vmem:[%s2155 + $0x40] sm:$0xff]
  %v2165 = vld [vmem:[%s2155 + $0x48] sm:$0xff]
  %v2166 = vld [vmem:[%s2155 + $0x50] sm:$0xff]
  %v2167 = vld [vmem:[%s2155 + $0x58] sm:$0xff]
  %v2168 = vld [vmem:[%s2155 + $0x60] sm:$0xff]
  %v2169 = vld [vmem:[%s2155 + $0x68] sm:$0xff]
  %v2170 = vld [vmem:[%s2155 + $0x70] sm:$0xff]
  %v2171 = vld [vmem:[%s2155 + $0x78] sm:$0xff]
  %2172 = vmatprep.subr.mxu0 0.0
  %2173 = vmatpush1.msra.mxu0 %v2156
  %2174 = vmatprep.subr.mxu0 0.0
  %2175 = vmatpush1.msra.mxu0 %v2157
  %2176 = vmatprep.subr.mxu0 0.0
  %2177 = vmatpush1.msra.mxu0 %v2158
  %2178 = vmatprep.subr.mxu0 0.0
  %2179 = vmatpush1.msra.mxu0 %v2159
  %2180 = vmatprep.subr.mxu0 0.0
  %2181 = vmatpush1.msra.mxu0 %v2160
  %2182 = vmatprep.subr.mxu0 0.0
  %2183 = vmatpush1.msra.mxu0 %v2161
  %2184 = vmatprep.subr.mxu0 0.0
  %2185 = vmatpush1.msra.mxu0 %v2162
  %2186 = vmatprep.subr.mxu0 0.0
  %2187 = vmatpush1.msra.mxu0 %v2163
  %2188 = vmatprep.subr.mxu0 0.0
  %2189 = vmatpush1.msra.mxu0 %v2164
  %2190 = vmatprep.subr.mxu0 0.0
  %2191 = vmatpush1.msra.mxu0 %v2165
  %2192 = vmatprep.subr.mxu0 0.0
  %2193 = vmatpush1.msra.mxu0 %v2166
  %2194 = vmatprep.subr.mxu0 0.0
  %2195 = vmatpush1.msra.mxu0 %v2167
  %2196 = vmatprep.subr.mxu0 0.0
  %2197 = vmatpush1.msra.mxu0 %v2168
  %2198 = vmatprep.subr.mxu0 0.0
  %2199 = vmatpush1.msra.mxu0 %v2169
  %2200 = vmatprep.subr.mxu0 0.0
  %2201 = vmatpush1.msra.mxu0 %v2170
  %2202 = vmatprep.subr.mxu0 0.0
  %2203 = vmatpush1.msra.mxu0 %v2171
  %2204 = vmatprep.subr.mxu0 0.0
  %2205 = vmatpush1.msra.mxu0 0.0
  %2206 = vmatprep.subr.mxu0 0.0
  %2207 = vmatpush1.msra.mxu0 0.0
  %2208 = vmatprep.subr.mxu0 0.0
  %2209 = vmatpush1.msra.mxu0 0.0
  %2210 = vmatprep.subr.mxu0 0.0
  %2211 = vmatpush1.msra.mxu0 0.0
  %2212 = vmatprep.subr.mxu0 0.0
  %2213 = vmatpush1.msra.mxu0 0.0
  %2214 = vmatprep.subr.mxu0 0.0
  %2215 = vmatpush1.msra.mxu0 0.0
  %2216 = vmatprep.subr.mxu0 0.0
  %2217 = vmatpush1.msra.mxu0 0.0
  %2218 = vmatprep.subr.mxu0 0.0
  %2219 = vmatpush1.msra.mxu0 0.0
  %2220 = vmatprep.subr.mxu0 0.0
  %2221 = vmatpush1.msra.mxu0 0.0
  %2222 = vmatprep.subr.mxu0 0.0
  %2223 = vmatpush1.msra.mxu0 0.0
  %2224 = vmatprep.subr.mxu0 0.0
  %2225 = vmatpush1.msra.mxu0 0.0
  %2226 = vmatprep.subr.mxu0 0.0
  %2227 = vmatpush1.msra.mxu0 0.0
  %2228 = vmatprep.subr.mxu0 0.0
  %2229 = vmatpush1.msra.mxu0 0.0
  %2230 = vmatprep.subr.mxu0 0.0
  %2231 = vmatpush1.msra.mxu0 0.0
  %2232 = vmatprep.subr.mxu0 0.0
  %2233 = vmatpush1.msra.mxu0 0.0
  %2234 = vmatprep.subr.mxu0 0.0
  %2235 = vmatpush1.msra.mxu0 0.0
  %2236 = vmatprep.mubr.f32.mxu0 0.0
  %2237 = vmatmul.mubr.f32.gmra.mrb[0].mxu0 %v880
  %v2238 = vpop.f32.mrb[0].mxu0
  %v2239 = vadd.f32 0.0, %v2238
  %v2240 = vpop.f32.mrb[0].mxu0
  %2241 = vmatprep.mubr.f32.mxu0 0.0
  %2242 = vmatmul.mubr.f32.gmra.mrb[0].mxu0 %v885
  %v2243 = vpop.f32.mrb[0].mxu0
  %v2244 = vadd.f32 0.0, %v2243
  %v2245 = vpop.f32.mrb[0].mxu0
  %2246 = vmatprep.mubr.f32.mxu0 0.0
  %2247 = vmatmul.mubr.f32.gmra.mrb[0].mxu0 %v890
  %v2248 = vpop.f32.mrb[0].mxu0
  %v2249 = vadd.f32 0.0, %v2248
  %v2250 = vpop.f32.mrb[0].mxu0
  %2251 = vmatprep.mubr.f32.mxu0 0.0
  %2252 = vmatmul.mubr.f32.gmra.mrb[0].mxu0 %v895
  %v2253 = vpop.f32.mrb[0].mxu0
  %v2254 = vadd.f32 0.0, %v2253
  %v2255 = vpop.f32.mrb[0].mxu0
  %2256 = vmatprep.mubr.f32.mxu0 0.0
  %2257 = vmatmul.mubr.f32.gmra.mrb[0].mxu0 %v900
  %v2258 = vpop.f32.mrb[0].mxu0
  %v2259 = vadd.f32 0.0, %v2258
  %v2260 = vpop.f32.mrb[0].mxu0
  %2261 = vmatprep.mubr.f32.mxu0 0.0
  %2262 = vmatmul.mubr.f32.gmra.mrb[0].mxu0 %v905
  %v2263 = vpop.f32.mrb[0].mxu0
  %v2264 = vadd.f32 0.0, %v2263
  %v2265 = vpop.f32.mrb[0].mxu0
  %2266 = vmatprep.mubr.f32.mxu0 0.0
  %2267 = vmatmul.mubr.f32.gmra.mrb[0].mxu0 %v910
  %v2268 = vpop.f32.mrb[0].mxu0
  %v2269 = vadd.f32 0.0, %v2268
  %v2270 = vpop.f32.mrb[0].mxu0
  %2271 = vmatprep.mubr.f32.mxu0 0.0
  %2272 = vmatmul.mubr.f32.gmra.mrb[0].mxu0 %v915
  %v2273 = vpop.f32.mrb[0].mxu0
  %v2274 = vadd.f32 0.0, %v2273
  %v2275 = vpop.f32.mrb[0].mxu0
  %2276 = vmatprep.mubr.f32.mxu0 0.0
  %2277 = vmatmul.mubr.f32.gmra.mrb[0].mxu0 %v920
  %v2278 = vpop.f32.mrb[0].mxu0
  %v2279 = vadd.f32 0.0, %v2278
  %v2280 = vpop.f32.mrb[0].mxu0
  %2281 = vmatprep.mubr.f32.mxu0 0.0
  %2282 = vmatmul.mubr.f32.gmra.mrb[0].mxu0 %v925
  %v2283 = vpop.f32.mrb[0].mxu0
  %v2284 = vadd.f32 0.0, %v2283
  %v2285 = vpop.f32.mrb[0].mxu0
  %2286 = vmatprep.mubr.f32.mxu0 0.0
  %2287 = vmatmul.mubr.f32.gmra.mrb[0].mxu0 %v930
  %v2288 = vpop.f32.mrb[0].mxu0
  %v2289 = vadd.f32 0.0, %v2288
  %v2290 = vpop.f32.mrb[0].mxu0
  %2291 = vdwg.mxu0
  %v2293 = vsel %vm973, %v2135, 0
  %v2296 = vsel %vm973, %v2136, 0
  %v2299 = vsel %vm973, %v2137, 0
  %v2302 = vsel %vm973, %v2138, 0
  %v2305 = vsel %vm973, %v2139, 0
  %v2308 = vsel %vm973, %v2140, 0
  %v2311 = vsel %vm973, %v2141, 0
  %v2314 = vsel %vm973, %v2142, 0
  %v2317 = vsel %vm973, %v2143, 0
  %v2320 = vsel %vm973, %v2144, 0
  %v2323 = vsel %vm973, %v2145, 0
  %v2326 = vsel %vm973, %v2146, 0
  %v2329 = vsel %vm973, %v2147, 0
  %v2332 = vsel %vm973, %v2148, 0
  %v2335 = vsel %vm973, %v2149, 0
  %v2338 = vsel %vm973, %v2150, 0
  %v2341 = vsel %vm973, %v2151, 0
  %v2344 = vsel %vm973, %v2152, 0
  %v2347 = vsel %vm973, %v2153, 0
  %v2350 = vsel %vm973, %v2154, 0
  %v2353 = vsel %vm1034, %v2289, 0
  %2355 = vmatprep.subr.mxu0 0.0
  %2356 = vmatpush1.msra.mxu0 %v2239
  %2357 = vmatprep.subr.mxu0 0.0
  %2358 = vmatpush1.msra.mxu0 %v2244
  %2359 = vmatprep.subr.mxu0 0.0
  %2360 = vmatpush1.msra.mxu0 %v2249
  %2361 = vmatprep.subr.mxu0 0.0
  %2362 = vmatpush1.msra.mxu0 %v2254
  %2363 = vmatprep.subr.mxu0 0.0
  %2364 = vmatpush1.msra.mxu0 %v2259
  %2365 = vmatprep.subr.mxu0 0.0
  %2366 = vmatpush1.msra.mxu0 %v2264
  %2367 = vmatprep.subr.mxu0 0.0
  %2368 = vmatpush1.msra.mxu0 %v2269
  %2369 = vmatprep.subr.mxu0 0.0
  %2370 = vmatpush1.msra.mxu0 %v2274
  %2371 = vmatprep.subr.mxu0 0.0
  %2372 = vmatpush1.msra.mxu0 %v2279
  %2373 = vmatprep.subr.mxu0 0.0
  %2374 = vmatpush1.msra.mxu0 %v2284
  %2375 = vmatprep.subr.mxu0 0.0
  %2376 = vmatpush1.msra.mxu0 %v2353
  %2377 = vmatprep.subr.mxu0 0.0
  %2378 = vmatpush1.msra.mxu0 0.0
  %2379 = vmatprep.subr.mxu0 0.0
  %2380 = vmatpush1.msra.mxu0 0.0
  %2381 = vmatprep.subr.mxu0 0.0
  %2382 = vmatpush1.msra.mxu0 0.0
  %2383 = vmatprep.subr.mxu0 0.0
  %2384 = vmatpush1.msra.mxu0 0.0
  %2385 = vmatprep.subr.mxu0 0.0
  %2386 = vmatpush1.msra.mxu0 0.0
  %2387 = vmatprep.subr.mxu0 0.0
  %2388 = vmatpush1.msra.mxu0 0.0
  %2389 = vmatprep.subr.mxu0 0.0
  %2390 = vmatpush1.msra.mxu0 0.0
  %2391 = vmatprep.subr.mxu0 0.0
  %2392 = vmatpush1.msra.mxu0 0.0
  %2393 = vmatprep.subr.mxu0 0.0
  %2394 = vmatpush1.msra.mxu0 0.0
  %2395 = vmatprep.subr.mxu0 0.0
  %2396 = vmatpush1.msra.mxu0 0.0
  %2397 = vmatprep.subr.mxu0 0.0
  %2398 = vmatpush1.msra.mxu0 0.0
  %2399 = vmatprep.subr.mxu0 0.0
  %2400 = vmatpush1.msra.mxu0 0.0
  %2401 = vmatprep.subr.mxu0 0.0
  %2402 = vmatpush1.msra.mxu0 0.0
  %2403 = vmatprep.subr.mxu0 0.0
  %2404 = vmatpush1.msra.mxu0 0.0
  %2405 = vmatprep.subr.mxu0 0.0
  %2406 = vmatpush1.msra.mxu0 0.0
  %2407 = vmatprep.subr.mxu0 0.0
  %2408 = vmatpush1.msra.mxu0 0.0
  %2409 = vmatprep.subr.mxu0 0.0
  %2410 = vmatpush1.msra.mxu0 0.0
  %2411 = vmatprep.subr.mxu0 0.0
  %2412 = vmatpush1.msra.mxu0 0.0
  %2413 = vmatprep.subr.mxu0 0.0
  %2414 = vmatpush1.msra.mxu0 0.0
  %2415 = vmatprep.subr.mxu0 0.0
  %2416 = vmatpush1.msra.mxu0 0.0
  %2417 = vmatprep.subr.mxu0 0.0
  %2418 = vmatpush1.msra.mxu0 0.0
  %2419 = vmatprep.mubr.f32.mxu0 0.0
  %2420 = vmatmul.mubr.f32.gmra.mrb[0].mxu0 %v2293
  %v2421 = vpop.f32.mrb[0].mxu0
  %v2422 = vadd.f32 0.0, %v2421
  %v2423 = vpop.f32.mrb[0].mxu0
  %2424 = vmatprep.mubr.f32.mxu0 0.0
  %2425 = vmatmul.mubr.f32.gmra.mrb[0].mxu0 %v2296
  %v2426 = vpop.f32.mrb[0].mxu0
  %v2427 = vadd.f32 0.0, %v2426
  %v2428 = vpop.f32.mrb[0].mxu0
  %2429 = vmatprep.mubr.f32.mxu0 0.0
  %2430 = vmatmul.mubr.f32.gmra.mrb[0].mxu0 %v2299
  %v2431 = vpop.f32.mrb[0].mxu0
  %v2432 = vadd.f32 0.0, %v2431
  %v2433 = vpop.f32.mrb[0].mxu0
  %2434 = vmatprep.mubr.f32.mxu0 0.0
  %2435 = vmatmul.mubr.f32.gmra.mrb[0].mxu0 %v2302
  %v2436 = vpop.f32.mrb[0].mxu0
  %v2437 = vadd.f32 0.0, %v2436
  %v2438 = vpop.f32.mrb[0].mxu0
  %2439 = vmatprep.mubr.f32.mxu0 0.0
  %2440 = vmatmul.mubr.f32.gmra.mrb[0].mxu0 %v2305
  %v2441 = vpop.f32.mrb[0].mxu0
  %v2442 = vadd.f32 0.0, %v2441
  %v2443 = vpop.f32.mrb[0].mxu0
  %2444 = vmatprep.mubr.f32.mxu0 0.0
  %2445 = vmatmul.mubr.f32.gmra.mrb[0].mxu0 %v2308
  %v2446 = vpop.f32.mrb[0].mxu0
  %v2447 = vadd.f32 0.0, %v2446
  %v2448 = vpop.f32.mrb[0].mxu0
  %2449 = vmatprep.mubr.f32.mxu0 0.0
  %2450 = vmatmul.mubr.f32.gmra.mrb[0].mxu0 %v2311
  %v2451 = vpop.f32.mrb[0].mxu0
  %v2452 = vadd.f32 0.0, %v2451
  %v2453 = vpop.f32.mrb[0].mxu0
  %2454 = vmatprep.mubr.f32.mxu0 0.0
  %2455 = vmatmul.mubr.f32.gmra.mrb[0].mxu0 %v2314
  %v2456 = vpop.f32.mrb[0].mxu0
  %v2457 = vadd.f32 0.0, %v2456
  %v2458 = vpop.f32.mrb[0].mxu0
  %2459 = vmatprep.mubr.f32.mxu0 0.0
  %2460 = vmatmul.mubr.f32.gmra.mrb[0].mxu0 %v2317
  %v2461 = vpop.f32.mrb[0].mxu0
  %v2462 = vadd.f32 0.0, %v2461
  %v2463 = vpop.f32.mrb[0].mxu0
  %2464 = vmatprep.mubr.f32.mxu0 0.0
  %2465 = vmatmul.mubr.f32.gmra.mrb[0].mxu0 %v2320
  %v2466 = vpop.f32.mrb[0].mxu0
  %v2467 = vadd.f32 0.0, %v2466
  %v2468 = vpop.f32.mrb[0].mxu0
  %2469 = vmatprep.mubr.f32.mxu0 0.0
  %2470 = vmatmul.mubr.f32.gmra.mrb[0].mxu0 %v2323
  %v2471 = vpop.f32.mrb[0].mxu0
  %v2472 = vadd.f32 0.0, %v2471
  %v2473 = vpop.f32.mrb[0].mxu0
  %2474 = vmatprep.mubr.f32.mxu0 0.0
  %2475 = vmatmul.mubr.f32.gmra.mrb[0].mxu0 %v2326
  %v2476 = vpop.f32.mrb[0].mxu0
  %v2477 = vadd.f32 0.0, %v2476
  %v2478 = vpop.f32.mrb[0].mxu0
  %2479 = vmatprep.mubr.f32.mxu0 0.0
  %2480 = vmatmul.mubr.f32.gmra.mrb[0].mxu0 %v2329
  %v2481 = vpop.f32.mrb[0].mxu0
  %v2482 = vadd.f32 0.0, %v2481
  %v2483 = vpop.f32.mrb[0].mxu0
  %2484 = vmatprep.mubr.f32.mxu0 0.0
  %2485 = vmatmul.mubr.f32.gmra.mrb[0].mxu0 %v2332
  %v2486 = vpop.f32.mrb[0].mxu0
  %v2487 = vadd.f32 0.0, %v2486
  %v2488 = vpop.f32.mrb[0].mxu0
  %2489 = vmatprep.mubr.f32.mxu0 0.0
  %2490 = vmatmul.mubr.f32.gmra.mrb[0].mxu0 %v2335
  %v2491 = vpop.f32.mrb[0].mxu0
  %v2492 = vadd.f32 0.0, %v2491
  %v2493 = vpop.f32.mrb[0].mxu0
  %2494 = vmatprep.mubr.f32.mxu0 0.0
  %2495 = vmatmul.mubr.f32.gmra.mrb[0].mxu0 %v2338
  %v2496 = vpop.f32.mrb[0].mxu0
  %v2497 = vadd.f32 0.0, %v2496
  %v2498 = vpop.f32.mrb[0].mxu0
  %2499 = vmatprep.mubr.f32.mxu0 0.0
  %2500 = vmatmul.mubr.f32.gmra.mrb[0].mxu0 %v2341
  %v2501 = vpop.f32.mrb[0].mxu0
  %v2502 = vadd.f32 0.0, %v2501
  %v2503 = vpop.f32.mrb[0].mxu0
  %2504 = vmatprep.mubr.f32.mxu0 0.0
  %2505 = vmatmul.mubr.f32.gmra.mrb[0].mxu0 %v2344
  %v2506 = vpop.f32.mrb[0].mxu0
  %v2507 = vadd.f32 0.0, %v2506
  %v2508 = vpop.f32.mrb[0].mxu0
  %2509 = vmatprep.mubr.f32.mxu0 0.0
  %2510 = vmatmul.mubr.f32.gmra.mrb[0].mxu0 %v2347
  %v2511 = vpop.f32.mrb[0].mxu0
  %v2512 = vadd.f32 0.0, %v2511
  %v2513 = vpop.f32.mrb[0].mxu0
  %2514 = vmatprep.mubr.f32.mxu0 0.0
  %2515 = vmatmul.mubr.f32.gmra.mrb[0].mxu0 %v2350
  %v2516 = vpop.f32.mrb[0].mxu0
  %v2517 = vadd.f32 0.0, %v2516
  %v2518 = vpop.f32.mrb[0].mxu0
  %2519 = vdwg.mxu0
  %v2520 = vadd.f32 %v2114, %v2422
  %v2521 = vadd.f32 %v2115, %v2427
  %v2522 = vadd.f32 %v2116, %v2432
  %v2523 = vadd.f32 %v2117, %v2437
  %v2524 = vadd.f32 %v2118, %v2442
  %v2525 = vadd.f32 %v2119, %v2447
  %v2526 = vadd.f32 %v2120, %v2452
  %v2527 = vadd.f32 %v2121, %v2457
  %v2528 = vadd.f32 %v2122, %v2462
  %v2529 = vadd.f32 %v2123, %v2467
  %v2530 = vadd.f32 %v2124, %v2472
  %v2531 = vadd.f32 %v2125, %v2477
  %v2532 = vadd.f32 %v2126, %v2482
  %v2533 = vadd.f32 %v2127, %v2487
  %v2534 = vadd.f32 %v2128, %v2492
  %v2535 = vadd.f32 %v2129, %v2497
  %v2536 = vadd.f32 %v2130, %v2502
  %v2537 = vadd.f32 %v2131, %v2507
  %v2538 = vadd.f32 %v2132, %v2512
  %v2539 = vadd.f32 %v2133, %v2517
  %s2540 = scalar_lea.vmem %s6, 640
  %v2541 = vld [vmem:[%s2540] sm:$0xff]
  %v2542 = vld [vmem:[%s2540 + $0x8] sm:$0xff]
  %v2543 = vld [vmem:[%s2540 + $0x10] sm:$0xff]
  %v2544 = vld [vmem:[%s2540 + $0x18] sm:$0xff]
  %v2545 = vld [vmem:[%s2540 + $0x20] sm:$0xff]
  %v2546 = vld [vmem:[%s2540 + $0x28] sm:$0xff]
  %v2547 = vld [vmem:[%s2540 + $0x30] sm:$0xff]
  %v2548 = vld [vmem:[%s2540 + $0x38] sm:$0xff]
  %v2549 = vld [vmem:[%s2540 + $0x40] sm:$0xff]
  %v2550 = vld [vmem:[%s2540 + $0x48] sm:$0xff]
  %v2551 = vld [vmem:[%s2540 + $0x50] sm:$0xff]
  %v2552 = vld [vmem:[%s2540 + $0x58] sm:$0xff]
  %v2553 = vld [vmem:[%s2540 + $0x60] sm:$0xff]
  %v2554 = vld [vmem:[%s2540 + $0x68] sm:$0xff]
  %v2555 = vld [vmem:[%s2540 + $0x70] sm:$0xff]
  %v2556 = vld [vmem:[%s2540 + $0x78] sm:$0xff]
  %v2557 = vld [vmem:[%s2540 + $0x80] sm:$0xff]
  %v2558 = vld [vmem:[%s2540 + $0x88] sm:$0xff]
  %v2559 = vld [vmem:[%s2540 + $0x90] sm:$0xff]
  %v2560 = vld [vmem:[%s2540 + $0x98] sm:$0xff]
  %s2561 = scalar_lea.vmem %s5, 384
  %v2562 = vld [vmem:[%s2561] sm:$0xff]
  %v2563 = vld [vmem:[%s2561 + $0x8] sm:$0xff]
  %v2564 = vld [vmem:[%s2561 + $0x10] sm:$0xff]
  %v2565 = vld [vmem:[%s2561 + $0x18] sm:$0xff]
  %v2566 = vld [vmem:[%s2561 + $0x20] sm:$0xff]
  %v2567 = vld [vmem:[%s2561 + $0x28] sm:$0xff]
  %v2568 = vld [vmem:[%s2561 + $0x30] sm:$0xff]
  %v2569 = vld [vmem:[%s2561 + $0x38] sm:$0xff]
  %v2570 = vld [vmem:[%s2561 + $0x40] sm:$0xff]
  %v2571 = vld [vmem:[%s2561 + $0x48] sm:$0xff]
  %v2572 = vld [vmem:[%s2561 + $0x50] sm:$0xff]
  %v2573 = vld [vmem:[%s2561 + $0x58] sm:$0xff]
  %v2574 = vld [vmem:[%s2561 + $0x60] sm:$0xff]
  %v2575 = vld [vmem:[%s2561 + $0x68] sm:$0xff]
  %v2576 = vld [vmem:[%s2561 + $0x70] sm:$0xff]
  %v2577 = vld [vmem:[%s2561 + $0x78] sm:$0xff]
  %2578 = vmatprep.subr.mxu0 0.0
  %2579 = vmatpush1.msra.mxu0 %v2562
  %2580 = vmatprep.subr.mxu0 0.0
  %2581 = vmatpush1.msra.mxu0 %v2563
  %2582 = vmatprep.subr.mxu0 0.0
  %2583 = vmatpush1.msra.mxu0 %v2564
  %2584 = vmatprep.subr.mxu0 0.0
  %2585 = vmatpush1.msra.mxu0 %v2565
  %2586 = vmatprep.subr.mxu0 0.0
  %2587 = vmatpush1.msra.mxu0 %v2566
  %2588 = vmatprep.subr.mxu0 0.0
  %2589 = vmatpush1.msra.mxu0 %v2567
  %2590 = vmatprep.subr.mxu0 0.0
  %2591 = vmatpush1.msra.mxu0 %v2568
  %2592 = vmatprep.subr.mxu0 0.0
  %2593 = vmatpush1.msra.mxu0 %v2569
  %2594 = vmatprep.subr.mxu0 0.0
  %2595 = vmatpush1.msra.mxu0 %v2570
  %2596 = vmatprep.subr.mxu0 0.0
  %2597 = vmatpush1.msra.mxu0 %v2571
  %2598 = vmatprep.subr.mxu0 0.0
  %2599 = vmatpush1.msra.mxu0 %v2572
  %2600 = vmatprep.subr.mxu0 0.0
  %2601 = vmatpush1.msra.mxu0 %v2573
  %2602 = vmatprep.subr.mxu0 0.0
  %2603 = vmatpush1.msra.mxu0 %v2574
  %2604 = vmatprep.subr.mxu0 0.0
  %2605 = vmatpush1.msra.mxu0 %v2575
  %2606 = vmatprep.subr.mxu0 0.0
  %2607 = vmatpush1.msra.mxu0 %v2576
  %2608 = vmatprep.subr.mxu0 0.0
  %2609 = vmatpush1.msra.mxu0 %v2577
  %2610 = vmatprep.subr.mxu0 0.0
  %2611 = vmatpush1.msra.mxu0 0.0
  %2612 = vmatprep.subr.mxu0 0.0
  %2613 = vmatpush1.msra.mxu0 0.0
  %2614 = vmatprep.subr.mxu0 0.0
  %2615 = vmatpush1.msra.mxu0 0.0
  %2616 = vmatprep.subr.mxu0 0.0
  %2617 = vmatpush1.msra.mxu0 0.0
  %2618 = vmatprep.subr.mxu0 0.0
  %2619 = vmatpush1.msra.mxu0 0.0
  %2620 = vmatprep.subr.mxu0 0.0
  %2621 = vmatpush1.msra.mxu0 0.0
  %2622 = vmatprep.subr.mxu0 0.0
  %2623 = vmatpush1.msra.mxu0 0.0
  %2624 = vmatprep.subr.mxu0 0.0
  %2625 = vmatpush1.msra.mxu0 0.0
  %2626 = vmatprep.subr.mxu0 0.0
  %2627 = vmatpush1.msra.mxu0 0.0
  %2628 = vmatprep.subr.mxu0 0.0
  %2629 = vmatpush1.msra.mxu0 0.0
  %2630 = vmatprep.subr.mxu0 0.0
  %2631 = vmatpush1.msra.mxu0 0.0
  %2632 = vmatprep.subr.mxu0 0.0
  %2633 = vmatpush1.msra.mxu0 0.0
  %2634 = vmatprep.subr.mxu0 0.0
  %2635 = vmatpush1.msra.mxu0 0.0
  %2636 = vmatprep.subr.mxu0 0.0
  %2637 = vmatpush1.msra.mxu0 0.0
  %2638 = vmatprep.subr.mxu0 0.0
  %2639 = vmatpush1.msra.mxu0 0.0
  %2640 = vmatprep.subr.mxu0 0.0
  %2641 = vmatpush1.msra.mxu0 0.0
  %2642 = vmatprep.mubr.f32.mxu0 0.0
  %2643 = vmatmul.mubr.f32.gmra.mrb[0].mxu0 %v880
  %v2644 = vpop.f32.mrb[0].mxu0
  %v2645 = vadd.f32 0.0, %v2644
  %v2646 = vpop.f32.mrb[0].mxu0
  %2647 = vmatprep.mubr.f32.mxu0 0.0
  %2648 = vmatmul.mubr.f32.gmra.mrb[0].mxu0 %v885
  %v2649 = vpop.f32.mrb[0].mxu0
  %v2650 = vadd.f32 0.0, %v2649
  %v2651 = vpop.f32.mrb[0].mxu0
  %2652 = vmatprep.mubr.f32.mxu0 0.0
  %2653 = vmatmul.mubr.f32.gmra.mrb[0].mxu0 %v890
  %v2654 = vpop.f32.mrb[0].mxu0
  %v2655 = vadd.f32 0.0, %v2654
  %v2656 = vpop.f32.mrb[0].mxu0
  %2657 = vmatprep.mubr.f32.mxu0 0.0
  %2658 = vmatmul.mubr.f32.gmra.mrb[0].mxu0 %v895
  %v2659 = vpop.f32.mrb[0].mxu0
  %v2660 = vadd.f32 0.0, %v2659
  %v2661 = vpop.f32.mrb[0].mxu0
  %2662 = vmatprep.mubr.f32.mxu0 0.0
  %2663 = vmatmul.mubr.f32.gmra.mrb[0].mxu0 %v900
  %v2664 = vpop.f32.mrb[0].mxu0
  %v2665 = vadd.f32 0.0, %v2664
  %v2666 = vpop.f32.mrb[0].mxu0
  %2667 = vmatprep.mubr.f32.mxu0 0.0
  %2668 = vmatmul.mubr.f32.gmra.mrb[0].mxu0 %v905
  %v2669 = vpop.f32.mrb[0].mxu0
  %v2670 = vadd.f32 0.0, %v2669
  %v2671 = vpop.f32.mrb[0].mxu0
  %2672 = vmatprep.mubr.f32.mxu0 0.0
  %2673 = vmatmul.mubr.f32.gmra.mrb[0].mxu0 %v910
  %v2674 = vpop.f32.mrb[0].mxu0
  %v2675 = vadd.f32 0.0, %v2674
  %v2676 = vpop.f32.mrb[0].mxu0
  %2677 = vmatprep.mubr.f32.mxu0 0.0
  %2678 = vmatmul.mubr.f32.gmra.mrb[0].mxu0 %v915
  %v2679 = vpop.f32.mrb[0].mxu0
  %v2680 = vadd.f32 0.0, %v2679
  %v2681 = vpop.f32.mrb[0].mxu0
  %2682 = vmatprep.mubr.f32.mxu0 0.0
  %2683 = vmatmul.mubr.f32.gmra.mrb[0].mxu0 %v920
  %v2684 = vpop.f32.mrb[0].mxu0
  %v2685 = vadd.f32 0.0, %v2684
  %v2686 = vpop.f32.mrb[0].mxu0
  %2687 = vmatprep.mubr.f32.mxu0 0.0
  %2688 = vmatmul.mubr.f32.gmra.mrb[0].mxu0 %v925
  %v2689 = vpop.f32.mrb[0].mxu0
  %v2690 = vadd.f32 0.0, %v2689
  %v2691 = vpop.f32.mrb[0].mxu0
  %2692 = vmatprep.mubr.f32.mxu0 0.0
  %2693 = vmatmul.mubr.f32.gmra.mrb[0].mxu0 %v930
  %v2694 = vpop.f32.mrb[0].mxu0
  %v2695 = vadd.f32 0.0, %v2694
  %v2696 = vpop.f32.mrb[0].mxu0
  %2697 = vdwg.mxu0
  %v2699 = vsel %vm973, %v2541, 0
  %v2702 = vsel %vm973, %v2542, 0
  %v2705 = vsel %vm973, %v2543, 0
  %v2708 = vsel %vm973, %v2544, 0
  %v2711 = vsel %vm973, %v2545, 0
  %v2714 = vsel %vm973, %v2546, 0
  %v2717 = vsel %vm973, %v2547, 0
  %v2720 = vsel %vm973, %v2548, 0
  %v2723 = vsel %vm973, %v2549, 0
  %v2726 = vsel %vm973, %v2550, 0
  %v2729 = vsel %vm973, %v2551, 0
  %v2732 = vsel %vm973, %v2552, 0
  %v2735 = vsel %vm973, %v2553, 0
  %v2738 = vsel %vm973, %v2554, 0
  %v2741 = vsel %vm973, %v2555, 0
  %v2744 = vsel %vm973, %v2556, 0
  %v2747 = vsel %vm973, %v2557, 0
  %v2750 = vsel %vm973, %v2558, 0
  %v2753 = vsel %vm973, %v2559, 0
  %v2756 = vsel %vm973, %v2560, 0
  %v2759 = vsel %vm1034, %v2695, 0
  %2761 = vmatprep.subr.mxu0 0.0
  %2762 = vmatpush1.msra.mxu0 %v2645
  %2763 = vmatprep.subr.mxu0 0.0
  %2764 = vmatpush1.msra.mxu0 %v2650
  %2765 = vmatprep.subr.mxu0 0.0
  %2766 = vmatpush1.msra.mxu0 %v2655
  %2767 = vmatprep.subr.mxu0 0.0
  %2768 = vmatpush1.msra.mxu0 %v2660
  %2769 = vmatprep.subr.mxu0 0.0
  %2770 = vmatpush1.msra.mxu0 %v2665
  %2771 = vmatprep.subr.mxu0 0.0
  %2772 = vmatpush1.msra.mxu0 %v2670
  %2773 = vmatprep.subr.mxu0 0.0
  %2774 = vmatpush1.msra.mxu0 %v2675
  %2775 = vmatprep.subr.mxu0 0.0
  %2776 = vmatpush1.msra.mxu0 %v2680
  %2777 = vmatprep.subr.mxu0 0.0
  %2778 = vmatpush1.msra.mxu0 %v2685
  %2779 = vmatprep.subr.mxu0 0.0
  %2780 = vmatpush1.msra.mxu0 %v2690
  %2781 = vmatprep.subr.mxu0 0.0
  %2782 = vmatpush1.msra.mxu0 %v2759
  %2783 = vmatprep.subr.mxu0 0.0
  %2784 = vmatpush1.msra.mxu0 0.0
  %2785 = vmatprep.subr.mxu0 0.0
  %2786 = vmatpush1.msra.mxu0 0.0
  %2787 = vmatprep.subr.mxu0 0.0
  %2788 = vmatpush1.msra.mxu0 0.0
  %2789 = vmatprep.subr.mxu0 0.0
  %2790 = vmatpush1.msra.mxu0 0.0
  %2791 = vmatprep.subr.mxu0 0.0
  %2792 = vmatpush1.msra.mxu0 0.0
  %2793 = vmatprep.subr.mxu0 0.0
  %2794 = vmatpush1.msra.mxu0 0.0
  %2795 = vmatprep.subr.mxu0 0.0
  %2796 = vmatpush1.msra.mxu0 0.0
  %2797 = vmatprep.subr.mxu0 0.0
  %2798 = vmatpush1.msra.mxu0 0.0
  %2799 = vmatprep.subr.mxu0 0.0
  %2800 = vmatpush1.msra.mxu0 0.0
  %2801 = vmatprep.subr.mxu0 0.0
  %2802 = vmatpush1.msra.mxu0 0.0
  %2803 = vmatprep.subr.mxu0 0.0
  %2804 = vmatpush1.msra.mxu0 0.0
  %2805 = vmatprep.subr.mxu0 0.0
  %2806 = vmatpush1.msra.mxu0 0.0
  %2807 = vmatprep.subr.mxu0 0.0
  %2808 = vmatpush1.msra.mxu0 0.0
  %2809 = vmatprep.subr.mxu0 0.0
  %2810 = vmatpush1.msra.mxu0 0.0
  %2811 = vmatprep.subr.mxu0 0.0
  %2812 = vmatpush1.msra.mxu0 0.0
  %2813 = vmatprep.subr.mxu0 0.0
  %2814 = vmatpush1.msra.mxu0 0.0
  %2815 = vmatprep.subr.mxu0 0.0
  %2816 = vmatpush1.msra.mxu0 0.0
  %2817 = vmatprep.subr.mxu0 0.0
  %2818 = vmatpush1.msra.mxu0 0.0
  %2819 = vmatprep.subr.mxu0 0.0
  %2820 = vmatpush1.msra.mxu0 0.0
  %2821 = vmatprep.subr.mxu0 0.0
  %2822 = vmatpush1.msra.mxu0 0.0
  %2823 = vmatprep.subr.mxu0 0.0
  %2824 = vmatpush1.msra.mxu0 0.0
  %2825 = vmatprep.mubr.f32.mxu0 0.0
  %2826 = vmatmul.mubr.f32.gmra.mrb[0].mxu0 %v2699
  %v2827 = vpop.f32.mrb[0].mxu0
  %v2828 = vadd.f32 0.0, %v2827
  %v2829 = vpop.f32.mrb[0].mxu0
  %2830 = vmatprep.mubr.f32.mxu0 0.0
  %2831 = vmatmul.mubr.f32.gmra.mrb[0].mxu0 %v2702
  %v2832 = vpop.f32.mrb[0].mxu0
  %v2833 = vadd.f32 0.0, %v2832
  %v2834 = vpop.f32.mrb[0].mxu0
  %2835 = vmatprep.mubr.f32.mxu0 0.0
  %2836 = vmatmul.mubr.f32.gmra.mrb[0].mxu0 %v2705
  %v2837 = vpop.f32.mrb[0].mxu0
  %v2838 = vadd.f32 0.0, %v2837
  %v2839 = vpop.f32.mrb[0].mxu0
  %2840 = vmatprep.mubr.f32.mxu0 0.0
  %2841 = vmatmul.mubr.f32.gmra.mrb[0].mxu0 %v2708
  %v2842 = vpop.f32.mrb[0].mxu0
  %v2843 = vadd.f32 0.0, %v2842
  %v2844 = vpop.f32.mrb[0].mxu0
  %2845 = vmatprep.mubr.f32.mxu0 0.0
  %2846 = vmatmul.mubr.f32.gmra.mrb[0].mxu0 %v2711
  %v2847 = vpop.f32.mrb[0].mxu0
  %v2848 = vadd.f32 0.0, %v2847
  %v2849 = vpop.f32.mrb[0].mxu0
  %2850 = vmatprep.mubr.f32.mxu0 0.0
  %2851 = vmatmul.mubr.f32.gmra.mrb[0].mxu0 %v2714
  %v2852 = vpop.f32.mrb[0].mxu0
  %v2853 = vadd.f32 0.0, %v2852
  %v2854 = vpop.f32.mrb[0].mxu0
  %2855 = vmatprep.mubr.f32.mxu0 0.0
  %2856 = vmatmul.mubr.f32.gmra.mrb[0].mxu0 %v2717
  %v2857 = vpop.f32.mrb[0].mxu0
  %v2858 = vadd.f32 0.0, %v2857
  %v2859 = vpop.f32.mrb[0].mxu0
  %2860 = vmatprep.mubr.f32.mxu0 0.0
  %2861 = vmatmul.mubr.f32.gmra.mrb[0].mxu0 %v2720
  %v2862 = vpop.f32.mrb[0].mxu0
  %v2863 = vadd.f32 0.0, %v2862
  %v2864 = vpop.f32.mrb[0].mxu0
  %2865 = vmatprep.mubr.f32.mxu0 0.0
  %2866 = vmatmul.mubr.f32.gmra.mrb[0].mxu0 %v2723
  %v2867 = vpop.f32.mrb[0].mxu0
  %v2868 = vadd.f32 0.0, %v2867
  %v2869 = vpop.f32.mrb[0].mxu0
  %2870 = vmatprep.mubr.f32.mxu0 0.0
  %2871 = vmatmul.mubr.f32.gmra.mrb[0].mxu0 %v2726
  %v2872 = vpop.f32.mrb[0].mxu0
  %v2873 = vadd.f32 0.0, %v2872
  %v2874 = vpop.f32.mrb[0].mxu0
  %2875 = vmatprep.mubr.f32.mxu0 0.0
  %2876 = vmatmul.mubr.f32.gmra.mrb[0].mxu0 %v2729
  %v2877 = vpop.f32.mrb[0].mxu0
  %v2878 = vadd.f32 0.0, %v2877
  %v2879 = vpop.f32.mrb[0].mxu0
  %2880 = vmatprep.mubr.f32.mxu0 0.0
  %2881 = vmatmul.mubr.f32.gmra.mrb[0].mxu0 %v2732
  %v2882 = vpop.f32.mrb[0].mxu0
  %v2883 = vadd.f32 0.0, %v2882
  %v2884 = vpop.f32.mrb[0].mxu0
  %2885 = vmatprep.mubr.f32.mxu0 0.0
  %2886 = vmatmul.mubr.f32.gmra.mrb[0].mxu0 %v2735
  %v2887 = vpop.f32.mrb[0].mxu0
  %v2888 = vadd.f32 0.0, %v2887
  %v2889 = vpop.f32.mrb[0].mxu0
  %2890 = vmatprep.mubr.f32.mxu0 0.0
  %2891 = vmatmul.mubr.f32.gmra.mrb[0].mxu0 %v2738
  %v2892 = vpop.f32.mrb[0].mxu0
  %v2893 = vadd.f32 0.0, %v2892
  %v2894 = vpop.f32.mrb[0].mxu0
  %2895 = vmatprep.mubr.f32.mxu0 0.0
  %2896 = vmatmul.mubr.f32.gmra.mrb[0].mxu0 %v2741
  %v2897 = vpop.f32.mrb[0].mxu0
  %v2898 = vadd.f32 0.0, %v2897
  %v2899 = vpop.f32.mrb[0].mxu0
  %2900 = vmatprep.mubr.f32.mxu0 0.0
  %2901 = vmatmul.mubr.f32.gmra.mrb[0].mxu0 %v2744
  %v2902 = vpop.f32.mrb[0].mxu0
  %v2903 = vadd.f32 0.0, %v2902
  %v2904 = vpop.f32.mrb[0].mxu0
  %2905 = vmatprep.mubr.f32.mxu0 0.0
  %2906 = vmatmul.mubr.f32.gmra.mrb[0].mxu0 %v2747
  %v2907 = vpop.f32.mrb[0].mxu0
  %v2908 = vadd.f32 0.0, %v2907
  %v2909 = vpop.f32.mrb[0].mxu0
  %2910 = vmatprep.mubr.f32.mxu0 0.0
  %2911 = vmatmul.mubr.f32.gmra.mrb[0].mxu0 %v2750
  %v2912 = vpop.f32.mrb[0].mxu0
  %v2913 = vadd.f32 0.0, %v2912
  %v2914 = vpop.f32.mrb[0].mxu0
  %2915 = vmatprep.mubr.f32.mxu0 0.0
  %2916 = vmatmul.mubr.f32.gmra.mrb[0].mxu0 %v2753
  %v2917 = vpop.f32.mrb[0].mxu0
  %v2918 = vadd.f32 0.0, %v2917
  %v2919 = vpop.f32.mrb[0].mxu0
  %2920 = vmatprep.mubr.f32.mxu0 0.0
  %2921 = vmatmul.mubr.f32.gmra.mrb[0].mxu0 %v2756
  %v2922 = vpop.f32.mrb[0].mxu0
  %v2923 = vadd.f32 0.0, %v2922
  %v2924 = vpop.f32.mrb[0].mxu0
  %2925 = vdwg.mxu0
  %v2926 = vadd.f32 %v2520, %v2828
  %v2927 = vadd.f32 %v2521, %v2833
  %v2928 = vadd.f32 %v2522, %v2838
  %v2929 = vadd.f32 %v2523, %v2843
  %v2930 = vadd.f32 %v2524, %v2848
  %v2931 = vadd.f32 %v2525, %v2853
  %v2932 = vadd.f32 %v2526, %v2858
  %v2933 = vadd.f32 %v2527, %v2863
  %v2934 = vadd.f32 %v2528, %v2868
  %v2935 = vadd.f32 %v2529, %v2873
  %v2936 = vadd.f32 %v2530, %v2878
  %v2937 = vadd.f32 %v2531, %v2883
  %v2938 = vadd.f32 %v2532, %v2888
  %v2939 = vadd.f32 %v2533, %v2893
  %v2940 = vadd.f32 %v2534, %v2898
  %v2941 = vadd.f32 %v2535, %v2903
  %v2942 = vadd.f32 %v2536, %v2908
  %v2943 = vadd.f32 %v2537, %v2913
  %v2944 = vadd.f32 %v2538, %v2918
  %v2945 = vadd.f32 %v2539, %v2923
  %v2946 = vtanh.pop %v2926
  %v2947 = vtanh.pop %v2927
  %v2948 = vtanh.pop %v2928
  %v2949 = vtanh.pop %v2929
  %v2950 = vtanh.pop %v2930
  %v2951 = vtanh.pop %v2931
  %v2952 = vtanh.pop %v2932
  %v2953 = vtanh.pop %v2933
  %v2954 = vtanh.pop %v2934
  %v2955 = vtanh.pop %v2935
  %v2956 = vtanh.pop %v2936
  %v2957 = vtanh.pop %v2937
  %v2958 = vtanh.pop %v2938
  %v2959 = vtanh.pop %v2939
  %v2960 = vtanh.pop %v2940
  %v2961 = vtanh.pop %v2941
  %v2962 = vtanh.pop %v2942
  %v2963 = vtanh.pop %v2943
  %v2964 = vtanh.pop %v2944
  %v2965 = vtanh.pop %v2945
  %v2966 = vld [vmem:[%s9] sm:$0xff]
  %v2967 = vld [vmem:[%s9 + $0x8] sm:$0xff]
  %v2968 = vld [vmem:[%s9 + $0x10] sm:$0xff]
  %v2969 = vld [vmem:[%s9 + $0x18] sm:$0xff]
  %v2970 = vld [vmem:[%s9 + $0x20] sm:$0xff]
  %v2971 = vld [vmem:[%s9 + $0x28] sm:$0xff]
  %v2972 = vld [vmem:[%s9 + $0x30] sm:$0xff]
  %v2973 = vld [vmem:[%s9 + $0x38] sm:$0xff]
  %v2974 = vld [vmem:[%s9 + $0x40] sm:$0xff]
  %v2975 = vld [vmem:[%s9 + $0x48] sm:$0xff]
  %v2976 = vld [vmem:[%s9 + $0x50] sm:$0xff]
  %v2977 = vld [vmem:[%s9 + $0x58] sm:$0xff]
  %v2978 = vld [vmem:[%s9 + $0x60] sm:$0xff]
  %v2979 = vld [vmem:[%s9 + $0x68] sm:$0xff]
  %v2980 = vld [vmem:[%s9 + $0x70] sm:$0xff]
  %v2981 = vld [vmem:[%s9 + $0x78] sm:$0xff]
  %v2982 = vld [vmem:[%s9 + $0x80] sm:$0xff]
  %v2983 = vld [vmem:[%s9 + $0x88] sm:$0xff]
  %v2984 = vld [vmem:[%s9 + $0x90] sm:$0xff]
  %v2985 = vld [vmem:[%s9 + $0x98] sm:$0xff]
  %v2986 = vld [vmem:[%s8] sm:$0xff]
  %v2987 = vld [vmem:[%s8 + $0x8] sm:$0xff]
  %v2988 = vld [vmem:[%s8 + $0x10] sm:$0xff]
  %v2989 = vld [vmem:[%s8 + $0x18] sm:$0xff]
  %v2990 = vld [vmem:[%s8 + $0x20] sm:$0xff]
  %v2991 = vld [vmem:[%s8 + $0x28] sm:$0xff]
  %v2992 = vld [vmem:[%s8 + $0x30] sm:$0xff]
  %v2993 = vld [vmem:[%s8 + $0x38] sm:$0xff]
  %v2994 = vld [vmem:[%s8 + $0x40] sm:$0xff]
  %v2995 = vld [vmem:[%s8 + $0x48] sm:$0xff]
  %v2996 = vld [vmem:[%s8 + $0x50] sm:$0xff]
  %v2997 = vld [vmem:[%s8 + $0x58] sm:$0xff]
  %v2998 = vld [vmem:[%s8 + $0x60] sm:$0xff]
  %v2999 = vld [vmem:[%s8 + $0x68] sm:$0xff]
  %v3000 = vld [vmem:[%s8 + $0x70] sm:$0xff]
  %v3001 = vld [vmem:[%s8 + $0x78] sm:$0xff]
  %3002 = vmatprep.subr.mxu0 0.0
  %3003 = vmatpush1.msra.mxu0 %v2986
  %3004 = vmatprep.subr.mxu0 0.0
  %3005 = vmatpush1.msra.mxu0 %v2987
  %3006 = vmatprep.subr.mxu0 0.0
  %3007 = vmatpush1.msra.mxu0 %v2988
  %3008 = vmatprep.subr.mxu0 0.0
  %3009 = vmatpush1.msra.mxu0 %v2989
  %3010 = vmatprep.subr.mxu0 0.0
  %3011 = vmatpush1.msra.mxu0 %v2990
  %3012 = vmatprep.subr.mxu0 0.0
  %3013 = vmatpush1.msra.mxu0 %v2991
  %3014 = vmatprep.subr.mxu0 0.0
  %3015 = vmatpush1.msra.mxu0 %v2992
  %3016 = vmatprep.subr.mxu0 0.0
  %3017 = vmatpush1.msra.mxu0 %v2993
  %3018 = vmatprep.subr.mxu0 0.0
  %3019 = vmatpush1.msra.mxu0 %v2994
  %3020 = vmatprep.subr.mxu0 0.0
  %3021 = vmatpush1.msra.mxu0 %v2995
  %3022 = vmatprep.subr.mxu0 0.0
  %3023 = vmatpush1.msra.mxu0 %v2996
  %3024 = vmatprep.subr.mxu0 0.0
  %3025 = vmatpush1.msra.mxu0 %v2997
  %3026 = vmatprep.subr.mxu0 0.0
  %3027 = vmatpush1.msra.mxu0 %v2998
  %3028 = vmatprep.subr.mxu0 0.0
  %3029 = vmatpush1.msra.mxu0 %v2999
  %3030 = vmatprep.subr.mxu0 0.0
  %3031 = vmatpush1.msra.mxu0 %v3000
  %3032 = vmatprep.subr.mxu0 0.0
  %3033 = vmatpush1.msra.mxu0 %v3001
  %3034 = vmatprep.subr.mxu0 0.0
  %3035 = vmatpush1.msra.mxu0 0.0
  %3036 = vmatprep.subr.mxu0 0.0
  %3037 = vmatpush1.msra.mxu0 0.0
  %3038 = vmatprep.subr.mxu0 0.0
  %3039 = vmatpush1.msra.mxu0 0.0
  %3040 = vmatprep.subr.mxu0 0.0
  %3041 = vmatpush1.msra.mxu0 0.0
  %3042 = vmatprep.subr.mxu0 0.0
  %3043 = vmatpush1.msra.mxu0 0.0
  %3044 = vmatprep.subr.mxu0 0.0
  %3045 = vmatpush1.msra.mxu0 0.0
  %3046 = vmatprep.subr.mxu0 0.0
  %3047 = vmatpush1.msra.mxu0 0.0
  %3048 = vmatprep.subr.mxu0 0.0
  %3049 = vmatpush1.msra.mxu0 0.0
  %3050 = vmatprep.subr.mxu0 0.0
  %3051 = vmatpush1.msra.mxu0 0.0
  %3052 = vmatprep.subr.mxu0 0.0
  %3053 = vmatpush1.msra.mxu0 0.0
  %3054 = vmatprep.subr.mxu0 0.0
  %3055 = vmatpush1.msra.mxu0 0.0
  %3056 = vmatprep.subr.mxu0 0.0
  %3057 = vmatpush1.msra.mxu0 0.0
  %3058 = vmatprep.subr.mxu0 0.0
  %3059 = vmatpush1.msra.mxu0 0.0
  %3060 = vmatprep.subr.mxu0 0.0
  %3061 = vmatpush1.msra.mxu0 0.0
  %3062 = vmatprep.subr.mxu0 0.0
  %3063 = vmatpush1.msra.mxu0 0.0
  %3064 = vmatprep.subr.mxu0 0.0
  %3065 = vmatpush1.msra.mxu0 0.0
  %3066 = vmatprep.mubr.f32.mxu0 0.0
  %3067 = vmatmul.mubr.f32.gmra.mrb[0].mxu0 %v2946
  %v3068 = vpop.f32.mrb[0].mxu0
  %v3069 = vadd.f32 0.0, %v3068
  %v3070 = vpop.f32.mrb[0].mxu0
  %3071 = vmatprep.mubr.f32.mxu0 0.0
  %3072 = vmatmul.mubr.f32.gmra.mrb[0].mxu0 %v2947
  %v3073 = vpop.f32.mrb[0].mxu0
  %v3074 = vadd.f32 0.0, %v3073
  %v3075 = vpop.f32.mrb[0].mxu0
  %3076 = vmatprep.mubr.f32.mxu0 0.0
  %3077 = vmatmul.mubr.f32.gmra.mrb[0].mxu0 %v2948
  %v3078 = vpop.f32.mrb[0].mxu0
  %v3079 = vadd.f32 0.0, %v3078
  %v3080 = vpop.f32.mrb[0].mxu0
  %3081 = vmatprep.mubr.f32.mxu0 0.0
  %3082 = vmatmul.mubr.f32.gmra.mrb[0].mxu0 %v2949
  %v3083 = vpop.f32.mrb[0].mxu0
  %v3084 = vadd.f32 0.0, %v3083
  %v3085 = vpop.f32.mrb[0].mxu0
  %3086 = vmatprep.mubr.f32.mxu0 0.0
  %3087 = vmatmul.mubr.f32.gmra.mrb[0].mxu0 %v2950
  %v3088 = vpop.f32.mrb[0].mxu0
  %v3089 = vadd.f32 0.0, %v3088
  %v3090 = vpop.f32.mrb[0].mxu0
  %3091 = vmatprep.mubr.f32.mxu0 0.0
  %3092 = vmatmul.mubr.f32.gmra.mrb[0].mxu0 %v2951
  %v3093 = vpop.f32.mrb[0].mxu0
  %v3094 = vadd.f32 0.0, %v3093
  %v3095 = vpop.f32.mrb[0].mxu0
  %3096 = vmatprep.mubr.f32.mxu0 0.0
  %3097 = vmatmul.mubr.f32.gmra.mrb[0].mxu0 %v2952
  %v3098 = vpop.f32.mrb[0].mxu0
  %v3099 = vadd.f32 0.0, %v3098
  %v3100 = vpop.f32.mrb[0].mxu0
  %3101 = vmatprep.mubr.f32.mxu0 0.0
  %3102 = vmatmul.mubr.f32.gmra.mrb[0].mxu0 %v2953
  %v3103 = vpop.f32.mrb[0].mxu0
  %v3104 = vadd.f32 0.0, %v3103
  %v3105 = vpop.f32.mrb[0].mxu0
  %3106 = vmatprep.mubr.f32.mxu0 0.0
  %3107 = vmatmul.mubr.f32.gmra.mrb[0].mxu0 %v2954
  %v3108 = vpop.f32.mrb[0].mxu0
  %v3109 = vadd.f32 0.0, %v3108
  %v3110 = vpop.f32.mrb[0].mxu0
  %3111 = vmatprep.mubr.f32.mxu0 0.0
  %3112 = vmatmul.mubr.f32.gmra.mrb[0].mxu0 %v2955
  %v3113 = vpop.f32.mrb[0].mxu0
  %v3114 = vadd.f32 0.0, %v3113
  %v3115 = vpop.f32.mrb[0].mxu0
  %3116 = vmatprep.mubr.f32.mxu0 0.0
  %3117 = vmatmul.mubr.f32.gmra.mrb[0].mxu0 %v2956
  %v3118 = vpop.f32.mrb[0].mxu0
  %v3119 = vadd.f32 0.0, %v3118
  %v3120 = vpop.f32.mrb[0].mxu0
  %3121 = vmatprep.mubr.f32.mxu0 0.0
  %3122 = vmatmul.mubr.f32.gmra.mrb[0].mxu0 %v2957
  %v3123 = vpop.f32.mrb[0].mxu0
  %v3124 = vadd.f32 0.0, %v3123
  %v3125 = vpop.f32.mrb[0].mxu0
  %3126 = vmatprep.mubr.f32.mxu0 0.0
  %3127 = vmatmul.mubr.f32.gmra.mrb[0].mxu0 %v2958
  %v3128 = vpop.f32.mrb[0].mxu0
  %v3129 = vadd.f32 0.0, %v3128
  %v3130 = vpop.f32.mrb[0].mxu0
  %3131 = vmatprep.mubr.f32.mxu0 0.0
  %3132 = vmatmul.mubr.f32.gmra.mrb[0].mxu0 %v2959
  %v3133 = vpop.f32.mrb[0].mxu0
  %v3134 = vadd.f32 0.0, %v3133
  %v3135 = vpop.f32.mrb[0].mxu0
  %3136 = vmatprep.mubr.f32.mxu0 0.0
  %3137 = vmatmul.mubr.f32.gmra.mrb[0].mxu0 %v2960
  %v3138 = vpop.f32.mrb[0].mxu0
  %v3139 = vadd.f32 0.0, %v3138
  %v3140 = vpop.f32.mrb[0].mxu0
  %3141 = vmatprep.mubr.f32.mxu0 0.0
  %3142 = vmatmul.mubr.f32.gmra.mrb[0].mxu0 %v2961
  %v3143 = vpop.f32.mrb[0].mxu0
  %v3144 = vadd.f32 0.0, %v3143
  %v3145 = vpop.f32.mrb[0].mxu0
  %3146 = vmatprep.mubr.f32.mxu0 0.0
  %3147 = vmatmul.mubr.f32.gmra.mrb[0].mxu0 %v2962
  %v3148 = vpop.f32.mrb[0].mxu0
  %v3149 = vadd.f32 0.0, %v3148
  %v3150 = vpop.f32.mrb[0].mxu0
  %3151 = vmatprep.mubr.f32.mxu0 0.0
  %3152 = vmatmul.mubr.f32.gmra.mrb[0].mxu0 %v2963
  %v3153 = vpop.f32.mrb[0].mxu0
  %v3154 = vadd.f32 0.0, %v3153
  %v3155 = vpop.f32.mrb[0].mxu0
  %3156 = vmatprep.mubr.f32.mxu0 0.0
  %3157 = vmatmul.mubr.f32.gmra.mrb[0].mxu0 %v2964
  %v3158 = vpop.f32.mrb[0].mxu0
  %v3159 = vadd.f32 0.0, %v3158
  %v3160 = vpop.f32.mrb[0].mxu0
  %3161 = vmatprep.mubr.f32.mxu0 0.0
  %3162 = vmatmul.mubr.f32.gmra.mrb[0].mxu0 %v2965
  %v3163 = vpop.f32.mrb[0].mxu0
  %v3164 = vadd.f32 0.0, %v3163
  %v3165 = vpop.f32.mrb[0].mxu0
  %3166 = vdwg.mxu0
  %v3168 = vsel %vm258, %v2967, 0
  %v3171 = vsel %vm258, %v2969, 0
  %v3174 = vsel %vm258, %v2971, 0
  %v3177 = vsel %vm258, %v2973, 0
  %v3180 = vsel %vm258, %v2975, 0
  %v3183 = vsel %vm258, %v2977, 0
  %v3186 = vsel %vm258, %v2979, 0
  %v3189 = vsel %vm258, %v2981, 0
  %v3192 = vsel %vm258, %v2983, 0
  %v3195 = vsel %vm258, %v2985, 0
  %3197 = vmatprep.subr.mxu0 0.0
  %3198 = vmatpush1.msra.mxu0 %v3069
  %3199 = vmatprep.subr.mxu0 0.0
  %3200 = vmatpush1.msra.mxu0 %v3074
  %3201 = vmatprep.subr.mxu0 0.0
  %3202 = vmatpush1.msra.mxu0 %v3079
  %3203 = vmatprep.subr.mxu0 0.0
  %3204 = vmatpush1.msra.mxu0 %v3084
  %3205 = vmatprep.subr.mxu0 0.0
  %3206 = vmatpush1.msra.mxu0 %v3089
  %3207 = vmatprep.subr.mxu0 0.0
  %3208 = vmatpush1.msra.mxu0 %v3094
  %3209 = vmatprep.subr.mxu0 0.0
  %3210 = vmatpush1.msra.mxu0 %v3099
  %3211 = vmatprep.subr.mxu0 0.0
  %3212 = vmatpush1.msra.mxu0 %v3104
  %3213 = vmatprep.subr.mxu0 0.0
  %3214 = vmatpush1.msra.mxu0 %v3109
  %3215 = vmatprep.subr.mxu0 0.0
  %3216 = vmatpush1.msra.mxu0 %v3114
  %3217 = vmatprep.subr.mxu0 0.0
  %3218 = vmatpush1.msra.mxu0 %v3119
  %3219 = vmatprep.subr.mxu0 0.0
  %3220 = vmatpush1.msra.mxu0 %v3124
  %3221 = vmatprep.subr.mxu0 0.0
  %3222 = vmatpush1.msra.mxu0 %v3129
  %3223 = vmatprep.subr.mxu0 0.0
  %3224 = vmatpush1.msra.mxu0 %v3134
  %3225 = vmatprep.subr.mxu0 0.0
  %3226 = vmatpush1.msra.mxu0 %v3139
  %3227 = vmatprep.subr.mxu0 0.0
  %3228 = vmatpush1.msra.mxu0 %v3144
  %3229 = vmatprep.subr.mxu0 0.0
  %3230 = vmatpush1.msra.mxu0 %v3149
  %3231 = vmatprep.subr.mxu0 0.0
  %3232 = vmatpush1.msra.mxu0 %v3154
  %3233 = vmatprep.subr.mxu0 0.0
  %3234 = vmatpush1.msra.mxu0 %v3159
  %3235 = vmatprep.subr.mxu0 0.0
  %3236 = vmatpush1.msra.mxu0 %v3164
  %3237 = vmatprep.subr.mxu0 0.0
  %3238 = vmatpush1.msra.mxu0 0.0
  %3239 = vmatprep.subr.mxu0 0.0
  %3240 = vmatpush1.msra.mxu0 0.0
  %3241 = vmatprep.subr.mxu0 0.0
  %3242 = vmatpush1.msra.mxu0 0.0
  %3243 = vmatprep.subr.mxu0 0.0
  %3244 = vmatpush1.msra.mxu0 0.0
  %3245 = vmatprep.subr.mxu0 0.0
  %3246 = vmatpush1.msra.mxu0 0.0
  %3247 = vmatprep.subr.mxu0 0.0
  %3248 = vmatpush1.msra.mxu0 0.0
  %3249 = vmatprep.subr.mxu0 0.0
  %3250 = vmatpush1.msra.mxu0 0.0
  %3251 = vmatprep.subr.mxu0 0.0
  %3252 = vmatpush1.msra.mxu0 0.0
  %3253 = vmatprep.subr.mxu0 0.0
  %3254 = vmatpush1.msra.mxu0 0.0
  %3255 = vmatprep.subr.mxu0 0.0
  %3256 = vmatpush1.msra.mxu0 0.0
  %3257 = vmatprep.subr.mxu0 0.0
  %3258 = vmatpush1.msra.mxu0 0.0
  %3259 = vmatprep.subr.mxu0 0.0
  %3260 = vmatpush1.msra.mxu0 0.0
  %3261 = vmatprep.mubr.f32.mxu0 %v3168
  %3262 = vmatmul.mubr.f32.gmra.mrb[0].mxu0 %v2966
  %v3263 = vpop.f32.mrb[0].mxu0
  %v3264 = vadd.f32 0.0, %v3263
  %v3265 = vpop.f32.mrb[0].mxu0
  %3266 = vmatprep.mubr.f32.mxu0 %v3171
  %3267 = vmatmul.mubr.f32.gmra.mrb[0].mxu0 %v2968
  %v3268 = vpop.f32.mrb[0].mxu0
  %v3269 = vadd.f32 0.0, %v3268
  %v3270 = vpop.f32.mrb[0].mxu0
  %3271 = vmatprep.mubr.f32.mxu0 %v3174
  %3272 = vmatmul.mubr.f32.gmra.mrb[0].mxu0 %v2970
  %v3273 = vpop.f32.mrb[0].mxu0
  %v3274 = vadd.f32 0.0, %v3273
  %v3275 = vpop.f32.mrb[0].mxu0
  %3276 = vmatprep.mubr.f32.mxu0 %v3177
  %3277 = vmatmul.mubr.f32.gmra.mrb[0].mxu0 %v2972
  %v3278 = vpop.f32.mrb[0].mxu0
  %v3279 = vadd.f32 0.0, %v3278
  %v3280 = vpop.f32.mrb[0].mxu0
  %3281 = vmatprep.mubr.f32.mxu0 %v3180
  %3282 = vmatmul.mubr.f32.gmra.mrb[0].mxu0 %v2974
  %v3283 = vpop.f32.mrb[0].mxu0
  %v3284 = vadd.f32 0.0, %v3283
  %v3285 = vpop.f32.mrb[0].mxu0
  %3286 = vmatprep.mubr.f32.mxu0 %v3183
  %3287 = vmatmul.mubr.f32.gmra.mrb[0].mxu0 %v2976
  %v3288 = vpop.f32.mrb[0].mxu0
  %v3289 = vadd.f32 0.0, %v3288
  %v3290 = vpop.f32.mrb[0].mxu0
  %3291 = vmatprep.mubr.f32.mxu0 %v3186
  %3292 = vmatmul.mubr.f32.gmra.mrb[0].mxu0 %v2978
  %v3293 = vpop.f32.mrb[0].mxu0
  %v3294 = vadd.f32 0.0, %v3293
  %v3295 = vpop.f32.mrb[0].mxu0
  %3296 = vmatprep.mubr.f32.mxu0 %v3189
  %3297 = vmatmul.mubr.f32.gmra.mrb[0].mxu0 %v2980
  %v3298 = vpop.f32.mrb[0].mxu0
  %v3299 = vadd.f32 0.0, %v3298
  %v3300 = vpop.f32.mrb[0].mxu0
  %3301 = vmatprep.mubr.f32.mxu0 %v3192
  %3302 = vmatmul.mubr.f32.gmra.mrb[0].mxu0 %v2982
  %v3303 = vpop.f32.mrb[0].mxu0
  %v3304 = vadd.f32 0.0, %v3303
  %v3305 = vpop.f32.mrb[0].mxu0
  %3306 = vmatprep.mubr.f32.mxu0 %v3195
  %3307 = vmatmul.mubr.f32.gmra.mrb[0].mxu0 %v2984
  %v3308 = vpop.f32.mrb[0].mxu0
  %v3309 = vadd.f32 0.0, %v3308
  %v3310 = vpop.f32.mrb[0].mxu0
  %3311 = vdwg.mxu0
  %v3312 = vld [vmem:[%s12] sm:$0xff]
  %v3313 = vld [vmem:[%s12 + $0x8] sm:$0xff]
  %v3314 = vld [vmem:[%s12 + $0x10] sm:$0xff]
  %v3315 = vld [vmem:[%s12 + $0x18] sm:$0xff]
  %v3316 = vld [vmem:[%s12 + $0x20] sm:$0xff]
  %v3317 = vld [vmem:[%s12 + $0x28] sm:$0xff]
  %v3318 = vld [vmem:[%s12 + $0x30] sm:$0xff]
  %v3319 = vld [vmem:[%s12 + $0x38] sm:$0xff]
  %v3320 = vld [vmem:[%s12 + $0x40] sm:$0xff]
  %v3321 = vld [vmem:[%s12 + $0x48] sm:$0xff]
  %v3322 = vld [vmem:[%s12 + $0x50] sm:$0xf]
  %v3323 = vld [vmem:[%s11] sm:$0xff]
  %v3324 = vld [vmem:[%s11 + $0x8] sm:$0xff]
  %v3325 = vld [vmem:[%s11 + $0x10] sm:$0xff]
  %v3326 = vld [vmem:[%s11 + $0x18] sm:$0xff]
  %v3327 = vld [vmem:[%s11 + $0x20] sm:$0xff]
  %v3328 = vld [vmem:[%s11 + $0x28] sm:$0xff]
  %v3329 = vld [vmem:[%s11 + $0x30] sm:$0xff]
  %v3330 = vld [vmem:[%s11 + $0x38] sm:$0xff]
  %v3331 = vld [vmem:[%s11 + $0x40] sm:$0xff]
  %v3332 = vld [vmem:[%s11 + $0x48] sm:$0xff]
  %v3333 = vld [vmem:[%s11 + $0x50] sm:$0xf]
  %v3334 = vld [vmem:[%s10] sm:$0xff]
  %v3335 = vld [vmem:[%s10 + $0x8] sm:$0xff]
  %v3336 = vld [vmem:[%s10 + $0x10] sm:$0xff]
  %v3337 = vld [vmem:[%s10 + $0x18] sm:$0xff]
  %v3338 = vld [vmem:[%s10 + $0x20] sm:$0xff]
  %v3339 = vld [vmem:[%s10 + $0x28] sm:$0xff]
  %v3340 = vld [vmem:[%s10 + $0x30] sm:$0xff]
  %v3341 = vld [vmem:[%s10 + $0x38] sm:$0xff]
  %vm3342 = vcmask 523264
  %v3344 = vsel %vm3342, %v3264, 0
  %v3347 = vsel %vm3342, %v3269, 0
  %v3350 = vsel %vm3342, %v3274, 0
  %v3353 = vsel %vm3342, %v3279, 0
  %v3356 = vsel %vm3342, %v3284, 0
  %v3359 = vsel %vm3342, %v3289, 0
  %v3362 = vsel %vm3342, %v3294, 0
  %v3365 = vsel %vm3342, %v3299, 0
  %v3368 = vsel %vm3342, %v3304, 0
  %v3371 = vsel %vm3342, %v3309, 0
  %3373 = vmatprep.subr.mxu0 0.0
  %3374 = vmatpush1.msra.mxu0 %v3334
  %3375 = vmatprep.subr.mxu0 0.0
  %3376 = vmatpush1.msra.mxu0 %v3335
  %3377 = vmatprep.subr.mxu0 0.0
  %3378 = vmatpush1.msra.mxu0 %v3336
  %3379 = vmatprep.subr.mxu0 0.0
  %3380 = vmatpush1.msra.mxu0 %v3337
  %3381 = vmatprep.subr.mxu0 0.0
  %3382 = vmatpush1.msra.mxu0 %v3338
  %3383 = vmatprep.subr.mxu0 0.0
  %3384 = vmatpush1.msra.mxu0 %v3339
  %3385 = vmatprep.subr.mxu0 0.0
  %3386 = vmatpush1.msra.mxu0 %v3340
  %3387 = vmatprep.subr.mxu0 0.0
  %3388 = vmatpush1.msra.mxu0 %v3341
  %3389 = vmatprep.subr.mxu0 0.0
  %3390 = vmatpush1.msra.mxu0 0.0
  %3391 = vmatprep.subr.mxu0 0.0
  %3392 = vmatpush1.msra.mxu0 0.0
  %3393 = vmatprep.subr.mxu0 0.0
  %3394 = vmatpush1.msra.mxu0 0.0
  %3395 = vmatprep.subr.mxu0 0.0
  %3396 = vmatpush1.msra.mxu0 0.0
  %3397 = vmatprep.subr.mxu0 0.0
  %3398 = vmatpush1.msra.mxu0 0.0
  %3399 = vmatprep.subr.mxu0 0.0
  %3400 = vmatpush1.msra.mxu0 0.0
  %3401 = vmatprep.subr.mxu0 0.0
  %3402 = vmatpush1.msra.mxu0 0.0
  %3403 = vmatprep.subr.mxu0 0.0
  %3404 = vmatpush1.msra.mxu0 0.0
  %3405 = vmatprep.subr.mxu0 0.0
  %3406 = vmatpush1.msra.mxu0 0.0
  %3407 = vmatprep.subr.mxu0 0.0
  %3408 = vmatpush1.msra.mxu0 0.0
  %3409 = vmatprep.subr.mxu0 0.0
  %3410 = vmatpush1.msra.mxu0 0.0
  %3411 = vmatprep.subr.mxu0 0.0
  %3412 = vmatpush1.msra.mxu0 0.0
  %3413 = vmatprep.subr.mxu0 0.0
  %3414 = vmatpush1.msra.mxu0 0.0
  %3415 = vmatprep.subr.mxu0 0.0
  %3416 = vmatpush1.msra.mxu0 0.0
  %3417 = vmatprep.subr.mxu0 0.0
  %3418 = vmatpush1.msra.mxu0 0.0
  %3419 = vmatprep.subr.mxu0 0.0
  %3420 = vmatpush1.msra.mxu0 0.0
  %3421 = vmatprep.subr.mxu0 0.0
  %3422 = vmatpush1.msra.mxu0 0.0
  %3423 = vmatprep.subr.mxu0 0.0
  %3424 = vmatpush1.msra.mxu0 0.0
  %3425 = vmatprep.subr.mxu0 0.0
  %3426 = vmatpush1.msra.mxu0 0.0
  %3427 = vmatprep.subr.mxu0 0.0
  %3428 = vmatpush1.msra.mxu0 0.0
  %3429 = vmatprep.subr.mxu0 0.0
  %3430 = vmatpush1.msra.mxu0 0.0
  %3431 = vmatprep.subr.mxu0 0.0
  %3432 = vmatpush1.msra.mxu0 0.0
  %3433 = vmatprep.subr.mxu0 0.0
  %3434 = vmatpush1.msra.mxu0 0.0
  %3435 = vmatprep.subr.mxu0 0.0
  %3436 = vmatpush1.msra.mxu0 0.0
  %3437 = vmatprep.mubr.f32.mxu0 0.0
  %3438 = vmatmul.mubr.f32.gmra.mrb[0].mxu0 %v3344
  %v3439 = vpop.f32.mrb[0].mxu0
  %v3440 = vadd.f32 0.0, %v3439
  %v3441 = vpop.f32.mrb[0].mxu0
  %3442 = vmatprep.mubr.f32.mxu0 0.0
  %3443 = vmatmul.mubr.f32.gmra.mrb[0].mxu0 %v3347
  %v3444 = vpop.f32.mrb[0].mxu0
  %v3445 = vadd.f32 0.0, %v3444
  %v3446 = vpop.f32.mrb[0].mxu0
  %3447 = vmatprep.mubr.f32.mxu0 0.0
  %3448 = vmatmul.mubr.f32.gmra.mrb[0].mxu0 %v3350
  %v3449 = vpop.f32.mrb[0].mxu0
  %v3450 = vadd.f32 0.0, %v3449
  %v3451 = vpop.f32.mrb[0].mxu0
  %3452 = vmatprep.mubr.f32.mxu0 0.0
  %3453 = vmatmul.mubr.f32.gmra.mrb[0].mxu0 %v3353
  %v3454 = vpop.f32.mrb[0].mxu0
  %v3455 = vadd.f32 0.0, %v3454
  %v3456 = vpop.f32.mrb[0].mxu0
  %3457 = vmatprep.mubr.f32.mxu0 0.0
  %3458 = vmatmul.mubr.f32.gmra.mrb[0].mxu0 %v3356
  %v3459 = vpop.f32.mrb[0].mxu0
  %v3460 = vadd.f32 0.0, %v3459
  %v3461 = vpop.f32.mrb[0].mxu0
  %3462 = vmatprep.mubr.f32.mxu0 0.0
  %3463 = vmatmul.mubr.f32.gmra.mrb[0].mxu0 %v3359
  %v3464 = vpop.f32.mrb[0].mxu0
  %v3465 = vadd.f32 0.0, %v3464
  %v3466 = vpop.f32.mrb[0].mxu0
  %3467 = vmatprep.mubr.f32.mxu0 0.0
  %3468 = vmatmul.mubr.f32.gmra.mrb[0].mxu0 %v3362
  %v3469 = vpop.f32.mrb[0].mxu0
  %v3470 = vadd.f32 0.0, %v3469
  %v3471 = vpop.f32.mrb[0].mxu0
  %3472 = vmatprep.mubr.f32.mxu0 0.0
  %3473 = vmatmul.mubr.f32.gmra.mrb[0].mxu0 %v3365
  %v3474 = vpop.f32.mrb[0].mxu0
  %v3475 = vadd.f32 0.0, %v3474
  %v3476 = vpop.f32.mrb[0].mxu0
  %3477 = vmatprep.mubr.f32.mxu0 0.0
  %3478 = vmatmul.mubr.f32.gmra.mrb[0].mxu0 %v3368
  %v3479 = vpop.f32.mrb[0].mxu0
  %v3480 = vadd.f32 0.0, %v3479
  %v3481 = vpop.f32.mrb[0].mxu0
  %3482 = vmatprep.mubr.f32.mxu0 0.0
  %3483 = vmatmul.mubr.f32.gmra.mrb[0].mxu0 %v3371
  %v3484 = vpop.f32.mrb[0].mxu0
  %v3485 = vadd.f32 0.0, %v3484
  %v3486 = vpop.f32.mrb[0].mxu0
  %3487 = vdwg.mxu0
  %vm3488 = vcmask 654336
  %v3490 = vsel %vm3488, %v3323, 0
  %v3493 = vsel %vm3488, %v3324, 0
  %v3496 = vsel %vm3488, %v3325, 0
  %v3499 = vsel %vm3488, %v3326, 0
  %v3502 = vsel %vm3488, %v3327, 0
  %v3505 = vsel %vm3488, %v3328, 0
  %v3508 = vsel %vm3488, %v3329, 0
  %v3511 = vsel %vm3488, %v3330, 0
  %v3514 = vsel %vm3488, %v3331, 0
  %v3517 = vsel %vm3488, %v3332, 0
  %v3520 = vsel %vm3488, %v3333, 0
  %3522 = vmatprep.subr.mxu0 0.0
  %3523 = vmatpush1.msra.mxu0 %v3440
  %3524 = vmatprep.subr.mxu0 0.0
  %3525 = vmatpush1.msra.mxu0 %v3445
  %3526 = vmatprep.subr.mxu0 0.0
  %3527 = vmatpush1.msra.mxu0 %v3450
  %3528 = vmatprep.subr.mxu0 0.0
  %3529 = vmatpush1.msra.mxu0 %v3455
  %3530 = vmatprep.subr.mxu0 0.0
  %3531 = vmatpush1.msra.mxu0 %v3460
  %3532 = vmatprep.subr.mxu0 0.0
  %3533 = vmatpush1.msra.mxu0 %v3465
  %3534 = vmatprep.subr.mxu0 0.0
  %3535 = vmatpush1.msra.mxu0 %v3470
  %3536 = vmatprep.subr.mxu0 0.0
  %3537 = vmatpush1.msra.mxu0 %v3475
  %3538 = vmatprep.subr.mxu0 0.0
  %3539 = vmatpush1.msra.mxu0 %v3480
  %3540 = vmatprep.subr.mxu0 0.0
  %3541 = vmatpush1.msra.mxu0 %v3485
  %3542 = vmatprep.subr.mxu0 0.0
  %3543 = vmatpush1.msra.mxu0 0.0
  %3544 = vmatprep.subr.mxu0 0.0
  %3545 = vmatpush1.msra.mxu0 0.0
  %3546 = vmatprep.subr.mxu0 0.0
  %3547 = vmatpush1.msra.mxu0 0.0
  %3548 = vmatprep.subr.mxu0 0.0
  %3549 = vmatpush1.msra.mxu0 0.0
  %3550 = vmatprep.subr.mxu0 0.0
  %3551 = vmatpush1.msra.mxu0 0.0
  %3552 = vmatprep.subr.mxu0 0.0
  %3553 = vmatpush1.msra.mxu0 0.0
  %3554 = vmatprep.subr.mxu0 0.0
  %3555 = vmatpush1.msra.mxu0 0.0
  %3556 = vmatprep.subr.mxu0 0.0
  %3557 = vmatpush1.msra.mxu0 0.0
  %3558 = vmatprep.subr.mxu0 0.0
  %3559 = vmatpush1.msra.mxu0 0.0
  %3560 = vmatprep.subr.mxu0 0.0
  %3561 = vmatpush1.msra.mxu0 0.0
  %3562 = vmatprep.subr.mxu0 0.0
  %3563 = vmatpush1.msra.mxu0 0.0
  %3564 = vmatprep.subr.mxu0 0.0
  %3565 = vmatpush1.msra.mxu0 0.0
  %3566 = vmatprep.subr.mxu0 0.0
  %3567 = vmatpush1.msra.mxu0 0.0
  %3568 = vmatprep.subr.mxu0 0.0
  %3569 = vmatpush1.msra.mxu0 0.0
  %3570 = vmatprep.subr.mxu0 0.0
  %3571 = vmatpush1.msra.mxu0 0.0
  %3572 = vmatprep.subr.mxu0 0.0
  %3573 = vmatpush1.msra.mxu0 0.0
  %3574 = vmatprep.subr.mxu0 0.0
  %3575 = vmatpush1.msra.mxu0 0.0
  %3576 = vmatprep.subr.mxu0 0.0
  %3577 = vmatpush1.msra.mxu0 0.0
  %3578 = vmatprep.subr.mxu0 0.0
  %3579 = vmatpush1.msra.mxu0 0.0
  %3580 = vmatprep.subr.mxu0 0.0
  %3581 = vmatpush1.msra.mxu0 0.0
  %3582 = vmatprep.subr.mxu0 0.0
  %3583 = vmatpush1.msra.mxu0 0.0
  %3584 = vmatprep.subr.mxu0 0.0
  %3585 = vmatpush1.msra.mxu0 0.0
  %3586 = vmatprep.mubr.f32.mxu0 0.0
  %3587 = vmatmul.mubr.f32.gmra.mrb[0].mxu0 %v3490
  %v3588 = vpop.f32.mrb[0].mxu0
  %v3589 = vadd.f32 0.0, %v3588
  %v3590 = vpop.f32.mrb[0].mxu0
  %3591 = vmatprep.mubr.f32.mxu0 0.0
  %3592 = vmatmul.mubr.f32.gmra.mrb[0].mxu0 %v3493
  %v3593 = vpop.f32.mrb[0].mxu0
  %v3594 = vadd.f32 0.0, %v3593
  %v3595 = vpop.f32.mrb[0].mxu0
  %3596 = vmatprep.mubr.f32.mxu0 0.0
  %3597 = vmatmul.mubr.f32.gmra.mrb[0].mxu0 %v3496
  %v3598 = vpop.f32.mrb[0].mxu0
  %v3599 = vadd.f32 0.0, %v3598
  %v3600 = vpop.f32.mrb[0].mxu0
  %3601 = vmatprep.mubr.f32.mxu0 0.0
  %3602 = vmatmul.mubr.f32.gmra.mrb[0].mxu0 %v3499
  %v3603 = vpop.f32.mrb[0].mxu0
  %v3604 = vadd.f32 0.0, %v3603
  %v3605 = vpop.f32.mrb[0].mxu0
  %3606 = vmatprep.mubr.f32.mxu0 0.0
  %3607 = vmatmul.mubr.f32.gmra.mrb[0].mxu0 %v3502
  %v3608 = vpop.f32.mrb[0].mxu0
  %v3609 = vadd.f32 0.0, %v3608
  %v3610 = vpop.f32.mrb[0].mxu0
  %3611 = vmatprep.mubr.f32.mxu0 0.0
  %3612 = vmatmul.mubr.f32.gmra.mrb[0].mxu0 %v3505
  %v3613 = vpop.f32.mrb[0].mxu0
  %v3614 = vadd.f32 0.0, %v3613
  %v3615 = vpop.f32.mrb[0].mxu0
  %3616 = vmatprep.mubr.f32.mxu0 0.0
  %3617 = vmatmul.mubr.f32.gmra.mrb[0].mxu0 %v3508
  %v3618 = vpop.f32.mrb[0].mxu0
  %v3619 = vadd.f32 0.0, %v3618
  %v3620 = vpop.f32.mrb[0].mxu0
  %3621 = vmatprep.mubr.f32.mxu0 0.0
  %3622 = vmatmul.mubr.f32.gmra.mrb[0].mxu0 %v3511
  %v3623 = vpop.f32.mrb[0].mxu0
  %v3624 = vadd.f32 0.0, %v3623
  %v3625 = vpop.f32.mrb[0].mxu0
  %3626 = vmatprep.mubr.f32.mxu0 0.0
  %3627 = vmatmul.mubr.f32.gmra.mrb[0].mxu0 %v3514
  %v3628 = vpop.f32.mrb[0].mxu0
  %v3629 = vadd.f32 0.0, %v3628
  %v3630 = vpop.f32.mrb[0].mxu0
  %3631 = vmatprep.mubr.f32.mxu0 0.0
  %3632 = vmatmul.mubr.f32.gmra.mrb[0].mxu0 %v3517
  %v3633 = vpop.f32.mrb[0].mxu0
  %v3634 = vadd.f32 0.0, %v3633
  %v3635 = vpop.f32.mrb[0].mxu0
  %3636 = vmatprep.mubr.f32.mxu0 0.0
  %3637 = vmatmul.mubr.f32.gmra.mrb[0].mxu0 %v3520
  %v3638 = vpop.f32.mrb[0].mxu0
  %v3639 = vadd.f32 0.0, %v3638
  %v3640 = vpop.f32.mrb[0].mxu0
  %3641 = vdwg.mxu0
  %3643 = vset.pattern.permute.xlu0 0
  %3644 = vperm.xlu0 %3643, %v3312
  %v3645 = vpop.permute.xlu0 %3644
  %3648 = vset.pattern.permute.xlu0 0
  %3649 = vperm.xlu0 %3648, %v3313
  %v3650 = vpop.permute.xlu0 %3649
  %3653 = vset.pattern.permute.xlu0 0
  %3654 = vperm.xlu0 %3653, %v3314
  %v3655 = vpop.permute.xlu0 %3654
  %3658 = vset.pattern.permute.xlu0 0
  %3659 = vperm.xlu0 %3658, %v3315
  %v3660 = vpop.permute.xlu0 %3659
  %3663 = vset.pattern.permute.xlu0 0
  %3664 = vperm.xlu0 %3663, %v3316
  %v3665 = vpop.permute.xlu0 %3664
  %3668 = vset.pattern.permute.xlu0 0
  %3669 = vperm.xlu0 %3668, %v3317
  %v3670 = vpop.permute.xlu0 %3669
  %3673 = vset.pattern.permute.xlu0 0
  %3674 = vperm.xlu0 %3673, %v3318
  %v3675 = vpop.permute.xlu0 %3674
  %3678 = vset.pattern.permute.xlu0 0
  %3679 = vperm.xlu0 %3678, %v3319
  %v3680 = vpop.permute.xlu0 %3679
  %3683 = vset.pattern.permute.xlu0 0
  %3684 = vperm.xlu0 %3683, %v3320
  %v3685 = vpop.permute.xlu0 %3684
  %3688 = vset.pattern.permute.xlu0 0
  %3689 = vperm.xlu0 %3688, %v3321
  %v3690 = vpop.permute.xlu0 %3689
  %3693 = vset.pattern.permute.xlu0 0
  %3694 = vperm.xlu0 %3693, %v3322
  %v3695 = vpop.permute.xlu0 %3694
  %v3697 = vadd.f32 %v3645, %v3589
  %v3698 = vadd.f32 %v3650, %v3594
  %v3699 = vadd.f32 %v3655, %v3599
  %v3700 = vadd.f32 %v3660, %v3604
  %v3701 = vadd.f32 %v3665, %v3609
  %v3702 = vadd.f32 %v3670, %v3614
  %v3703 = vadd.f32 %v3675, %v3619
  %v3704 = vadd.f32 %v3680, %v3624
  %v3705 = vadd.f32 %v3685, %v3629
  %v3706 = vadd.f32 %v3690, %v3634
  %v3707 = vadd.f32 %v3695, %v3639
  %s3708 = scalar_lea.vmem %s11, 88
  %v3709 = vld [vmem:[%s3708] sm:$0xff]
  %v3710 = vld [vmem:[%s3708 + $0x8] sm:$0xff]
  %v3711 = vld [vmem:[%s3708 + $0x10] sm:$0xff]
  %v3712 = vld [vmem:[%s3708 + $0x18] sm:$0xff]
  %v3713 = vld [vmem:[%s3708 + $0x20] sm:$0xff]
  %v3714 = vld [vmem:[%s3708 + $0x28] sm:$0xff]
  %v3715 = vld [vmem:[%s3708 + $0x30] sm:$0xff]
  %v3716 = vld [vmem:[%s3708 + $0x38] sm:$0xff]
  %v3717 = vld [vmem:[%s3708 + $0x40] sm:$0xff]
  %v3718 = vld [vmem:[%s3708 + $0x48] sm:$0xff]
  %v3719 = vld [vmem:[%s3708 + $0x50] sm:$0xf]
  %s3720 = scalar_lea.vmem %s10, 64
  %v3721 = vld [vmem:[%s3720] sm:$0xff]
  %v3722 = vld [vmem:[%s3720 + $0x8] sm:$0xff]
  %v3723 = vld [vmem:[%s3720 + $0x10] sm:$0xff]
  %v3724 = vld [vmem:[%s3720 + $0x18] sm:$0xff]
  %v3725 = vld [vmem:[%s3720 + $0x20] sm:$0xff]
  %v3726 = vld [vmem:[%s3720 + $0x28] sm:$0xff]
  %v3727 = vld [vmem:[%s3720 + $0x30] sm:$0xff]
  %v3728 = vld [vmem:[%s3720 + $0x38] sm:$0xff]
  %3729 = vmatprep.subr.mxu0 0.0
  %3730 = vmatpush1.msra.mxu0 %v3721
  %3731 = vmatprep.subr.mxu0 0.0
  %3732 = vmatpush1.msra.mxu0 %v3722
  %3733 = vmatprep.subr.mxu0 0.0
  %3734 = vmatpush1.msra.mxu0 %v3723
  %3735 = vmatprep.subr.mxu0 0.0
  %3736 = vmatpush1.msra.mxu0 %v3724
  %3737 = vmatprep.subr.mxu0 0.0
  %3738 = vmatpush1.msra.mxu0 %v3725
  %3739 = vmatprep.subr.mxu0 0.0
  %3740 = vmatpush1.msra.mxu0 %v3726
  %3741 = vmatprep.subr.mxu0 0.0
  %3742 = vmatpush1.msra.mxu0 %v3727
  %3743 = vmatprep.subr.mxu0 0.0
  %3744 = vmatpush1.msra.mxu0 %v3728
  %3745 = vmatprep.subr.mxu0 0.0
  %3746 = vmatpush1.msra.mxu0 0.0
  %3747 = vmatprep.subr.mxu0 0.0
  %3748 = vmatpush1.msra.mxu0 0.0
  %3749 = vmatprep.subr.mxu0 0.0
  %3750 = vmatpush1.msra.mxu0 0.0
  %3751 = vmatprep.subr.mxu0 0.0
  %3752 = vmatpush1.msra.mxu0 0.0
  %3753 = vmatprep.subr.mxu0 0.0
  %3754 = vmatpush1.msra.mxu0 0.0
  %3755 = vmatprep.subr.mxu0 0.0
  %3756 = vmatpush1.msra.mxu0 0.0
  %3757 = vmatprep.subr.mxu0 0.0
  %3758 = vmatpush1.msra.mxu0 0.0
  %3759 = vmatprep.subr.mxu0 0.0
  %3760 = vmatpush1.msra.mxu0 0.0
  %3761 = vmatprep.subr.mxu0 0.0
  %3762 = vmatpush1.msra.mxu0 0.0
  %3763 = vmatprep.subr.mxu0 0.0
  %3764 = vmatpush1.msra.mxu0 0.0
  %3765 = vmatprep.subr.mxu0 0.0
  %3766 = vmatpush1.msra.mxu0 0.0
  %3767 = vmatprep.subr.mxu0 0.0
  %3768 = vmatpush1.msra.mxu0 0.0
  %3769 = vmatprep.subr.mxu0 0.0
  %3770 = vmatpush1.msra.mxu0 0.0
  %3771 = vmatprep.subr.mxu0 0.0
  %3772 = vmatpush1.msra.mxu0 0.0
  %3773 = vmatprep.subr.mxu0 0.0
  %3774 = vmatpush1.msra.mxu0 0.0
  %3775 = vmatprep.subr.mxu0 0.0
  %3776 = vmatpush1.msra.mxu0 0.0
  %3777 = vmatprep.subr.mxu0 0.0
  %3778 = vmatpush1.msra.mxu0 0.0
  %3779 = vmatprep.subr.mxu0 0.0
  %3780 = vmatpush1.msra.mxu0 0.0
  %3781 = vmatprep.subr.mxu0 0.0
  %3782 = vmatpush1.msra.mxu0 0.0
  %3783 = vmatprep.subr.mxu0 0.0
  %3784 = vmatpush1.msra.mxu0 0.0
  %3785 = vmatprep.subr.mxu0 0.0
  %3786 = vmatpush1.msra.mxu0 0.0
  %3787 = vmatprep.subr.mxu0 0.0
  %3788 = vmatpush1.msra.mxu0 0.0
  %3789 = vmatprep.subr.mxu0 0.0
  %3790 = vmatpush1.msra.mxu0 0.0
  %3791 = vmatprep.subr.mxu0 0.0
  %3792 = vmatpush1.msra.mxu0 0.0
  %3793 = vmatprep.mubr.f32.mxu0 0.0
  %3794 = vmatmul.mubr.f32.gmra.mrb[0].mxu0 %v3344
  %v3795 = vpop.f32.mrb[0].mxu0
  %v3796 = vadd.f32 0.0, %v3795
  %v3797 = vpop.f32.mrb[0].mxu0
  %3798 = vmatprep.mubr.f32.mxu0 0.0
  %3799 = vmatmul.mubr.f32.gmra.mrb[0].mxu0 %v3347
  %v3800 = vpop.f32.mrb[0].mxu0
  %v3801 = vadd.f32 0.0, %v3800
  %v3802 = vpop.f32.mrb[0].mxu0
  %3803 = vmatprep.mubr.f32.mxu0 0.0
  %3804 = vmatmul.mubr.f32.gmra.mrb[0].mxu0 %v3350
  %v3805 = vpop.f32.mrb[0].mxu0
  %v3806 = vadd.f32 0.0, %v3805
  %v3807 = vpop.f32.mrb[0].mxu0
  %3808 = vmatprep.mubr.f32.mxu0 0.0
  %3809 = vmatmul.mubr.f32.gmra.mrb[0].mxu0 %v3353
  %v3810 = vpop.f32.mrb[0].mxu0
  %v3811 = vadd.f32 0.0, %v3810
  %v3812 = vpop.f32.mrb[0].mxu0
  %3813 = vmatprep.mubr.f32.mxu0 0.0
  %3814 = vmatmul.mubr.f32.gmra.mrb[0].mxu0 %v3356
  %v3815 = vpop.f32.mrb[0].mxu0
  %v3816 = vadd.f32 0.0, %v3815
  %v3817 = vpop.f32.mrb[0].mxu0
  %3818 = vmatprep.mubr.f32.mxu0 0.0
  %3819 = vmatmul.mubr.f32.gmra.mrb[0].mxu0 %v3359
  %v3820 = vpop.f32.mrb[0].mxu0
  %v3821 = vadd.f32 0.0, %v3820
  %v3822 = vpop.f32.mrb[0].mxu0
  %3823 = vmatprep.mubr.f32.mxu0 0.0
  %3824 = vmatmul.mubr.f32.gmra.mrb[0].mxu0 %v3362
  %v3825 = vpop.f32.mrb[0].mxu0
  %v3826 = vadd.f32 0.0, %v3825
  %v3827 = vpop.f32.mrb[0].mxu0
  %3828 = vmatprep.mubr.f32.mxu0 0.0
  %3829 = vmatmul.mubr.f32.gmra.mrb[0].mxu0 %v3365
  %v3830 = vpop.f32.mrb[0].mxu0
  %v3831 = vadd.f32 0.0, %v3830
  %v3832 = vpop.f32.mrb[0].mxu0
  %3833 = vmatprep.mubr.f32.mxu0 0.0
  %3834 = vmatmul.mubr.f32.gmra.mrb[0].mxu0 %v3368
  %v3835 = vpop.f32.mrb[0].mxu0
  %v3836 = vadd.f32 0.0, %v3835
  %v3837 = vpop.f32.mrb[0].mxu0
  %3838 = vmatprep.mubr.f32.mxu0 0.0
  %3839 = vmatmul.mubr.f32.gmra.mrb[0].mxu0 %v3371
  %v3840 = vpop.f32.mrb[0].mxu0
  %v3841 = vadd.f32 0.0, %v3840
  %v3842 = vpop.f32.mrb[0].mxu0
  %3843 = vdwg.mxu0
  %v3845 = vsel %vm3488, %v3709, 0
  %v3848 = vsel %vm3488, %v3710, 0
  %v3851 = vsel %vm3488, %v3711, 0
  %v3854 = vsel %vm3488, %v3712, 0
  %v3857 = vsel %vm3488, %v3713, 0
  %v3860 = vsel %vm3488, %v3714, 0
  %v3863 = vsel %vm3488, %v3715, 0
  %v3866 = vsel %vm3488, %v3716, 0
  %v3869 = vsel %vm3488, %v3717, 0
  %v3872 = vsel %vm3488, %v3718, 0
  %v3875 = vsel %vm3488, %v3719, 0
  %3877 = vmatprep.subr.mxu0 0.0
  %3878 = vmatpush1.msra.mxu0 %v3796
  %3879 = vmatprep.subr.mxu0 0.0
  %3880 = vmatpush1.msra.mxu0 %v3801
  %3881 = vmatprep.subr.mxu0 0.0
  %3882 = vmatpush1.msra.mxu0 %v3806
  %3883 = vmatprep.subr.mxu0 0.0
  %3884 = vmatpush1.msra.mxu0 %v3811
  %3885 = vmatprep.subr.mxu0 0.0
  %3886 = vmatpush1.msra.mxu0 %v3816
  %3887 = vmatprep.subr.mxu0 0.0
  %3888 = vmatpush1.msra.mxu0 %v3821
  %3889 = vmatprep.subr.mxu0 0.0
  %3890 = vmatpush1.msra.mxu0 %v3826
  %3891 = vmatprep.subr.mxu0 0.0
  %3892 = vmatpush1.msra.mxu0 %v3831
  %3893 = vmatprep.subr.mxu0 0.0
  %3894 = vmatpush1.msra.mxu0 %v3836
  %3895 = vmatprep.subr.mxu0 0.0
  %3896 = vmatpush1.msra.mxu0 %v3841
  %3897 = vmatprep.subr.mxu0 0.0
  %3898 = vmatpush1.msra.mxu0 0.0
  %3899 = vmatprep.subr.mxu0 0.0
  %3900 = vmatpush1.msra.mxu0 0.0
  %3901 = vmatprep.subr.mxu0 0.0
  %3902 = vmatpush1.msra.mxu0 0.0
  %3903 = vmatprep.subr.mxu0 0.0
  %3904 = vmatpush1.msra.mxu0 0.0
  %3905 = vmatprep.subr.mxu0 0.0
  %3906 = vmatpush1.msra.mxu0 0.0
  %3907 = vmatprep.subr.mxu0 0.0
  %3908 = vmatpush1.msra.mxu0 0.0
  %3909 = vmatprep.subr.mxu0 0.0
  %3910 = vmatpush1.msra.mxu0 0.0
  %3911 = vmatprep.subr.mxu0 0.0
  %3912 = vmatpush1.msra.mxu0 0.0
  %3913 = vmatprep.subr.mxu0 0.0
  %3914 = vmatpush1.msra.mxu0 0.0
  %3915 = vmatprep.subr.mxu0 0.0
  %3916 = vmatpush1.msra.mxu0 0.0
  %3917 = vmatprep.subr.mxu0 0.0
  %3918 = vmatpush1.msra.mxu0 0.0
  %3919 = vmatprep.subr.mxu0 0.0
  %3920 = vmatpush1.msra.mxu0 0.0
  %3921 = vmatprep.subr.mxu0 0.0
  %3922 = vmatpush1.msra.mxu0 0.0
  %3923 = vmatprep.subr.mxu0 0.0
  %3924 = vmatpush1.msra.mxu0 0.0
  %3925 = vmatprep.subr.mxu0 0.0
  %3926 = vmatpush1.msra.mxu0 0.0
  %3927 = vmatprep.subr.mxu0 0.0
  %3928 = vmatpush1.msra.mxu0 0.0
  %3929 = vmatprep.subr.mxu0 0.0
  %3930 = vmatpush1.msra.mxu0 0.0
  %3931 = vmatprep.subr.mxu0 0.0
  %3932 = vmatpush1.msra.mxu0 0.0
  %3933 = vmatprep.subr.mxu0 0.0
  %3934 = vmatpush1.msra.mxu0 0.0
  %3935 = vmatprep.subr.mxu0 0.0
  %3936 = vmatpush1.msra.mxu0 0.0
  %3937 = vmatprep.subr.mxu0 0.0
  %3938 = vmatpush1.msra.mxu0 0.0
  %3939 = vmatprep.subr.mxu0 0.0
  %3940 = vmatpush1.msra.mxu0 0.0
  %3941 = vmatprep.mubr.f32.mxu0 0.0
  %3942 = vmatmul.mubr.f32.gmra.mrb[0].mxu0 %v3845
  %v3943 = vpop.f32.mrb[0].mxu0
  %v3944 = vadd.f32 0.0, %v3943
  %v3945 = vpop.f32.mrb[0].mxu0
  %3946 = vmatprep.mubr.f32.mxu0 0.0
  %3947 = vmatmul.mubr.f32.gmra.mrb[0].mxu0 %v3848
  %v3948 = vpop.f32.mrb[0].mxu0
  %v3949 = vadd.f32 0.0, %v3948
  %v3950 = vpop.f32.mrb[0].mxu0
  %3951 = vmatprep.mubr.f32.mxu0 0.0
  %3952 = vmatmul.mubr.f32.gmra.mrb[0].mxu0 %v3851
  %v3953 = vpop.f32.mrb[0].mxu0
  %v3954 = vadd.f32 0.0, %v3953
  %v3955 = vpop.f32.mrb[0].mxu0
  %3956 = vmatprep.mubr.f32.mxu0 0.0
  %3957 = vmatmul.mubr.f32.gmra.mrb[0].mxu0 %v3854
  %v3958 = vpop.f32.mrb[0].mxu0
  %v3959 = vadd.f32 0.0, %v3958
  %v3960 = vpop.f32.mrb[0].mxu0
  %3961 = vmatprep.mubr.f32.mxu0 0.0
  %3962 = vmatmul.mubr.f32.gmra.mrb[0].mxu0 %v3857
  %v3963 = vpop.f32.mrb[0].mxu0
  %v3964 = vadd.f32 0.0, %v3963
  %v3965 = vpop.f32.mrb[0].mxu0
  %3966 = vmatprep.mubr.f32.mxu0 0.0
  %3967 = vmatmul.mubr.f32.gmra.mrb[0].mxu0 %v3860
  %v3968 = vpop.f32.mrb[0].mxu0
  %v3969 = vadd.f32 0.0, %v3968
  %v3970 = vpop.f32.mrb[0].mxu0
  %3971 = vmatprep.mubr.f32.mxu0 0.0
  %3972 = vmatmul.mubr.f32.gmra.mrb[0].mxu0 %v3863
  %v3973 = vpop.f32.mrb[0].mxu0
  %v3974 = vadd.f32 0.0, %v3973
  %v3975 = vpop.f32.mrb[0].mxu0
  %3976 = vmatprep.mubr.f32.mxu0 0.0
  %3977 = vmatmul.mubr.f32.gmra.mrb[0].mxu0 %v3866
  %v3978 = vpop.f32.mrb[0].mxu0
  %v3979 = vadd.f32 0.0, %v3978
  %v3980 = vpop.f32.mrb[0].mxu0
  %3981 = vmatprep.mubr.f32.mxu0 0.0
  %3982 = vmatmul.mubr.f32.gmra.mrb[0].mxu0 %v3869
  %v3983 = vpop.f32.mrb[0].mxu0
  %v3984 = vadd.f32 0.0, %v3983
  %v3985 = vpop.f32.mrb[0].mxu0
  %3986 = vmatprep.mubr.f32.mxu0 0.0
  %3987 = vmatmul.mubr.f32.gmra.mrb[0].mxu0 %v3872
  %v3988 = vpop.f32.mrb[0].mxu0
  %v3989 = vadd.f32 0.0, %v3988
  %v3990 = vpop.f32.mrb[0].mxu0
  %3991 = vmatprep.mubr.f32.mxu0 0.0
  %3992 = vmatmul.mubr.f32.gmra.mrb[0].mxu0 %v3875
  %v3993 = vpop.f32.mrb[0].mxu0
  %v3994 = vadd.f32 0.0, %v3993
  %v3995 = vpop.f32.mrb[0].mxu0
  %3996 = vdwg.mxu0
  %v3997 = vadd.f32 %v3697, %v3944
  %v3998 = vadd.f32 %v3698, %v3949
  %v3999 = vadd.f32 %v3699, %v3954
  %v4000 = vadd.f32 %v3700, %v3959
  %v4001 = vadd.f32 %v3701, %v3964
  %v4002 = vadd.f32 %v3702, %v3969
  %v4003 = vadd.f32 %v3703, %v3974
  %v4004 = vadd.f32 %v3704, %v3979
  %v4005 = vadd.f32 %v3705, %v3984
  %v4006 = vadd.f32 %v3706, %v3989
  %v4007 = vadd.f32 %v3707, %v3994
  %s4008 = scalar_lea.vmem %s11, 176
  %v4009 = vld [vmem:[%s4008] sm:$0xff]
  %v4010 = vld [vmem:[%s4008 + $0x8] sm:$0xff]
  %v4011 = vld [vmem:[%s4008 + $0x10] sm:$0xff]
  %v4012 = vld [vmem:[%s4008 + $0x18] sm:$0xff]
  %v4013 = vld [vmem:[%s4008 + $0x20] sm:$0xff]
  %v4014 = vld [vmem:[%s4008 + $0x28] sm:$0xff]
  %v4015 = vld [vmem:[%s4008 + $0x30] sm:$0xff]
  %v4016 = vld [vmem:[%s4008 + $0x38] sm:$0xff]
  %v4017 = vld [vmem:[%s4008 + $0x40] sm:$0xff]
  %v4018 = vld [vmem:[%s4008 + $0x48] sm:$0xff]
  %v4019 = vld [vmem:[%s4008 + $0x50] sm:$0xf]
  %s4020 = scalar_lea.vmem %s10, 128
  %v4021 = vld [vmem:[%s4020] sm:$0xff]
  %v4022 = vld [vmem:[%s4020 + $0x8] sm:$0xff]
  %v4023 = vld [vmem:[%s4020 + $0x10] sm:$0xff]
  %v4024 = vld [vmem:[%s4020 + $0x18] sm:$0xff]
  %v4025 = vld [vmem:[%s4020 + $0x20] sm:$0xff]
  %v4026 = vld [vmem:[%s4020 + $0x28] sm:$0xff]
  %v4027 = vld [vmem:[%s4020 + $0x30] sm:$0xff]
  %v4028 = vld [vmem:[%s4020 + $0x38] sm:$0xff]
  %4029 = vmatprep.subr.mxu0 0.0
  %4030 = vmatpush1.msra.mxu0 %v4021
  %4031 = vmatprep.subr.mxu0 0.0
  %4032 = vmatpush1.msra.mxu0 %v4022
  %4033 = vmatprep.subr.mxu0 0.0
  %4034 = vmatpush1.msra.mxu0 %v4023
  %4035 = vmatprep.subr.mxu0 0.0
  %4036 = vmatpush1.msra.mxu0 %v4024
  %4037 = vmatprep.subr.mxu0 0.0
  %4038 = vmatpush1.msra.mxu0 %v4025
  %4039 = vmatprep.subr.mxu0 0.0
  %4040 = vmatpush1.msra.mxu0 %v4026
  %4041 = vmatprep.subr.mxu0 0.0
  %4042 = vmatpush1.msra.mxu0 %v4027
  %4043 = vmatprep.subr.mxu0 0.0
  %4044 = vmatpush1.msra.mxu0 %v4028
  %4045 = vmatprep.subr.mxu0 0.0
  %4046 = vmatpush1.msra.mxu0 0.0
  %4047 = vmatprep.subr.mxu0 0.0
  %4048 = vmatpush1.msra.mxu0 0.0
  %4049 = vmatprep.subr.mxu0 0.0
  %4050 = vmatpush1.msra.mxu0 0.0
  %4051 = vmatprep.subr.mxu0 0.0
  %4052 = vmatpush1.msra.mxu0 0.0
  %4053 = vmatprep.subr.mxu0 0.0
  %4054 = vmatpush1.msra.mxu0 0.0
  %4055 = vmatprep.subr.mxu0 0.0
  %4056 = vmatpush1.msra.mxu0 0.0
  %4057 = vmatprep.subr.mxu0 0.0
  %4058 = vmatpush1.msra.mxu0 0.0
  %4059 = vmatprep.subr.mxu0 0.0
  %4060 = vmatpush1.msra.mxu0 0.0
  %4061 = vmatprep.subr.mxu0 0.0
  %4062 = vmatpush1.msra.mxu0 0.0
  %4063 = vmatprep.subr.mxu0 0.0
  %4064 = vmatpush1.msra.mxu0 0.0
  %4065 = vmatprep.subr.mxu0 0.0
  %4066 = vmatpush1.msra.mxu0 0.0
  %4067 = vmatprep.subr.mxu0 0.0
  %4068 = vmatpush1.msra.mxu0 0.0
  %4069 = vmatprep.subr.mxu0 0.0
  %4070 = vmatpush1.msra.mxu0 0.0
  %4071 = vmatprep.subr.mxu0 0.0
  %4072 = vmatpush1.msra.mxu0 0.0
  %4073 = vmatprep.subr.mxu0 0.0
  %4074 = vmatpush1.msra.mxu0 0.0
  %4075 = vmatprep.subr.mxu0 0.0
  %4076 = vmatpush1.msra.mxu0 0.0
  %4077 = vmatprep.subr.mxu0 0.0
  %4078 = vmatpush1.msra.mxu0 0.0
  %4079 = vmatprep.subr.mxu0 0.0
  %4080 = vmatpush1.msra.mxu0 0.0
  %4081 = vmatprep.subr.mxu0 0.0
  %4082 = vmatpush1.msra.mxu0 0.0
  %4083 = vmatprep.subr.mxu0 0.0
  %4084 = vmatpush1.msra.mxu0 0.0
  %4085 = vmatprep.subr.mxu0 0.0
  %4086 = vmatpush1.msra.mxu0 0.0
  %4087 = vmatprep.subr.mxu0 0.0
  %4088 = vmatpush1.msra.mxu0 0.0
  %4089 = vmatprep.subr.mxu0 0.0
  %4090 = vmatpush1.msra.mxu0 0.0
  %4091 = vmatprep.subr.mxu0 0.0
  %4092 = vmatpush1.msra.mxu0 0.0
  %4093 = vmatprep.mubr.f32.mxu0 0.0
  %4094 = vmatmul.mubr.f32.gmra.mrb[0].mxu0 %v3344
  %v4095 = vpop.f32.mrb[0].mxu0
  %v4096 = vadd.f32 0.0, %v4095
  %v4097 = vpop.f32.mrb[0].mxu0
  %4098 = vmatprep.mubr.f32.mxu0 0.0
  %4099 = vmatmul.mubr.f32.gmra.mrb[0].mxu0 %v3347
  %v4100 = vpop.f32.mrb[0].mxu0
  %v4101 = vadd.f32 0.0, %v4100
  %v4102 = vpop.f32.mrb[0].mxu0
  %4103 = vmatprep.mubr.f32.mxu0 0.0
  %4104 = vmatmul.mubr.f32.gmra.mrb[0].mxu0 %v3350
  %v4105 = vpop.f32.mrb[0].mxu0
  %v4106 = vadd.f32 0.0, %v4105
  %v4107 = vpop.f32.mrb[0].mxu0
  %4108 = vmatprep.mubr.f32.mxu0 0.0
  %4109 = vmatmul.mubr.f32.gmra.mrb[0].mxu0 %v3353
  %v4110 = vpop.f32.mrb[0].mxu0
  %v4111 = vadd.f32 0.0, %v4110
  %v4112 = vpop.f32.mrb[0].mxu0
  %4113 = vmatprep.mubr.f32.mxu0 0.0
  %4114 = vmatmul.mubr.f32.gmra.mrb[0].mxu0 %v3356
  %v4115 = vpop.f32.mrb[0].mxu0
  %v4116 = vadd.f32 0.0, %v4115
  %v4117 = vpop.f32.mrb[0].mxu0
  %4118 = vmatprep.mubr.f32.mxu0 0.0
  %4119 = vmatmul.mubr.f32.gmra.mrb[0].mxu0 %v3359
  %v4120 = vpop.f32.mrb[0].mxu0
  %v4121 = vadd.f32 0.0, %v4120
  %v4122 = vpop.f32.mrb[0].mxu0
  %4123 = vmatprep.mubr.f32.mxu0 0.0
  %4124 = vmatmul.mubr.f32.gmra.mrb[0].mxu0 %v3362
  %v4125 = vpop.f32.mrb[0].mxu0
  %v4126 = vadd.f32 0.0, %v4125
  %v4127 = vpop.f32.mrb[0].mxu0
  %4128 = vmatprep.mubr.f32.mxu0 0.0
  %4129 = vmatmul.mubr.f32.gmra.mrb[0].mxu0 %v3365
  %v4130 = vpop.f32.mrb[0].mxu0
  %v4131 = vadd.f32 0.0, %v4130
  %v4132 = vpop.f32.mrb[0].mxu0
  %4133 = vmatprep.mubr.f32.mxu0 0.0
  %4134 = vmatmul.mubr.f32.gmra.mrb[0].mxu0 %v3368
  %v4135 = vpop.f32.mrb[0].mxu0
  %v4136 = vadd.f32 0.0, %v4135
  %v4137 = vpop.f32.mrb[0].mxu0
  %4138 = vmatprep.mubr.f32.mxu0 0.0
  %4139 = vmatmul.mubr.f32.gmra.mrb[0].mxu0 %v3371
  %v4140 = vpop.f32.mrb[0].mxu0
  %v4141 = vadd.f32 0.0, %v4140
  %v4142 = vpop.f32.mrb[0].mxu0
  %4143 = vdwg.mxu0
  %v4145 = vsel %vm3488, %v4009, 0
  %v4148 = vsel %vm3488, %v4010, 0
  %v4151 = vsel %vm3488, %v4011, 0
  %v4154 = vsel %vm3488, %v4012, 0
  %v4157 = vsel %vm3488, %v4013, 0
  %v4160 = vsel %vm3488, %v4014, 0
  %v4163 = vsel %vm3488, %v4015, 0
  %v4166 = vsel %vm3488, %v4016, 0
  %v4169 = vsel %vm3488, %v4017, 0
  %v4172 = vsel %vm3488, %v4018, 0
  %v4175 = vsel %vm3488, %v4019, 0
  %4177 = vmatprep.subr.mxu0 0.0
  %4178 = vmatpush1.msra.mxu0 %v4096
  %4179 = vmatprep.subr.mxu0 0.0
  %4180 = vmatpush1.msra.mxu0 %v4101
  %4181 = vmatprep.subr.mxu0 0.0
  %4182 = vmatpush1.msra.mxu0 %v4106
  %4183 = vmatprep.subr.mxu0 0.0
  %4184 = vmatpush1.msra.mxu0 %v4111
  %4185 = vmatprep.subr.mxu0 0.0
  %4186 = vmatpush1.msra.mxu0 %v4116
  %4187 = vmatprep.subr.mxu0 0.0
  %4188 = vmatpush1.msra.mxu0 %v4121
  %4189 = vmatprep.subr.mxu0 0.0
  %4190 = vmatpush1.msra.mxu0 %v4126
  %4191 = vmatprep.subr.mxu0 0.0
  %4192 = vmatpush1.msra.mxu0 %v4131
  %4193 = vmatprep.subr.mxu0 0.0
  %4194 = vmatpush1.msra.mxu0 %v4136
  %4195 = vmatprep.subr.mxu0 0.0
  %4196 = vmatpush1.msra.mxu0 %v4141
  %4197 = vmatprep.subr.mxu0 0.0
  %4198 = vmatpush1.msra.mxu0 0.0
  %4199 = vmatprep.subr.mxu0 0.0
  %4200 = vmatpush1.msra.mxu0 0.0
  %4201 = vmatprep.subr.mxu0 0.0
  %4202 = vmatpush1.msra.mxu0 0.0
  %4203 = vmatprep.subr.mxu0 0.0
  %4204 = vmatpush1.msra.mxu0 0.0
  %4205 = vmatprep.subr.mxu0 0.0
  %4206 = vmatpush1.msra.mxu0 0.0
  %4207 = vmatprep.subr.mxu0 0.0
  %4208 = vmatpush1.msra.mxu0 0.0
  %4209 = vmatprep.subr.mxu0 0.0
  %4210 = vmatpush1.msra.mxu0 0.0
  %4211 = vmatprep.subr.mxu0 0.0
  %4212 = vmatpush1.msra.mxu0 0.0
  %4213 = vmatprep.subr.mxu0 0.0
  %4214 = vmatpush1.msra.mxu0 0.0
  %4215 = vmatprep.subr.mxu0 0.0
  %4216 = vmatpush1.msra.mxu0 0.0
  %4217 = vmatprep.subr.mxu0 0.0
  %4218 = vmatpush1.msra.mxu0 0.0
  %4219 = vmatprep.subr.mxu0 0.0
  %4220 = vmatpush1.msra.mxu0 0.0
  %4221 = vmatprep.subr.mxu0 0.0
  %4222 = vmatpush1.msra.mxu0 0.0
  %4223 = vmatprep.subr.mxu0 0.0
  %4224 = vmatpush1.msra.mxu0 0.0
  %4225 = vmatprep.subr.mxu0 0.0
  %4226 = vmatpush1.msra.mxu0 0.0
  %4227 = vmatprep.subr.mxu0 0.0
  %4228 = vmatpush1.msra.mxu0 0.0
  %4229 = vmatprep.subr.mxu0 0.0
  %4230 = vmatpush1.msra.mxu0 0.0
  %4231 = vmatprep.subr.mxu0 0.0
  %4232 = vmatpush1.msra.mxu0 0.0
  %4233 = vmatprep.subr.mxu0 0.0
  %4234 = vmatpush1.msra.mxu0 0.0
  %4235 = vmatprep.subr.mxu0 0.0
  %4236 = vmatpush1.msra.mxu0 0.0
  %4237 = vmatprep.subr.mxu0 0.0
  %4238 = vmatpush1.msra.mxu0 0.0
  %4239 = vmatprep.subr.mxu0 0.0
  %4240 = vmatpush1.msra.mxu0 0.0
  %4241 = vmatprep.mubr.f32.mxu0 0.0
  %4242 = vmatmul.mubr.f32.gmra.mrb[0].mxu0 %v4145
  %v4243 = vpop.f32.mrb[0].mxu0
  %v4244 = vadd.f32 0.0, %v4243
  %v4245 = vpop.f32.mrb[0].mxu0
  %4246 = vmatprep.mubr.f32.mxu0 0.0
  %4247 = vmatmul.mubr.f32.gmra.mrb[0].mxu0 %v4148
  %v4248 = vpop.f32.mrb[0].mxu0
  %v4249 = vadd.f32 0.0, %v4248
  %v4250 = vpop.f32.mrb[0].mxu0
  %4251 = vmatprep.mubr.f32.mxu0 0.0
  %4252 = vmatmul.mubr.f32.gmra.mrb[0].mxu0 %v4151
  %v4253 = vpop.f32.mrb[0].mxu0
  %v4254 = vadd.f32 0.0, %v4253
  %v4255 = vpop.f32.mrb[0].mxu0
  %4256 = vmatprep.mubr.f32.mxu0 0.0
  %4257 = vmatmul.mubr.f32.gmra.mrb[0].mxu0 %v4154
  %v4258 = vpop.f32.mrb[0].mxu0
  %v4259 = vadd.f32 0.0, %v4258
  %v4260 = vpop.f32.mrb[0].mxu0
  %4261 = vmatprep.mubr.f32.mxu0 0.0
  %4262 = vmatmul.mubr.f32.gmra.mrb[0].mxu0 %v4157
  %v4263 = vpop.f32.mrb[0].mxu0
  %v4264 = vadd.f32 0.0, %v4263
  %v4265 = vpop.f32.mrb[0].mxu0
  %4266 = vmatprep.mubr.f32.mxu0 0.0
  %4267 = vmatmul.mubr.f32.gmra.mrb[0].mxu0 %v4160
  %v4268 = vpop.f32.mrb[0].mxu0
  %v4269 = vadd.f32 0.0, %v4268
  %v4270 = vpop.f32.mrb[0].mxu0
  %4271 = vmatprep.mubr.f32.mxu0 0.0
  %4272 = vmatmul.mubr.f32.gmra.mrb[0].mxu0 %v4163
  %v4273 = vpop.f32.mrb[0].mxu0
  %v4274 = vadd.f32 0.0, %v4273
  %v4275 = vpop.f32.mrb[0].mxu0
  %4276 = vmatprep.mubr.f32.mxu0 0.0
  %4277 = vmatmul.mubr.f32.gmra.mrb[0].mxu0 %v4166
  %v4278 = vpop.f32.mrb[0].mxu0
  %v4279 = vadd.f32 0.0, %v4278
  %v4280 = vpop.f32.mrb[0].mxu0
  %4281 = vmatprep.mubr.f32.mxu0 0.0
  %4282 = vmatmul.mubr.f32.gmra.mrb[0].mxu0 %v4169
  %v4283 = vpop.f32.mrb[0].mxu0
  %v4284 = vadd.f32 0.0, %v4283
  %v4285 = vpop.f32.mrb[0].mxu0
  %4286 = vmatprep.mubr.f32.mxu0 0.0
  %4287 = vmatmul.mubr.f32.gmra.mrb[0].mxu0 %v4172
  %v4288 = vpop.f32.mrb[0].mxu0
  %v4289 = vadd.f32 0.0, %v4288
  %v4290 = vpop.f32.mrb[0].mxu0
  %4291 = vmatprep.mubr.f32.mxu0 0.0
  %4292 = vmatmul.mubr.f32.gmra.mrb[0].mxu0 %v4175
  %v4293 = vpop.f32.mrb[0].mxu0
  %v4294 = vadd.f32 0.0, %v4293
  %v4295 = vpop.f32.mrb[0].mxu0
  %4296 = vdwg.mxu0
  %v4297 = vadd.f32 %v3997, %v4244
  %v4298 = vadd.f32 %v3998, %v4249
  %v4299 = vadd.f32 %v3999, %v4254
  %v4300 = vadd.f32 %v4000, %v4259
  %v4301 = vadd.f32 %v4001, %v4264
  %v4302 = vadd.f32 %v4002, %v4269
  %v4303 = vadd.f32 %v4003, %v4274
  %v4304 = vadd.f32 %v4004, %v4279
  %v4305 = vadd.f32 %v4005, %v4284
  %v4306 = vadd.f32 %v4006, %v4289
  %v4307 = vadd.f32 %v4007, %v4294
  %s4308 = scalar_lea.vmem %s11, 264
  %v4309 = vld [vmem:[%s4308] sm:$0xff]
  %v4310 = vld [vmem:[%s4308 + $0x8] sm:$0xff]
  %v4311 = vld [vmem:[%s4308 + $0x10] sm:$0xff]
  %v4312 = vld [vmem:[%s4308 + $0x18] sm:$0xff]
  %v4313 = vld [vmem:[%s4308 + $0x20] sm:$0xff]
  %v4314 = vld [vmem:[%s4308 + $0x28] sm:$0xff]
  %v4315 = vld [vmem:[%s4308 + $0x30] sm:$0xff]
  %v4316 = vld [vmem:[%s4308 + $0x38] sm:$0xff]
  %v4317 = vld [vmem:[%s4308 + $0x40] sm:$0xff]
  %v4318 = vld [vmem:[%s4308 + $0x48] sm:$0xff]
  %v4319 = vld [vmem:[%s4308 + $0x50] sm:$0xf]
  %s4320 = scalar_lea.vmem %s10, 192
  %v4321 = vld [vmem:[%s4320] sm:$0xff]
  %v4322 = vld [vmem:[%s4320 + $0x8] sm:$0xff]
  %v4323 = vld [vmem:[%s4320 + $0x10] sm:$0xff]
  %v4324 = vld [vmem:[%s4320 + $0x18] sm:$0xff]
  %v4325 = vld [vmem:[%s4320 + $0x20] sm:$0xff]
  %v4326 = vld [vmem:[%s4320 + $0x28] sm:$0xff]
  %v4327 = vld [vmem:[%s4320 + $0x30] sm:$0xff]
  %v4328 = vld [vmem:[%s4320 + $0x38] sm:$0xff]
  %4329 = vmatprep.subr.mxu0 0.0
  %4330 = vmatpush1.msra.mxu0 %v4321
  %4331 = vmatprep.subr.mxu0 0.0
  %4332 = vmatpush1.msra.mxu0 %v4322
  %4333 = vmatprep.subr.mxu0 0.0
  %4334 = vmatpush1.msra.mxu0 %v4323
  %4335 = vmatprep.subr.mxu0 0.0
  %4336 = vmatpush1.msra.mxu0 %v4324
  %4337 = vmatprep.subr.mxu0 0.0
  %4338 = vmatpush1.msra.mxu0 %v4325
  %4339 = vmatprep.subr.mxu0 0.0
  %4340 = vmatpush1.msra.mxu0 %v4326
  %4341 = vmatprep.subr.mxu0 0.0
  %4342 = vmatpush1.msra.mxu0 %v4327
  %4343 = vmatprep.subr.mxu0 0.0
  %4344 = vmatpush1.msra.mxu0 %v4328
  %4345 = vmatprep.subr.mxu0 0.0
  %4346 = vmatpush1.msra.mxu0 0.0
  %4347 = vmatprep.subr.mxu0 0.0
  %4348 = vmatpush1.msra.mxu0 0.0
  %4349 = vmatprep.subr.mxu0 0.0
  %4350 = vmatpush1.msra.mxu0 0.0
  %4351 = vmatprep.subr.mxu0 0.0
  %4352 = vmatpush1.msra.mxu0 0.0
  %4353 = vmatprep.subr.mxu0 0.0
  %4354 = vmatpush1.msra.mxu0 0.0
  %4355 = vmatprep.subr.mxu0 0.0
  %4356 = vmatpush1.msra.mxu0 0.0
  %4357 = vmatprep.subr.mxu0 0.0
  %4358 = vmatpush1.msra.mxu0 0.0
  %4359 = vmatprep.subr.mxu0 0.0
  %4360 = vmatpush1.msra.mxu0 0.0
  %4361 = vmatprep.subr.mxu0 0.0
  %4362 = vmatpush1.msra.mxu0 0.0
  %4363 = vmatprep.subr.mxu0 0.0
  %4364 = vmatpush1.msra.mxu0 0.0
  %4365 = vmatprep.subr.mxu0 0.0
  %4366 = vmatpush1.msra.mxu0 0.0
  %4367 = vmatprep.subr.mxu0 0.0
  %4368 = vmatpush1.msra.mxu0 0.0
  %4369 = vmatprep.subr.mxu0 0.0
  %4370 = vmatpush1.msra.mxu0 0.0
  %4371 = vmatprep.subr.mxu0 0.0
  %4372 = vmatpush1.msra.mxu0 0.0
  %4373 = vmatprep.subr.mxu0 0.0
  %4374 = vmatpush1.msra.mxu0 0.0
  %4375 = vmatprep.subr.mxu0 0.0
  %4376 = vmatpush1.msra.mxu0 0.0
  %4377 = vmatprep.subr.mxu0 0.0
  %4378 = vmatpush1.msra.mxu0 0.0
  %4379 = vmatprep.subr.mxu0 0.0
  %4380 = vmatpush1.msra.mxu0 0.0
  %4381 = vmatprep.subr.mxu0 0.0
  %4382 = vmatpush1.msra.mxu0 0.0
  %4383 = vmatprep.subr.mxu0 0.0
  %4384 = vmatpush1.msra.mxu0 0.0
  %4385 = vmatprep.subr.mxu0 0.0
  %4386 = vmatpush1.msra.mxu0 0.0
  %4387 = vmatprep.subr.mxu0 0.0
  %4388 = vmatpush1.msra.mxu0 0.0
  %4389 = vmatprep.subr.mxu0 0.0
  %4390 = vmatpush1.msra.mxu0 0.0
  %4391 = vmatprep.subr.mxu0 0.0
  %4392 = vmatpush1.msra.mxu0 0.0
  %4393 = vmatprep.mubr.f32.mxu0 0.0
  %4394 = vmatmul.mubr.f32.gmra.mrb[0].mxu0 %v3344
  %v4395 = vpop.f32.mrb[0].mxu0
  %v4396 = vadd.f32 0.0, %v4395
  %v4397 = vpop.f32.mrb[0].mxu0
  %4398 = vmatprep.mubr.f32.mxu0 0.0
  %4399 = vmatmul.mubr.f32.gmra.mrb[0].mxu0 %v3347
  %v4400 = vpop.f32.mrb[0].mxu0
  %v4401 = vadd.f32 0.0, %v4400
  %v4402 = vpop.f32.mrb[0].mxu0
  %4403 = vmatprep.mubr.f32.mxu0 0.0
  %4404 = vmatmul.mubr.f32.gmra.mrb[0].mxu0 %v3350
  %v4405 = vpop.f32.mrb[0].mxu0
  %v4406 = vadd.f32 0.0, %v4405
  %v4407 = vpop.f32.mrb[0].mxu0
  %4408 = vmatprep.mubr.f32.mxu0 0.0
  %4409 = vmatmul.mubr.f32.gmra.mrb[0].mxu0 %v3353
  %v4410 = vpop.f32.mrb[0].mxu0
  %v4411 = vadd.f32 0.0, %v4410
  %v4412 = vpop.f32.mrb[0].mxu0
  %4413 = vmatprep.mubr.f32.mxu0 0.0
  %4414 = vmatmul.mubr.f32.gmra.mrb[0].mxu0 %v3356
  %v4415 = vpop.f32.mrb[0].mxu0
  %v4416 = vadd.f32 0.0, %v4415
  %v4417 = vpop.f32.mrb[0].mxu0
  %4418 = vmatprep.mubr.f32.mxu0 0.0
  %4419 = vmatmul.mubr.f32.gmra.mrb[0].mxu0 %v3359
  %v4420 = vpop.f32.mrb[0].mxu0
  %v4421 = vadd.f32 0.0, %v4420
  %v4422 = vpop.f32.mrb[0].mxu0
  %4423 = vmatprep.mubr.f32.mxu0 0.0
  %4424 = vmatmul.mubr.f32.gmra.mrb[0].mxu0 %v3362
  %v4425 = vpop.f32.mrb[0].mxu0
  %v4426 = vadd.f32 0.0, %v4425
  %v4427 = vpop.f32.mrb[0].mxu0
  %4428 = vmatprep.mubr.f32.mxu0 0.0
  %4429 = vmatmul.mubr.f32.gmra.mrb[0].mxu0 %v3365
  %v4430 = vpop.f32.mrb[0].mxu0
  %v4431 = vadd.f32 0.0, %v4430
  %v4432 = vpop.f32.mrb[0].mxu0
  %4433 = vmatprep.mubr.f32.mxu0 0.0
  %4434 = vmatmul.mubr.f32.gmra.mrb[0].mxu0 %v3368
  %v4435 = vpop.f32.mrb[0].mxu0
  %v4436 = vadd.f32 0.0, %v4435
  %v4437 = vpop.f32.mrb[0].mxu0
  %4438 = vmatprep.mubr.f32.mxu0 0.0
  %4439 = vmatmul.mubr.f32.gmra.mrb[0].mxu0 %v3371
  %v4440 = vpop.f32.mrb[0].mxu0
  %v4441 = vadd.f32 0.0, %v4440
  %v4442 = vpop.f32.mrb[0].mxu0
  %4443 = vdwg.mxu0
  %v4445 = vsel %vm3488, %v4309, 0
  %v4448 = vsel %vm3488, %v4310, 0
  %v4451 = vsel %vm3488, %v4311, 0
  %v4454 = vsel %vm3488, %v4312, 0
  %v4457 = vsel %vm3488, %v4313, 0
  %v4460 = vsel %vm3488, %v4314, 0
  %v4463 = vsel %vm3488, %v4315, 0
  %v4466 = vsel %vm3488, %v4316, 0
  %v4469 = vsel %vm3488, %v4317, 0
  %v4472 = vsel %vm3488, %v4318, 0
  %v4475 = vsel %vm3488, %v4319, 0
  %4477 = vmatprep.subr.mxu0 0.0
  %4478 = vmatpush1.msra.mxu0 %v4396
  %4479 = vmatprep.subr.mxu0 0.0
  %4480 = vmatpush1.msra.mxu0 %v4401
  %4481 = vmatprep.subr.mxu0 0.0
  %4482 = vmatpush1.msra.mxu0 %v4406
  %4483 = vmatprep.subr.mxu0 0.0
  %4484 = vmatpush1.msra.mxu0 %v4411
  %4485 = vmatprep.subr.mxu0 0.0
  %4486 = vmatpush1.msra.mxu0 %v4416
  %4487 = vmatprep.subr.mxu0 0.0
  %4488 = vmatpush1.msra.mxu0 %v4421
  %4489 = vmatprep.subr.mxu0 0.0
  %4490 = vmatpush1.msra.mxu0 %v4426
  %4491 = vmatprep.subr.mxu0 0.0
  %4492 = vmatpush1.msra.mxu0 %v4431
  %4493 = vmatprep.subr.mxu0 0.0
  %4494 = vmatpush1.msra.mxu0 %v4436
  %4495 = vmatprep.subr.mxu0 0.0
  %4496 = vmatpush1.msra.mxu0 %v4441
  %4497 = vmatprep.subr.mxu0 0.0
  %4498 = vmatpush1.msra.mxu0 0.0
  %4499 = vmatprep.subr.mxu0 0.0
  %4500 = vmatpush1.msra.mxu0 0.0
  %4501 = vmatprep.subr.mxu0 0.0
  %4502 = vmatpush1.msra.mxu0 0.0
  %4503 = vmatprep.subr.mxu0 0.0
  %4504 = vmatpush1.msra.mxu0 0.0
  %4505 = vmatprep.subr.mxu0 0.0
  %4506 = vmatpush1.msra.mxu0 0.0
  %4507 = vmatprep.subr.mxu0 0.0
  %4508 = vmatpush1.msra.mxu0 0.0
  %4509 = vmatprep.subr.mxu0 0.0
  %4510 = vmatpush1.msra.mxu0 0.0
  %4511 = vmatprep.subr.mxu0 0.0
  %4512 = vmatpush1.msra.mxu0 0.0
  %4513 = vmatprep.subr.mxu0 0.0
  %4514 = vmatpush1.msra.mxu0 0.0
  %4515 = vmatprep.subr.mxu0 0.0
  %4516 = vmatpush1.msra.mxu0 0.0
  %4517 = vmatprep.subr.mxu0 0.0
  %4518 = vmatpush1.msra.mxu0 0.0
  %4519 = vmatprep.subr.mxu0 0.0
  %4520 = vmatpush1.msra.mxu0 0.0
  %4521 = vmatprep.subr.mxu0 0.0
  %4522 = vmatpush1.msra.mxu0 0.0
  %4523 = vmatprep.subr.mxu0 0.0
  %4524 = vmatpush1.msra.mxu0 0.0
  %4525 = vmatprep.subr.mxu0 0.0
  %4526 = vmatpush1.msra.mxu0 0.0
  %4527 = vmatprep.subr.mxu0 0.0
  %4528 = vmatpush1.msra.mxu0 0.0
  %4529 = vmatprep.subr.mxu0 0.0
  %4530 = vmatpush1.msra.mxu0 0.0
  %4531 = vmatprep.subr.mxu0 0.0
  %4532 = vmatpush1.msra.mxu0 0.0
  %4533 = vmatprep.subr.mxu0 0.0
  %4534 = vmatpush1.msra.mxu0 0.0
  %4535 = vmatprep.subr.mxu0 0.0
  %4536 = vmatpush1.msra.mxu0 0.0
  %4537 = vmatprep.subr.mxu0 0.0
  %4538 = vmatpush1.msra.mxu0 0.0
  %4539 = vmatprep.subr.mxu0 0.0
  %4540 = vmatpush1.msra.mxu0 0.0
  %4541 = vmatprep.mubr.f32.mxu0 0.0
  %4542 = vmatmul.mubr.f32.gmra.mrb[0].mxu0 %v4445
  %v4543 = vpop.f32.mrb[0].mxu0
  %v4544 = vadd.f32 0.0, %v4543
  %v4545 = vpop.f32.mrb[0].mxu0
  %4546 = vmatprep.mubr.f32.mxu0 0.0
  %4547 = vmatmul.mubr.f32.gmra.mrb[0].mxu0 %v4448
  %v4548 = vpop.f32.mrb[0].mxu0
  %v4549 = vadd.f32 0.0, %v4548
  %v4550 = vpop.f32.mrb[0].mxu0
  %4551 = vmatprep.mubr.f32.mxu0 0.0
  %4552 = vmatmul.mubr.f32.gmra.mrb[0].mxu0 %v4451
  %v4553 = vpop.f32.mrb[0].mxu0
  %v4554 = vadd.f32 0.0, %v4553
  %v4555 = vpop.f32.mrb[0].mxu0
  %4556 = vmatprep.mubr.f32.mxu0 0.0
  %4557 = vmatmul.mubr.f32.gmra.mrb[0].mxu0 %v4454
  %v4558 = vpop.f32.mrb[0].mxu0
  %v4559 = vadd.f32 0.0, %v4558
  %v4560 = vpop.f32.mrb[0].mxu0
  %4561 = vmatprep.mubr.f32.mxu0 0.0
  %4562 = vmatmul.mubr.f32.gmra.mrb[0].mxu0 %v4457
  %v4563 = vpop.f32.mrb[0].mxu0
  %v4564 = vadd.f32 0.0, %v4563
  %v4565 = vpop.f32.mrb[0].mxu0
  %4566 = vmatprep.mubr.f32.mxu0 0.0
  %4567 = vmatmul.mubr.f32.gmra.mrb[0].mxu0 %v4460
  %v4568 = vpop.f32.mrb[0].mxu0
  %v4569 = vadd.f32 0.0, %v4568
  %v4570 = vpop.f32.mrb[0].mxu0
  %4571 = vmatprep.mubr.f32.mxu0 0.0
  %4572 = vmatmul.mubr.f32.gmra.mrb[0].mxu0 %v4463
  %v4573 = vpop.f32.mrb[0].mxu0
  %v4574 = vadd.f32 0.0, %v4573
  %v4575 = vpop.f32.mrb[0].mxu0
  %4576 = vmatprep.mubr.f32.mxu0 0.0
  %4577 = vmatmul.mubr.f32.gmra.mrb[0].mxu0 %v4466
  %v4578 = vpop.f32.mrb[0].mxu0
  %v4579 = vadd.f32 0.0, %v4578
  %v4580 = vpop.f32.mrb[0].mxu0
  %4581 = vmatprep.mubr.f32.mxu0 0.0
  %4582 = vmatmul.mubr.f32.gmra.mrb[0].mxu0 %v4469
  %v4583 = vpop.f32.mrb[0].mxu0
  %v4584 = vadd.f32 0.0, %v4583
  %v4585 = vpop.f32.mrb[0].mxu0
  %4586 = vmatprep.mubr.f32.mxu0 0.0
  %4587 = vmatmul.mubr.f32.gmra.mrb[0].mxu0 %v4472
  %v4588 = vpop.f32.mrb[0].mxu0
  %v4589 = vadd.f32 0.0, %v4588
  %v4590 = vpop.f32.mrb[0].mxu0
  %4591 = vmatprep.mubr.f32.mxu0 0.0
  %4592 = vmatmul.mubr.f32.gmra.mrb[0].mxu0 %v4475
  %v4593 = vpop.f32.mrb[0].mxu0
  %v4594 = vadd.f32 0.0, %v4593
  %v4595 = vpop.f32.mrb[0].mxu0
  %4596 = vdwg.mxu0
  %v4597 = vadd.f32 %v4297, %v4544
  %v4598 = vadd.f32 %v4298, %v4549
  %v4599 = vadd.f32 %v4299, %v4554
  %v4600 = vadd.f32 %v4300, %v4559
  %v4601 = vadd.f32 %v4301, %v4564
  %v4602 = vadd.f32 %v4302, %v4569
  %v4603 = vadd.f32 %v4303, %v4574
  %v4604 = vadd.f32 %v4304, %v4579
  %v4605 = vadd.f32 %v4305, %v4584
  %v4606 = vadd.f32 %v4306, %v4589
  %v4607 = vadd.f32 %v4307, %v4594
  %s4608 = scalar_lea.vmem %s11, 352
  %v4609 = vld [vmem:[%s4608] sm:$0xff]
  %v4610 = vld [vmem:[%s4608 + $0x8] sm:$0xff]
  %v4611 = vld [vmem:[%s4608 + $0x10] sm:$0xff]
  %v4612 = vld [vmem:[%s4608 + $0x18] sm:$0xff]
  %v4613 = vld [vmem:[%s4608 + $0x20] sm:$0xff]
  %v4614 = vld [vmem:[%s4608 + $0x28] sm:$0xff]
  %v4615 = vld [vmem:[%s4608 + $0x30] sm:$0xff]
  %v4616 = vld [vmem:[%s4608 + $0x38] sm:$0xff]
  %v4617 = vld [vmem:[%s4608 + $0x40] sm:$0xff]
  %v4618 = vld [vmem:[%s4608 + $0x48] sm:$0xff]
  %v4619 = vld [vmem:[%s4608 + $0x50] sm:$0xf]
  %s4620 = scalar_lea.vmem %s10, 256
  %v4621 = vld [vmem:[%s4620] sm:$0xff]
  %v4622 = vld [vmem:[%s4620 + $0x8] sm:$0xff]
  %v4623 = vld [vmem:[%s4620 + $0x10] sm:$0xff]
  %v4624 = vld [vmem:[%s4620 + $0x18] sm:$0xff]
  %v4625 = vld [vmem:[%s4620 + $0x20] sm:$0xff]
  %v4626 = vld [vmem:[%s4620 + $0x28] sm:$0xff]
  %v4627 = vld [vmem:[%s4620 + $0x30] sm:$0xff]
  %v4628 = vld [vmem:[%s4620 + $0x38] sm:$0xff]
  %4629 = vmatprep.subr.mxu0 0.0
  %4630 = vmatpush1.msra.mxu0 %v4621
  %4631 = vmatprep.subr.mxu0 0.0
  %4632 = vmatpush1.msra.mxu0 %v4622
  %4633 = vmatprep.subr.mxu0 0.0
  %4634 = vmatpush1.msra.mxu0 %v4623
  %4635 = vmatprep.subr.mxu0 0.0
  %4636 = vmatpush1.msra.mxu0 %v4624
  %4637 = vmatprep.subr.mxu0 0.0
  %4638 = vmatpush1.msra.mxu0 %v4625
  %4639 = vmatprep.subr.mxu0 0.0
  %4640 = vmatpush1.msra.mxu0 %v4626
  %4641 = vmatprep.subr.mxu0 0.0
  %4642 = vmatpush1.msra.mxu0 %v4627
  %4643 = vmatprep.subr.mxu0 0.0
  %4644 = vmatpush1.msra.mxu0 %v4628
  %4645 = vmatprep.subr.mxu0 0.0
  %4646 = vmatpush1.msra.mxu0 0.0
  %4647 = vmatprep.subr.mxu0 0.0
  %4648 = vmatpush1.msra.mxu0 0.0
  %4649 = vmatprep.subr.mxu0 0.0
  %4650 = vmatpush1.msra.mxu0 0.0
  %4651 = vmatprep.subr.mxu0 0.0
  %4652 = vmatpush1.msra.mxu0 0.0
  %4653 = vmatprep.subr.mxu0 0.0
  %4654 = vmatpush1.msra.mxu0 0.0
  %4655 = vmatprep.subr.mxu0 0.0
  %4656 = vmatpush1.msra.mxu0 0.0
  %4657 = vmatprep.subr.mxu0 0.0
  %4658 = vmatpush1.msra.mxu0 0.0
  %4659 = vmatprep.subr.mxu0 0.0
  %4660 = vmatpush1.msra.mxu0 0.0
  %4661 = vmatprep.subr.mxu0 0.0
  %4662 = vmatpush1.msra.mxu0 0.0
  %4663 = vmatprep.subr.mxu0 0.0
  %4664 = vmatpush1.msra.mxu0 0.0
  %4665 = vmatprep.subr.mxu0 0.0
  %4666 = vmatpush1.msra.mxu0 0.0
  %4667 = vmatprep.subr.mxu0 0.0
  %4668 = vmatpush1.msra.mxu0 0.0
  %4669 = vmatprep.subr.mxu0 0.0
  %4670 = vmatpush1.msra.mxu0 0.0
  %4671 = vmatprep.subr.mxu0 0.0
  %4672 = vmatpush1.msra.mxu0 0.0
  %4673 = vmatprep.subr.mxu0 0.0
  %4674 = vmatpush1.msra.mxu0 0.0
  %4675 = vmatprep.subr.mxu0 0.0
  %4676 = vmatpush1.msra.mxu0 0.0
  %4677 = vmatprep.subr.mxu0 0.0
  %4678 = vmatpush1.msra.mxu0 0.0
  %4679 = vmatprep.subr.mxu0 0.0
  %4680 = vmatpush1.msra.mxu0 0.0
  %4681 = vmatprep.subr.mxu0 0.0
  %4682 = vmatpush1.msra.mxu0 0.0
  %4683 = vmatprep.subr.mxu0 0.0
  %4684 = vmatpush1.msra.mxu0 0.0
  %4685 = vmatprep.subr.mxu0 0.0
  %4686 = vmatpush1.msra.mxu0 0.0
  %4687 = vmatprep.subr.mxu0 0.0
  %4688 = vmatpush1.msra.mxu0 0.0
  %4689 = vmatprep.subr.mxu0 0.0
  %4690 = vmatpush1.msra.mxu0 0.0
  %4691 = vmatprep.subr.mxu0 0.0
  %4692 = vmatpush1.msra.mxu0 0.0
  %4693 = vmatprep.mubr.f32.mxu0 0.0
  %4694 = vmatmul.mubr.f32.gmra.mrb[0].mxu0 %v3344
  %v4695 = vpop.f32.mrb[0].mxu0
  %v4696 = vadd.f32 0.0, %v4695
  %v4697 = vpop.f32.mrb[0].mxu0
  %4698 = vmatprep.mubr.f32.mxu0 0.0
  %4699 = vmatmul.mubr.f32.gmra.mrb[0].mxu0 %v3347
  %v4700 = vpop.f32.mrb[0].mxu0
  %v4701 = vadd.f32 0.0, %v4700
  %v4702 = vpop.f32.mrb[0].mxu0
  %4703 = vmatprep.mubr.f32.mxu0 0.0
  %4704 = vmatmul.mubr.f32.gmra.mrb[0].mxu0 %v3350
  %v4705 = vpop.f32.mrb[0].mxu0
  %v4706 = vadd.f32 0.0, %v4705
  %v4707 = vpop.f32.mrb[0].mxu0
  %4708 = vmatprep.mubr.f32.mxu0 0.0
  %4709 = vmatmul.mubr.f32.gmra.mrb[0].mxu0 %v3353
  %v4710 = vpop.f32.mrb[0].mxu0
  %v4711 = vadd.f32 0.0, %v4710
  %v4712 = vpop.f32.mrb[0].mxu0
  %4713 = vmatprep.mubr.f32.mxu0 0.0
  %4714 = vmatmul.mubr.f32.gmra.mrb[0].mxu0 %v3356
  %v4715 = vpop.f32.mrb[0].mxu0
  %v4716 = vadd.f32 0.0, %v4715
  %v4717 = vpop.f32.mrb[0].mxu0
  %4718 = vmatprep.mubr.f32.mxu0 0.0
  %4719 = vmatmul.mubr.f32.gmra.mrb[0].mxu0 %v3359
  %v4720 = vpop.f32.mrb[0].mxu0
  %v4721 = vadd.f32 0.0, %v4720
  %v4722 = vpop.f32.mrb[0].mxu0
  %4723 = vmatprep.mubr.f32.mxu0 0.0
  %4724 = vmatmul.mubr.f32.gmra.mrb[0].mxu0 %v3362
  %v4725 = vpop.f32.mrb[0].mxu0
  %v4726 = vadd.f32 0.0, %v4725
  %v4727 = vpop.f32.mrb[0].mxu0
  %4728 = vmatprep.mubr.f32.mxu0 0.0
  %4729 = vmatmul.mubr.f32.gmra.mrb[0].mxu0 %v3365
  %v4730 = vpop.f32.mrb[0].mxu0
  %v4731 = vadd.f32 0.0, %v4730
  %v4732 = vpop.f32.mrb[0].mxu0
  %4733 = vmatprep.mubr.f32.mxu0 0.0
  %4734 = vmatmul.mubr.f32.gmra.mrb[0].mxu0 %v3368
  %v4735 = vpop.f32.mrb[0].mxu0
  %v4736 = vadd.f32 0.0, %v4735
  %v4737 = vpop.f32.mrb[0].mxu0
  %4738 = vmatprep.mubr.f32.mxu0 0.0
  %4739 = vmatmul.mubr.f32.gmra.mrb[0].mxu0 %v3371
  %v4740 = vpop.f32.mrb[0].mxu0
  %v4741 = vadd.f32 0.0, %v4740
  %v4742 = vpop.f32.mrb[0].mxu0
  %4743 = vdwg.mxu0
  %v4745 = vsel %vm3488, %v4609, 0
  %v4748 = vsel %vm3488, %v4610, 0
  %v4751 = vsel %vm3488, %v4611, 0
  %v4754 = vsel %vm3488, %v4612, 0
  %v4757 = vsel %vm3488, %v4613, 0
  %v4760 = vsel %vm3488, %v4614, 0
  %v4763 = vsel %vm3488, %v4615, 0
  %v4766 = vsel %vm3488, %v4616, 0
  %v4769 = vsel %vm3488, %v4617, 0
  %v4772 = vsel %vm3488, %v4618, 0
  %v4775 = vsel %vm3488, %v4619, 0
  %4777 = vmatprep.subr.mxu0 0.0
  %4778 = vmatpush1.msra.mxu0 %v4696
  %4779 = vmatprep.subr.mxu0 0.0
  %4780 = vmatpush1.msra.mxu0 %v4701
  %4781 = vmatprep.subr.mxu0 0.0
  %4782 = vmatpush1.msra.mxu0 %v4706
  %4783 = vmatprep.subr.mxu0 0.0
  %4784 = vmatpush1.msra.mxu0 %v4711
  %4785 = vmatprep.subr.mxu0 0.0
  %4786 = vmatpush1.msra.mxu0 %v4716
  %4787 = vmatprep.subr.mxu0 0.0
  %4788 = vmatpush1.msra.mxu0 %v4721
  %4789 = vmatprep.subr.mxu0 0.0
  %4790 = vmatpush1.msra.mxu0 %v4726
  %4791 = vmatprep.subr.mxu0 0.0
  %4792 = vmatpush1.msra.mxu0 %v4731
  %4793 = vmatprep.subr.mxu0 0.0
  %4794 = vmatpush1.msra.mxu0 %v4736
  %4795 = vmatprep.subr.mxu0 0.0
  %4796 = vmatpush1.msra.mxu0 %v4741
  %4797 = vmatprep.subr.mxu0 0.0
  %4798 = vmatpush1.msra.mxu0 0.0
  %4799 = vmatprep.subr.mxu0 0.0
  %4800 = vmatpush1.msra.mxu0 0.0
  %4801 = vmatprep.subr.mxu0 0.0
  %4802 = vmatpush1.msra.mxu0 0.0
  %4803 = vmatprep.subr.mxu0 0.0
  %4804 = vmatpush1.msra.mxu0 0.0
  %4805 = vmatprep.subr.mxu0 0.0
  %4806 = vmatpush1.msra.mxu0 0.0
  %4807 = vmatprep.subr.mxu0 0.0
  %4808 = vmatpush1.msra.mxu0 0.0
  %4809 = vmatprep.subr.mxu0 0.0
  %4810 = vmatpush1.msra.mxu0 0.0
  %4811 = vmatprep.subr.mxu0 0.0
  %4812 = vmatpush1.msra.mxu0 0.0
  %4813 = vmatprep.subr.mxu0 0.0
  %4814 = vmatpush1.msra.mxu0 0.0
  %4815 = vmatprep.subr.mxu0 0.0
  %4816 = vmatpush1.msra.mxu0 0.0
  %4817 = vmatprep.subr.mxu0 0.0
  %4818 = vmatpush1.msra.mxu0 0.0
  %4819 = vmatprep.subr.mxu0 0.0
  %4820 = vmatpush1.msra.mxu0 0.0
  %4821 = vmatprep.subr.mxu0 0.0
  %4822 = vmatpush1.msra.mxu0 0.0
  %4823 = vmatprep.subr.mxu0 0.0
  %4824 = vmatpush1.msra.mxu0 0.0
  %4825 = vmatprep.subr.mxu0 0.0
  %4826 = vmatpush1.msra.mxu0 0.0
  %4827 = vmatprep.subr.mxu0 0.0
  %4828 = vmatpush1.msra.mxu0 0.0
  %4829 = vmatprep.subr.mxu0 0.0
  %4830 = vmatpush1.msra.mxu0 0.0
  %4831 = vmatprep.subr.mxu0 0.0
  %4832 = vmatpush1.msra.mxu0 0.0
  %4833 = vmatprep.subr.mxu0 0.0
  %4834 = vmatpush1.msra.mxu0 0.0
  %4835 = vmatprep.subr.mxu0 0.0
  %4836 = vmatpush1.msra.mxu0 0.0
  %4837 = vmatprep.subr.mxu0 0.0
  %4838 = vmatpush1.msra.mxu0 0.0
  %4839 = vmatprep.subr.mxu0 0.0
  %4840 = vmatpush1.msra.mxu0 0.0
  %4841 = vmatprep.mubr.f32.mxu0 0.0
  %4842 = vmatmul.mubr.f32.gmra.mrb[0].mxu0 %v4745
  %v4843 = vpop.f32.mrb[0].mxu0
  %v4844 = vadd.f32 0.0, %v4843
  %v4845 = vpop.f32.mrb[0].mxu0
  %4846 = vmatprep.mubr.f32.mxu0 0.0
  %4847 = vmatmul.mubr.f32.gmra.mrb[0].mxu0 %v4748
  %v4848 = vpop.f32.mrb[0].mxu0
  %v4849 = vadd.f32 0.0, %v4848
  %v4850 = vpop.f32.mrb[0].mxu0
  %4851 = vmatprep.mubr.f32.mxu0 0.0
  %4852 = vmatmul.mubr.f32.gmra.mrb[0].mxu0 %v4751
  %v4853 = vpop.f32.mrb[0].mxu0
  %v4854 = vadd.f32 0.0, %v4853
  %v4855 = vpop.f32.mrb[0].mxu0
  %4856 = vmatprep.mubr.f32.mxu0 0.0
  %4857 = vmatmul.mubr.f32.gmra.mrb[0].mxu0 %v4754
  %v4858 = vpop.f32.mrb[0].mxu0
  %v4859 = vadd.f32 0.0, %v4858
  %v4860 = vpop.f32.mrb[0].mxu0
  %4861 = vmatprep.mubr.f32.mxu0 0.0
  %4862 = vmatmul.mubr.f32.gmra.mrb[0].mxu0 %v4757
  %v4863 = vpop.f32.mrb[0].mxu0
  %v4864 = vadd.f32 0.0, %v4863
  %v4865 = vpop.f32.mrb[0].mxu0
  %4866 = vmatprep.mubr.f32.mxu0 0.0
  %4867 = vmatmul.mubr.f32.gmra.mrb[0].mxu0 %v4760
  %v4868 = vpop.f32.mrb[0].mxu0
  %v4869 = vadd.f32 0.0, %v4868
  %v4870 = vpop.f32.mrb[0].mxu0
  %4871 = vmatprep.mubr.f32.mxu0 0.0
  %4872 = vmatmul.mubr.f32.gmra.mrb[0].mxu0 %v4763
  %v4873 = vpop.f32.mrb[0].mxu0
  %v4874 = vadd.f32 0.0, %v4873
  %v4875 = vpop.f32.mrb[0].mxu0
  %4876 = vmatprep.mubr.f32.mxu0 0.0
  %4877 = vmatmul.mubr.f32.gmra.mrb[0].mxu0 %v4766
  %v4878 = vpop.f32.mrb[0].mxu0
  %v4879 = vadd.f32 0.0, %v4878
  %v4880 = vpop.f32.mrb[0].mxu0
  %4881 = vmatprep.mubr.f32.mxu0 0.0
  %4882 = vmatmul.mubr.f32.gmra.mrb[0].mxu0 %v4769
  %v4883 = vpop.f32.mrb[0].mxu0
  %v4884 = vadd.f32 0.0, %v4883
  %v4885 = vpop.f32.mrb[0].mxu0
  %4886 = vmatprep.mubr.f32.mxu0 0.0
  %4887 = vmatmul.mubr.f32.gmra.mrb[0].mxu0 %v4772
  %v4888 = vpop.f32.mrb[0].mxu0
  %v4889 = vadd.f32 0.0, %v4888
  %v4890 = vpop.f32.mrb[0].mxu0
  %4891 = vmatprep.mubr.f32.mxu0 0.0
  %4892 = vmatmul.mubr.f32.gmra.mrb[0].mxu0 %v4775
  %v4893 = vpop.f32.mrb[0].mxu0
  %v4894 = vadd.f32 0.0, %v4893
  %v4895 = vpop.f32.mrb[0].mxu0
  %4896 = vdwg.mxu0
  %v4897 = vadd.f32 %v4597, %v4844
  %v4898 = vadd.f32 %v4598, %v4849
  %v4899 = vadd.f32 %v4599, %v4854
  %v4900 = vadd.f32 %v4600, %v4859
  %v4901 = vadd.f32 %v4601, %v4864
  %v4902 = vadd.f32 %v4602, %v4869
  %v4903 = vadd.f32 %v4603, %v4874
  %v4904 = vadd.f32 %v4604, %v4879
  %v4905 = vadd.f32 %v4605, %v4884
  %v4906 = vadd.f32 %v4606, %v4889
  %v4907 = vadd.f32 %v4607, %v4894
  %v4908 = vtanh.pop %v4897
  %v4909 = vtanh.pop %v4898
  %v4910 = vtanh.pop %v4899
  %v4911 = vtanh.pop %v4900
  %v4912 = vtanh.pop %v4901
  %v4913 = vtanh.pop %v4902
  %v4914 = vtanh.pop %v4903
  %v4915 = vtanh.pop %v4904
  %v4916 = vtanh.pop %v4905
  %v4917 = vtanh.pop %v4906
  %v4918 = vtanh.pop %v4907
  %v4919 = vld [vmem:[%s13] sm:$0xff]
  %v4920 = vld [vmem:[%s13 + $0x8] sm:$0x3]
  %v4921 = vld [vmem:[%s14] sm:$0xff]
  %v4922 = vld [vmem:[%s14 + $0x8] sm:$0x3]
  %4924 = vset.pattern.permute.xlu0 0
  %4925 = vperm.xlu0 %4924, %v4921
  %v4926 = vpop.permute.xlu0 %4925
  %4929 = vset.pattern.permute.xlu0 0
  %4930 = vperm.xlu0 %4929, %v4922
  %v4931 = vpop.permute.xlu0 %4930
  %v4934 = vsel %vm973, %v4919, 0
  %v4937 = vsel %vm973, %v4920, 0
  %v4940 = vsel %vm1034, %v4918, 0
  %4942 = vmatprep.subr.mxu0 0.0
  %4943 = vmatpush1.msra.mxu0 %v4908
  %4944 = vmatprep.subr.mxu0 0.0
  %4945 = vmatpush1.msra.mxu0 %v4909
  %4946 = vmatprep.subr.mxu0 0.0
  %4947 = vmatpush1.msra.mxu0 %v4910
  %4948 = vmatprep.subr.mxu0 0.0
  %4949 = vmatpush1.msra.mxu0 %v4911
  %4950 = vmatprep.subr.mxu0 0.0
  %4951 = vmatpush1.msra.mxu0 %v4912
  %4952 = vmatprep.subr.mxu0 0.0
  %4953 = vmatpush1.msra.mxu0 %v4913
  %4954 = vmatprep.subr.mxu0 0.0
  %4955 = vmatpush1.msra.mxu0 %v4914
  %4956 = vmatprep.subr.mxu0 0.0
  %4957 = vmatpush1.msra.mxu0 %v4915
  %4958 = vmatprep.subr.mxu0 0.0
  %4959 = vmatpush1.msra.mxu0 %v4916
  %4960 = vmatprep.subr.mxu0 0.0
  %4961 = vmatpush1.msra.mxu0 %v4917
  %4962 = vmatprep.subr.mxu0 0.0
  %4963 = vmatpush1.msra.mxu0 %v4940
  %4964 = vmatprep.subr.mxu0 0.0
  %4965 = vmatpush1.msra.mxu0 0.0
  %4966 = vmatprep.subr.mxu0 0.0
  %4967 = vmatpush1.msra.mxu0 0.0
  %4968 = vmatprep.subr.mxu0 0.0
  %4969 = vmatpush1.msra.mxu0 0.0
  %4970 = vmatprep.subr.mxu0 0.0
  %4971 = vmatpush1.msra.mxu0 0.0
  %4972 = vmatprep.subr.mxu0 0.0
  %4973 = vmatpush1.msra.mxu0 0.0
  %4974 = vmatprep.subr.mxu0 0.0
  %4975 = vmatpush1.msra.mxu0 0.0
  %4976 = vmatprep.subr.mxu0 0.0
  %4977 = vmatpush1.msra.mxu0 0.0
  %4978 = vmatprep.subr.mxu0 0.0
  %4979 = vmatpush1.msra.mxu0 0.0
  %4980 = vmatprep.subr.mxu0 0.0
  %4981 = vmatpush1.msra.mxu0 0.0
  %4982 = vmatprep.subr.mxu0 0.0
  %4983 = vmatpush1.msra.mxu0 0.0
  %4984 = vmatprep.subr.mxu0 0.0
  %4985 = vmatpush1.msra.mxu0 0.0
  %4986 = vmatprep.subr.mxu0 0.0
  %4987 = vmatpush1.msra.mxu0 0.0
  %4988 = vmatprep.subr.mxu0 0.0
  %4989 = vmatpush1.msra.mxu0 0.0
  %4990 = vmatprep.subr.mxu0 0.0
  %4991 = vmatpush1.msra.mxu0 0.0
  %4992 = vmatprep.subr.mxu0 0.0
  %4993 = vmatpush1.msra.mxu0 0.0
  %4994 = vmatprep.subr.mxu0 0.0
  %4995 = vmatpush1.msra.mxu0 0.0
  %4996 = vmatprep.subr.mxu0 0.0
  %4997 = vmatpush1.msra.mxu0 0.0
  %4998 = vmatprep.subr.mxu0 0.0
  %4999 = vmatpush1.msra.mxu0 0.0
  %5000 = vmatprep.subr.mxu0 0.0
  %5001 = vmatpush1.msra.mxu0 0.0
  %5002 = vmatprep.subr.mxu0 0.0
  %5003 = vmatpush1.msra.mxu0 0.0
  %5004 = vmatprep.subr.mxu0 0.0
  %5005 = vmatpush1.msra.mxu0 0.0
  %5006 = vmatprep.mubr.f32.mxu0 0.0
  %5007 = vmatmul.mubr.f32.gmra.mrb[0].mxu0 %v4934
  %v5008 = vpop.f32.mrb[0].mxu0
  %v5009 = vadd.f32 %v4926, %v5008
  %v5010 = vpop.f32.mrb[0].mxu0
  %5011 = vmatprep.mubr.f32.mxu0 0.0
  %5012 = vmatmul.mubr.f32.gmra.mrb[0].mxu0 %v4937
  %v5013 = vpop.f32.mrb[0].mxu0
  %v5014 = vadd.f32 %v4931, %v5013
  %v5015 = vpop.f32.mrb[0].mxu0
  %5016 = vdwg.mxu0
  %vm5017 = vcmask 64512
  %5018 = vst.msk [vmem:[%s15] sm:$0xff] %vm5017, %v5009
  %vm5019 = vcmask 58368
  %5020 = vst.msk [vmem:[%s15 + $0x8] sm:$0x3] %vm5019, %v5014
  // Predicated region
  $region62: #{lenet_forward.1} parent=0 // pred_check
    _
  $region63: #{lenet_forward.1} parent=0 // pred_check_branch
    %5022 = sbr.rel (0) target = $region65
  $region64: #{lenet_forward.1} parent=0 // pred_region
    _
  $region65: #{lenet_forward.1} parent=0 // pred_fallthru
    _
  // Predicated region
  $region66: #{lenet_forward.1} parent=0 // pred_check
    _
  $region67: #{lenet_forward.1} parent=0 // pred_check_branch
    %5024 = sbr.rel (0) target = $region69
  $region68: #{lenet_forward.1} parent=0 // pred_region
    _
  $region69: #{lenet_forward.1} parent=0 // pred_fallthru
    _

</llo_original>
